<compile_context>
chip_gen: v5e
topology: v5e:2x2
jax: 0.10.0
libtpu: 0.0.40
codegen_flags: <defaults>
</compile_context>

<pallas_src>
import jax
import jax.numpy as jnp
from jax.experimental import pallas as pl
from jax.experimental.pallas import tpu as pltpu

# Layer sizes of the autoencoder (encoder then decoder).
IN_DIM = 3 * 28 * 28                    # 2352 (divisible by 8)
LAYER_DIMS = [IN_DIM, 128, 64, 36, 18, 9, 18, 36, 64, 128, IN_DIM]
NUM_LAYERS = len(LAYER_DIMS) - 1        # 10 linear layers

# Activation after each linear layer:
#   encoder: ReLU, ReLU, ReLU, ReLU, (none)
#   decoder: ReLU, ReLU, ReLU, ReLU, Sigmoid
ACTIVATIONS = ["relu", "relu", "relu", "relu", "none",
               "relu", "relu", "relu", "relu", "sigmoid"]

TB_MAX = 512   # max batch-tile rows per grid step
TB_GRAN = 16   # batch-tile granularity (bf16 sublane-packing friendly)


def _round_up(x, m):
    return ((x + m - 1) // m) * m


def autoencoder_kernel(x_ref, *refs):
    """Fused forward pass of the whole autoencoder for one batch tile.

    refs = (w_0..w_9, b_0..b_9, out_ref)
      x_ref : (TB, 2352)      bfloat16 VMEM
      w_i   : (in_i, out_i)   bfloat16 VMEM (whole array, resident)
      b_i   : (1, out_i)      float32  VMEM
      out   : (TB, 2352)      bfloat16 VMEM
    """
    w_refs = refs[:NUM_LAYERS]
    b_refs = refs[NUM_LAYERS:2 * NUM_LAYERS]
    out_ref = refs[2 * NUM_LAYERS]

    h = x_ref[...]  # (TB, IN_DIM) bf16
    for i in range(NUM_LAYERS):
        w = w_refs[i][...]          # bf16
        b = b_refs[i][...]          # f32 (1, out_i), broadcasts over batch
        # bf16 x bf16 matmul on the MXU with f32 accumulation; epilogue in f32.
        h = jnp.dot(h.astype(jnp.bfloat16), w,
                    preferred_element_type=jnp.float32) + b
        act = ACTIVATIONS[i]
        if act == "relu":
            h = jnp.maximum(h, 0.0)
        elif act == "sigmoid":
            h = jax.nn.sigmoid(h)
        # "none": identity
    out_ref[...] = h.astype(out_ref.dtype)   # bf16 store


@jax.jit
def autoencoder_forward(x, weights, biases):
    """x: (B, 2352) float32 (or bf16).

    weights[i]: bf16, (in_i, out_i)   — already transposed, unpadded.
    biases[i]:  f32,  (1, out_i)
    Returns (B, 2352) bfloat16.
    """
    batch = x.shape[0]
    tb = min(TB_MAX, _round_up(batch, TB_GRAN))
    b_pad = _round_up(batch, tb)

    # Only the batch dim is padded (zeros flow harmlessly and are sliced off).
    x_bf = x.astype(jnp.bfloat16)
    if b_pad != batch:
        x_bf = jnp.pad(x_bf, ((0, b_pad - batch), (0, 0)))

    grid = (b_pad // tb,)

    in_specs = [pl.BlockSpec((tb, IN_DIM), lambda b: (b, 0))]
    # Weights / biases: whole-array blocks, constant index_map -> VMEM resident.
    in_specs += [pl.BlockSpec(w.shape, lambda b: (0, 0)) for w in weights]
    in_specs += [pl.BlockSpec(bb.shape, lambda b: (0, 0)) for bb in biases]

    out_shape = jax.ShapeDtypeStruct((b_pad, IN_DIM), jnp.bfloat16)
    out_spec = pl.BlockSpec((tb, IN_DIM), lambda b: (b, 0))

    # Advisory cost estimate for XLA's scheduler.
    flops = 2 * b_pad * sum(LAYER_DIMS[i] * LAYER_DIMS[i + 1]
                            for i in range(NUM_LAYERS))
    param_bytes = (sum(int(w.size) * 2 for w in weights)
                   + sum(int(bb.size) * 4 for bb in biases))
    bytes_accessed = 2 * b_pad * IN_DIM * 2 + param_bytes  # x + out (bf16) + params

    fn = pl.pallas_call(
        autoencoder_kernel,
        out_shape=out_shape,
        grid_spec=pltpu.PrefetchScalarGridSpec(
            num_scalar_prefetch=0,
            grid=grid,
            in_specs=in_specs,
            out_specs=out_spec,
        ),
        compiler_params=pltpu.CompilerParams(
            dimension_semantics=("parallel",),
            vmem_limit_bytes=48 << 20,
        ),
        cost_estimate=pl.CostEstimate(
            flops=flops,
            transcendentals=b_pad * IN_DIM,
            bytes_accessed=bytes_accessed,
        ),
    )
    out = fn(x_bf, *weights, *biases)
    if b_pad != batch:
        out = out[:batch]
    return out


def init_params(key):
    """Deterministic init mimicking nn.Linear's uniform(-1/sqrt(in), 1/sqrt(in)).

    Weights are returned already transposed to (in_features, out_features), f32.
    Biases are (1, out_features) so they broadcast cleanly inside the kernel.
    """
    weights, biases = [], []
    for i in range(NUM_LAYERS):
        fan_in, fan_out = LAYER_DIMS[i], LAYER_DIMS[i + 1]
        key, kw, kb = jax.random.split(key, 3)
        bound = 1.0 / jnp.sqrt(jnp.float32(fan_in))
        w = jax.random.uniform(kw, (fan_in, fan_out), jnp.float32, -bound, bound)
        b = jax.random.uniform(kb, (1, fan_out), jnp.float32, -bound, bound)
        weights.append(w)
        biases.append(b)
    return weights, biases


def prepare_params(weights_f32, biases_f32):
    """Cast weights to bf16; biases stay f32. No padding needed anymore."""
    weights = [w.astype(jnp.bfloat16) for w in weights_f32]
    biases = [b.astype(jnp.float32) for b in biases_f32]
    return weights, biases


def reference_forward(x, weights_f32, biases_f32):
    """Pure-JAX reference mirroring the kernel's bf16-weight / f32-accumulate math."""
    h = x
    for i in range(NUM_LAYERS):
        w = weights_f32[i].astype(jnp.bfloat16)
        h = jnp.dot(h.astype(jnp.bfloat16), w,
                    preferred_element_type=jnp.float32) + biases_f32[i]
        if ACTIVATIONS[i] == "relu":
            h = jnp.maximum(h, 0.0)
        elif ACTIVATIONS[i] == "sigmoid":
            h = jax.nn.sigmoid(h)
    return h


if __name__ == "__main__":
    key = jax.random.PRNGKey(0)
    key, kx = jax.random.split(key)

    batch = 8
    x = jax.random.uniform(kx, (batch, IN_DIM), jnp.float32)  # flattened 3x28x28 images

    weights_f32, biases_f32 = init_params(key)
    weights, biases = prepare_params(weights_f32, biases_f32)

    out = autoencoder_forward(x, weights, biases)
    out = jax.block_until_ready(out)

    ref = reference_forward(x, weights_f32, biases_f32)
    assert out.shape == (batch, IN_DIM), out.shape
    # Output is bf16 (sigmoid outputs pick up ~2^-8 relative error) -> 2e-2 tol.
    err = float(jnp.max(jnp.abs(out.astype(jnp.float32) - ref)))
    assert err < 2e-2, err

    print("KERNEL_OK")
</pallas_src>

<mosaic_0001>
module attributes {stable_mosaic.version = 11 : i64} {
  func.func @autoencoder_kernel(%arg0: i32, %arg1: memref<16x2352xbf16, #tpu.memory_space<vmem>>, %arg2: memref<2352x128xbf16, #tpu.memory_space<vmem>>, %arg3: memref<128x64xbf16, #tpu.memory_space<vmem>>, %arg4: memref<64x36xbf16, #tpu.memory_space<vmem>>, %arg5: memref<36x18xbf16, #tpu.memory_space<vmem>>, %arg6: memref<18x9xbf16, #tpu.memory_space<vmem>>, %arg7: memref<9x18xbf16, #tpu.memory_space<vmem>>, %arg8: memref<18x36xbf16, #tpu.memory_space<vmem>>, %arg9: memref<36x64xbf16, #tpu.memory_space<vmem>>, %arg10: memref<64x128xbf16, #tpu.memory_space<vmem>>, %arg11: memref<128x2352xbf16, #tpu.memory_space<vmem>>, %arg12: memref<1x128xf32, #tpu.memory_space<vmem>>, %arg13: memref<1x64xf32, #tpu.memory_space<vmem>>, %arg14: memref<1x36xf32, #tpu.memory_space<vmem>>, %arg15: memref<1x18xf32, #tpu.memory_space<vmem>>, %arg16: memref<1x9xf32, #tpu.memory_space<vmem>>, %arg17: memref<1x18xf32, #tpu.memory_space<vmem>>, %arg18: memref<1x36xf32, #tpu.memory_space<vmem>>, %arg19: memref<1x64xf32, #tpu.memory_space<vmem>>, %arg20: memref<1x128xf32, #tpu.memory_space<vmem>>, %arg21: memref<1x2352xf32, #tpu.memory_space<vmem>>, %arg22: memref<16x2352xbf16, #tpu.memory_space<vmem>>) attributes {dimension_semantics = [#tpu.dimension_semantics<parallel>], iteration_bounds = array<i64: 1>, scalar_prefetch = 0 : i64, scratch_operands = 0 : i64, tpu.core_type = #tpu.core_type<tc>, window_params = [{transform_indices = @transform_0, window_bounds = array<i64: 16, 2352>}, {pipeline_mode = #tpu.pipeline_mode<synchronous>, transform_indices = @transform_1, window_bounds = array<i64: 2352, 128>}, {pipeline_mode = #tpu.pipeline_mode<synchronous>, transform_indices = @transform_2, window_bounds = array<i64: 128, 64>}, {pipeline_mode = #tpu.pipeline_mode<synchronous>, transform_indices = @transform_3, window_bounds = array<i64: 64, 36>}, {pipeline_mode = #tpu.pipeline_mode<synchronous>, transform_indices = @transform_4, window_bounds = array<i64: 36, 18>}, {pipeline_mode = #tpu.pipeline_mode<synchronous>, transform_indices = @transform_5, window_bounds = array<i64: 18, 9>}, {pipeline_mode = #tpu.pipeline_mode<synchronous>, transform_indices = @transform_6, window_bounds = array<i64: 9, 18>}, {pipeline_mode = #tpu.pipeline_mode<synchronous>, transform_indices = @transform_7, window_bounds = array<i64: 18, 36>}, {pipeline_mode = #tpu.pipeline_mode<synchronous>, transform_indices = @transform_8, window_bounds = array<i64: 36, 64>}, {pipeline_mode = #tpu.pipeline_mode<synchronous>, transform_indices = @transform_9, window_bounds = array<i64: 64, 128>}, {pipeline_mode = #tpu.pipeline_mode<synchronous>, transform_indices = @transform_10, window_bounds = array<i64: 128, 2352>}, {pipeline_mode = #tpu.pipeline_mode<synchronous>, transform_indices = @transform_11, window_bounds = array<i64: 1, 128>}, {pipeline_mode = #tpu.pipeline_mode<synchronous>, transform_indices = @transform_12, window_bounds = array<i64: 1, 64>}, {pipeline_mode = #tpu.pipeline_mode<synchronous>, transform_indices = @transform_13, window_bounds = array<i64: 1, 36>}, {pipeline_mode = #tpu.pipeline_mode<synchronous>, transform_indices = @transform_14, window_bounds = array<i64: 1, 18>}, {pipeline_mode = #tpu.pipeline_mode<synchronous>, transform_indices = @transform_15, window_bounds = array<i64: 1, 9>}, {pipeline_mode = #tpu.pipeline_mode<synchronous>, transform_indices = @transform_16, window_bounds = array<i64: 1, 18>}, {pipeline_mode = #tpu.pipeline_mode<synchronous>, transform_indices = @transform_17, window_bounds = array<i64: 1, 36>}, {pipeline_mode = #tpu.pipeline_mode<synchronous>, transform_indices = @transform_18, window_bounds = array<i64: 1, 64>}, {pipeline_mode = #tpu.pipeline_mode<synchronous>, transform_indices = @transform_19, window_bounds = array<i64: 1, 128>}, {pipeline_mode = #tpu.pipeline_mode<synchronous>, transform_indices = @transform_20, window_bounds = array<i64: 1, 2352>}, {transform_indices = @transform_21, window_bounds = array<i64: 16, 2352>}]} {
    %c0 = arith.constant 0 : index
    %c0_0 = arith.constant 0 : index
    %0 = vector.load %arg1[%c0, %c0_0] : memref<16x2352xbf16, #tpu.memory_space<vmem>>, vector<16x2352xbf16>
    %c0_1 = arith.constant 0 : index
    %c0_2 = arith.constant 0 : index
    %1 = vector.load %arg2[%c0_1, %c0_2] : memref<2352x128xbf16, #tpu.memory_space<vmem>>, vector<2352x128xbf16>
    %c0_3 = arith.constant 0 : index
    %c0_4 = arith.constant 0 : index
    %2 = vector.load %arg12[%c0_3, %c0_4] : memref<1x128xf32, #tpu.memory_space<vmem>>, vector<1x128xf32>
    %cst = arith.constant dense<0.000000e+00> : vector<16x128xf32>
    %3 = tpu.matmul %0, %1, %cst {dimension_numbers = #tpu.dot_dimension_numbers<[1], [0], [0], [1], [0, 0, 1, 1], [], []>} : vector<16x2352xbf16>, vector<2352x128xbf16>, vector<16x128xf32> -> vector<16x128xf32>
    %4 = vector.broadcast %2 : vector<1x128xf32> to vector<16x128xf32>
    %5 = arith.addf %3, %4 : vector<16x128xf32>
    %cst_5 = arith.constant 0.000000e+00 : f32
    %6 = vector.broadcast %cst_5 : f32 to vector<16x128xf32>
    %7 = arith.maximumf %5, %6 : vector<16x128xf32>
    %c0_6 = arith.constant 0 : index
    %c0_7 = arith.constant 0 : index
    %8 = vector.load %arg3[%c0_6, %c0_7] : memref<128x64xbf16, #tpu.memory_space<vmem>>, vector<128x64xbf16>
    %c0_8 = arith.constant 0 : index
    %c0_9 = arith.constant 0 : index
    %9 = vector.load %arg13[%c0_8, %c0_9] : memref<1x64xf32, #tpu.memory_space<vmem>>, vector<1x64xf32>
    %10 = arith.truncf %7 : vector<16x128xf32> to vector<16x128xbf16>
    %cst_10 = arith.constant dense<0.000000e+00> : vector<16x64xf32>
    %11 = tpu.matmul %10, %8, %cst_10 {dimension_numbers = #tpu.dot_dimension_numbers<[1], [0], [0], [1], [0, 0, 1, 1], [], []>} : vector<16x128xbf16>, vector<128x64xbf16>, vector<16x64xf32> -> vector<16x64xf32>
    %12 = vector.broadcast %9 : vector<1x64xf32> to vector<16x64xf32>
    %13 = arith.addf %11, %12 : vector<16x64xf32>
    %cst_11 = arith.constant 0.000000e+00 : f32
    %14 = vector.broadcast %cst_11 : f32 to vector<16x64xf32>
    %15 = arith.maximumf %13, %14 : vector<16x64xf32>
    %c0_12 = arith.constant 0 : index
    %c0_13 = arith.constant 0 : index
    %16 = vector.load %arg4[%c0_12, %c0_13] : memref<64x36xbf16, #tpu.memory_space<vmem>>, vector<64x36xbf16>
    %c0_14 = arith.constant 0 : index
    %c0_15 = arith.constant 0 : index
    %17 = vector.load %arg14[%c0_14, %c0_15] : memref<1x36xf32, #tpu.memory_space<vmem>>, vector<1x36xf32>
    %18 = arith.truncf %15 : vector<16x64xf32> to vector<16x64xbf16>
    %cst_16 = arith.constant dense<0.000000e+00> : vector<16x36xf32>
    %19 = tpu.matmul %18, %16, %cst_16 {dimension_numbers = #tpu.dot_dimension_numbers<[1], [0], [0], [1], [0, 0, 1, 1], [], []>} : vector<16x64xbf16>, vector<64x36xbf16>, vector<16x36xf32> -> vector<16x36xf32>
    %20 = vector.broadcast %17 : vector<1x36xf32> to vector<16x36xf32>
    %21 = arith.addf %19, %20 : vector<16x36xf32>
    %cst_17 = arith.constant 0.000000e+00 : f32
    %22 = vector.broadcast %cst_17 : f32 to vector<16x36xf32>
    %23 = arith.maximumf %21, %22 : vector<16x36xf32>
    %c0_18 = arith.constant 0 : index
    %c0_19 = arith.constant 0 : index
    %24 = vector.load %arg5[%c0_18, %c0_19] : memref<36x18xbf16, #tpu.memory_space<vmem>>, vector<36x18xbf16>
    %c0_20 = arith.constant 0 : index
    %c0_21 = arith.constant 0 : index
    %25 = vector.load %arg15[%c0_20, %c0_21] : memref<1x18xf32, #tpu.memory_space<vmem>>, vector<1x18xf32>
    %26 = arith.truncf %23 : vector<16x36xf32> to vector<16x36xbf16>
    %cst_22 = arith.constant dense<0.000000e+00> : vector<16x18xf32>
    %27 = tpu.matmul %26, %24, %cst_22 {dimension_numbers = #tpu.dot_dimension_numbers<[1], [0], [0], [1], [0, 0, 1, 1], [], []>} : vector<16x36xbf16>, vector<36x18xbf16>, vector<16x18xf32> -> vector<16x18xf32>
    %28 = vector.broadcast %25 : vector<1x18xf32> to vector<16x18xf32>
    %29 = arith.addf %27, %28 : vector<16x18xf32>
    %cst_23 = arith.constant 0.000000e+00 : f32
    %30 = vector.broadcast %cst_23 : f32 to vector<16x18xf32>
    %31 = arith.maximumf %29, %30 : vector<16x18xf32>
    %c0_24 = arith.constant 0 : index
    %c0_25 = arith.constant 0 : index
    %32 = vector.load %arg6[%c0_24, %c0_25] : memref<18x9xbf16, #tpu.memory_space<vmem>>, vector<18x9xbf16>
    %c0_26 = arith.constant 0 : index
    %c0_27 = arith.constant 0 : index
    %33 = vector.load %arg16[%c0_26, %c0_27] : memref<1x9xf32, #tpu.memory_space<vmem>>, vector<1x9xf32>
    %34 = arith.truncf %31 : vector<16x18xf32> to vector<16x18xbf16>
    %cst_28 = arith.constant dense<0.000000e+00> : vector<16x9xf32>
    %35 = tpu.matmul %34, %32, %cst_28 {dimension_numbers = #tpu.dot_dimension_numbers<[1], [0], [0], [1], [0, 0, 1, 1], [], []>} : vector<16x18xbf16>, vector<18x9xbf16>, vector<16x9xf32> -> vector<16x9xf32>
    %36 = vector.broadcast %33 : vector<1x9xf32> to vector<16x9xf32>
    %37 = arith.addf %35, %36 : vector<16x9xf32>
    %c0_29 = arith.constant 0 : index
    %c0_30 = arith.constant 0 : index
    %38 = vector.load %arg7[%c0_29, %c0_30] : memref<9x18xbf16, #tpu.memory_space<vmem>>, vector<9x18xbf16>
    %c0_31 = arith.constant 0 : index
    %c0_32 = arith.constant 0 : index
    %39 = vector.load %arg17[%c0_31, %c0_32] : memref<1x18xf32, #tpu.memory_space<vmem>>, vector<1x18xf32>
    %40 = arith.truncf %37 : vector<16x9xf32> to vector<16x9xbf16>
    %cst_33 = arith.constant dense<0.000000e+00> : vector<16x18xf32>
    %41 = tpu.matmul %40, %38, %cst_33 {dimension_numbers = #tpu.dot_dimension_numbers<[1], [0], [0], [1], [0, 0, 1, 1], [], []>} : vector<16x9xbf16>, vector<9x18xbf16>, vector<16x18xf32> -> vector<16x18xf32>
    %42 = vector.broadcast %39 : vector<1x18xf32> to vector<16x18xf32>
    %43 = arith.addf %41, %42 : vector<16x18xf32>
    %cst_34 = arith.constant 0.000000e+00 : f32
    %44 = vector.broadcast %cst_34 : f32 to vector<16x18xf32>
    %45 = arith.maximumf %43, %44 : vector<16x18xf32>
    %c0_35 = arith.constant 0 : index
    %c0_36 = arith.constant 0 : index
    %46 = vector.load %arg8[%c0_35, %c0_36] : memref<18x36xbf16, #tpu.memory_space<vmem>>, vector<18x36xbf16>
    %c0_37 = arith.constant 0 : index
    %c0_38 = arith.constant 0 : index
    %47 = vector.load %arg18[%c0_37, %c0_38] : memref<1x36xf32, #tpu.memory_space<vmem>>, vector<1x36xf32>
    %48 = arith.truncf %45 : vector<16x18xf32> to vector<16x18xbf16>
    %cst_39 = arith.constant dense<0.000000e+00> : vector<16x36xf32>
    %49 = tpu.matmul %48, %46, %cst_39 {dimension_numbers = #tpu.dot_dimension_numbers<[1], [0], [0], [1], [0, 0, 1, 1], [], []>} : vector<16x18xbf16>, vector<18x36xbf16>, vector<16x36xf32> -> vector<16x36xf32>
    %50 = vector.broadcast %47 : vector<1x36xf32> to vector<16x36xf32>
    %51 = arith.addf %49, %50 : vector<16x36xf32>
    %cst_40 = arith.constant 0.000000e+00 : f32
    %52 = vector.broadcast %cst_40 : f32 to vector<16x36xf32>
    %53 = arith.maximumf %51, %52 : vector<16x36xf32>
    %c0_41 = arith.constant 0 : index
    %c0_42 = arith.constant 0 : index
    %54 = vector.load %arg9[%c0_41, %c0_42] : memref<36x64xbf16, #tpu.memory_space<vmem>>, vector<36x64xbf16>
    %c0_43 = arith.constant 0 : index
    %c0_44 = arith.constant 0 : index
    %55 = vector.load %arg19[%c0_43, %c0_44] : memref<1x64xf32, #tpu.memory_space<vmem>>, vector<1x64xf32>
    %56 = arith.truncf %53 : vector<16x36xf32> to vector<16x36xbf16>
    %cst_45 = arith.constant dense<0.000000e+00> : vector<16x64xf32>
    %57 = tpu.matmul %56, %54, %cst_45 {dimension_numbers = #tpu.dot_dimension_numbers<[1], [0], [0], [1], [0, 0, 1, 1], [], []>} : vector<16x36xbf16>, vector<36x64xbf16>, vector<16x64xf32> -> vector<16x64xf32>
    %58 = vector.broadcast %55 : vector<1x64xf32> to vector<16x64xf32>
    %59 = arith.addf %57, %58 : vector<16x64xf32>
    %cst_46 = arith.constant 0.000000e+00 : f32
    %60 = vector.broadcast %cst_46 : f32 to vector<16x64xf32>
    %61 = arith.maximumf %59, %60 : vector<16x64xf32>
    %c0_47 = arith.constant 0 : index
    %c0_48 = arith.constant 0 : index
    %62 = vector.load %arg10[%c0_47, %c0_48] : memref<64x128xbf16, #tpu.memory_space<vmem>>, vector<64x128xbf16>
    %c0_49 = arith.constant 0 : index
    %c0_50 = arith.constant 0 : index
    %63 = vector.load %arg20[%c0_49, %c0_50] : memref<1x128xf32, #tpu.memory_space<vmem>>, vector<1x128xf32>
    %64 = arith.truncf %61 : vector<16x64xf32> to vector<16x64xbf16>
    %cst_51 = arith.constant dense<0.000000e+00> : vector<16x128xf32>
    %65 = tpu.matmul %64, %62, %cst_51 {dimension_numbers = #tpu.dot_dimension_numbers<[1], [0], [0], [1], [0, 0, 1, 1], [], []>} : vector<16x64xbf16>, vector<64x128xbf16>, vector<16x128xf32> -> vector<16x128xf32>
    %66 = vector.broadcast %63 : vector<1x128xf32> to vector<16x128xf32>
    %67 = arith.addf %65, %66 : vector<16x128xf32>
    %cst_52 = arith.constant 0.000000e+00 : f32
    %68 = vector.broadcast %cst_52 : f32 to vector<16x128xf32>
    %69 = arith.maximumf %67, %68 : vector<16x128xf32>
    %c0_53 = arith.constant 0 : index
    %c0_54 = arith.constant 0 : index
    %70 = vector.load %arg11[%c0_53, %c0_54] : memref<128x2352xbf16, #tpu.memory_space<vmem>>, vector<128x2352xbf16>
    %c0_55 = arith.constant 0 : index
    %c0_56 = arith.constant 0 : index
    %71 = vector.load %arg21[%c0_55, %c0_56] : memref<1x2352xf32, #tpu.memory_space<vmem>>, vector<1x2352xf32>
    %72 = arith.truncf %69 : vector<16x128xf32> to vector<16x128xbf16>
    %cst_57 = arith.constant dense<0.000000e+00> : vector<16x2352xf32>
    %73 = tpu.matmul %72, %70, %cst_57 {dimension_numbers = #tpu.dot_dimension_numbers<[1], [0], [0], [1], [0, 0, 1, 1], [], []>} : vector<16x128xbf16>, vector<128x2352xbf16>, vector<16x2352xf32> -> vector<16x2352xf32>
    %74 = vector.broadcast %71 : vector<1x2352xf32> to vector<16x2352xf32>
    %75 = arith.addf %73, %74 : vector<16x2352xf32>
    %76 = arith.negf %75 : vector<16x2352xf32>
    %77 = math.exp %76 : vector<16x2352xf32>
    %cst_58 = arith.constant 1.000000e+00 : f32
    %78 = vector.broadcast %cst_58 : f32 to vector<16x2352xf32>
    %79 = arith.addf %78, %77 : vector<16x2352xf32>
    %80 = arith.divf %78, %79 : vector<16x2352xf32>
    %81 = arith.truncf %80 : vector<16x2352xf32> to vector<16x2352xbf16>
    %c0_59 = arith.constant 0 : index
    %c0_60 = arith.constant 0 : index
    %82 = vector.load %arg22[%c0_59, %c0_60] : memref<16x2352xbf16, #tpu.memory_space<vmem>>, vector<16x2352xbf16>
    tpu.vector_store %arg22[%c0_59, %c0_60], %81 {strides = array<i32>} : memref<16x2352xbf16, #tpu.memory_space<vmem>>, vector<16x2352xbf16>,
    return
  }
  func.func @transform_0(%arg0: i32) -> (i32, i32) {
    %c0_i32 = arith.constant 0 : i32
    %c0_i32_0 = arith.constant 0 : i32
    return %arg0, %c0_i32 : i32, i32
  }
  func.func @transform_1(%arg0: i32) -> (i32, i32) {
    %c0_i32 = arith.constant 0 : i32
    %c0_i32_0 = arith.constant 0 : i32
    %c0_i32_1 = arith.constant 0 : i32
    return %c0_i32, %c0_i32_0 : i32, i32
  }
  func.func @transform_2(%arg0: i32) -> (i32, i32) {
    %c0_i32 = arith.constant 0 : i32
    %c0_i32_0 = arith.constant 0 : i32
    %c0_i32_1 = arith.constant 0 : i32
    return %c0_i32, %c0_i32_0 : i32, i32
  }
  func.func @transform_3(%arg0: i32) -> (i32, i32) {
    %c0_i32 = arith.constant 0 : i32
    %c0_i32_0 = arith.constant 0 : i32
    %c0_i32_1 = arith.constant 0 : i32
    return %c0_i32, %c0_i32_0 : i32, i32
  }
  func.func @transform_4(%arg0: i32) -> (i32, i32) {
    %c0_i32 = arith.constant 0 : i32
    %c0_i32_0 = arith.constant 0 : i32
    %c0_i32_1 = arith.constant 0 : i32
    return %c0_i32, %c0_i32_0 : i32, i32
  }
  func.func @transform_5(%arg0: i32) -> (i32, i32) {
    %c0_i32 = arith.constant 0 : i32
    %c0_i32_0 = arith.constant 0 : i32
    %c0_i32_1 = arith.constant 0 : i32
    return %c0_i32, %c0_i32_0 : i32, i32
  }
  func.func @transform_6(%arg0: i32) -> (i32, i32) {
    %c0_i32 = arith.constant 0 : i32
    %c0_i32_0 = arith.constant 0 : i32
    %c0_i32_1 = arith.constant 0 : i32
    return %c0_i32, %c0_i32_0 : i32, i32
  }
  func.func @transform_7(%arg0: i32) -> (i32, i32) {
    %c0_i32 = arith.constant 0 : i32
    %c0_i32_0 = arith.constant 0 : i32
    %c0_i32_1 = arith.constant 0 : i32
    return %c0_i32, %c0_i32_0 : i32, i32
  }
  func.func @transform_8(%arg0: i32) -> (i32, i32) {
    %c0_i32 = arith.constant 0 : i32
    %c0_i32_0 = arith.constant 0 : i32
    %c0_i32_1 = arith.constant 0 : i32
    return %c0_i32, %c0_i32_0 : i32, i32
  }
  func.func @transform_9(%arg0: i32) -> (i32, i32) {
    %c0_i32 = arith.constant 0 : i32
    %c0_i32_0 = arith.constant 0 : i32
    %c0_i32_1 = arith.constant 0 : i32
    return %c0_i32, %c0_i32_0 : i32, i32
  }
  func.func @transform_10(%arg0: i32) -> (i32, i32) {
    %c0_i32 = arith.constant 0 : i32
    %c0_i32_0 = arith.constant 0 : i32
    %c0_i32_1 = arith.constant 0 : i32
    return %c0_i32, %c0_i32_0 : i32, i32
  }
  func.func @transform_11(%arg0: i32) -> (i32, i32) {
    %c0_i32 = arith.constant 0 : i32
    %c0_i32_0 = arith.constant 0 : i32
    %c0_i32_1 = arith.constant 0 : i32
    return %c0_i32, %c0_i32_0 : i32, i32
  }
  func.func @transform_12(%arg0: i32) -> (i32, i32) {
    %c0_i32 = arith.constant 0 : i32
    %c0_i32_0 = arith.constant 0 : i32
    %c0_i32_1 = arith.constant 0 : i32
    return %c0_i32, %c0_i32_0 : i32, i32
  }
  func.func @transform_13(%arg0: i32) -> (i32, i32) {
    %c0_i32 = arith.constant 0 : i32
    %c0_i32_0 = arith.constant 0 : i32
    %c0_i32_1 = arith.constant 0 : i32
    return %c0_i32, %c0_i32_0 : i32, i32
  }
  func.func @transform_14(%arg0: i32) -> (i32, i32) {
    %c0_i32 = arith.constant 0 : i32
    %c0_i32_0 = arith.constant 0 : i32
    %c0_i32_1 = arith.constant 0 : i32
    return %c0_i32, %c0_i32_0 : i32, i32
  }
  func.func @transform_15(%arg0: i32) -> (i32, i32) {
    %c0_i32 = arith.constant 0 : i32
    %c0_i32_0 = arith.constant 0 : i32
    %c0_i32_1 = arith.constant 0 : i32
    return %c0_i32, %c0_i32_0 : i32, i32
  }
  func.func @transform_16(%arg0: i32) -> (i32, i32) {
    %c0_i32 = arith.constant 0 : i32
    %c0_i32_0 = arith.constant 0 : i32
    %c0_i32_1 = arith.constant 0 : i32
    return %c0_i32, %c0_i32_0 : i32, i32
  }
  func.func @transform_17(%arg0: i32) -> (i32, i32) {
    %c0_i32 = arith.constant 0 : i32
    %c0_i32_0 = arith.constant 0 : i32
    %c0_i32_1 = arith.constant 0 : i32
    return %c0_i32, %c0_i32_0 : i32, i32
  }
  func.func @transform_18(%arg0: i32) -> (i32, i32) {
    %c0_i32 = arith.constant 0 : i32
    %c0_i32_0 = arith.constant 0 : i32
    %c0_i32_1 = arith.constant 0 : i32
    return %c0_i32, %c0_i32_0 : i32, i32
  }
  func.func @transform_19(%arg0: i32) -> (i32, i32) {
    %c0_i32 = arith.constant 0 : i32
    %c0_i32_0 = arith.constant 0 : i32
    %c0_i32_1 = arith.constant 0 : i32
    return %c0_i32, %c0_i32_0 : i32, i32
  }
  func.func @transform_20(%arg0: i32) -> (i32, i32) {
    %c0_i32 = arith.constant 0 : i32
    %c0_i32_0 = arith.constant 0 : i32
    %c0_i32_1 = arith.constant 0 : i32
    return %c0_i32, %c0_i32_0 : i32, i32
  }
  func.func @transform_21(%arg0: i32) -> (i32, i32) {
    %c0_i32 = arith.constant 0 : i32
    %c0_i32_0 = arith.constant 0 : i32
    return %arg0, %c0_i32 : i32, i32
  }
}

</mosaic_0001>

<llo_original>
// kernel: autoencoder_forward.1
$region0: #{autoencoder_forward.1}
  #allocation0 [shape = 'u32[]', space=smem, size = 0x4, offset = 0x4, fixed_abs, tag = 'smem constant byte address 0x4 - core index']
  #allocation1 [shape = 'u32[72,128]{1,0:T(1,128)}', space=vmem, size = 0x9000, scoped, tag = 'internal scratch']
  %s0 = inlined_call_operand.vmem [shape: bf16[16,2352], index: 0, kind: input, shape index: {}]
  %s1 = inlined_call_operand.vmem [shape: bf16[2352,128], index: 1, kind: input, shape index: {}]
  %s2 = inlined_call_operand.vmem [shape: bf16[128,64], index: 2, kind: input, shape index: {}]
  %s3 = inlined_call_operand.vmem [shape: bf16[64,36], index: 3, kind: input, shape index: {}]
  %s4 = inlined_call_operand.vmem [shape: bf16[36,18], index: 4, kind: input, shape index: {}]
  %s5 = inlined_call_operand.vmem [shape: bf16[18,9], index: 5, kind: input, shape index: {}]
  %s6 = inlined_call_operand.vmem [shape: bf16[9,18], index: 6, kind: input, shape index: {}]
  %s7 = inlined_call_operand.vmem [shape: bf16[18,36], index: 7, kind: input, shape index: {}]
  %s8 = inlined_call_operand.vmem [shape: bf16[36,64], index: 8, kind: input, shape index: {}]
  %s9 = inlined_call_operand.vmem [shape: bf16[64,128], index: 9, kind: input, shape index: {}]
  %s10 = inlined_call_operand.vmem [shape: bf16[128,2352], index: 10, kind: input, shape index: {}]
  %s11 = inlined_call_operand.vmem [shape: f32[1,128], index: 11, kind: input, shape index: {}]
  %s12 = inlined_call_operand.vmem [shape: f32[1,64], index: 12, kind: input, shape index: {}]
  %s13 = inlined_call_operand.vmem [shape: f32[1,36], index: 13, kind: input, shape index: {}]
  %s14 = inlined_call_operand.vmem [shape: f32[1,18], index: 14, kind: input, shape index: {}]
  %s15 = inlined_call_operand.vmem [shape: f32[1,9], index: 15, kind: input, shape index: {}]
  %s16 = inlined_call_operand.vmem [shape: f32[1,18], index: 16, kind: input, shape index: {}]
  %s17 = inlined_call_operand.vmem [shape: f32[1,36], index: 17, kind: input, shape index: {}]
  %s18 = inlined_call_operand.vmem [shape: f32[1,64], index: 18, kind: input, shape index: {}]
  %s19 = inlined_call_operand.vmem [shape: f32[1,128], index: 19, kind: input, shape index: {}]
  %s20 = inlined_call_operand.vmem [shape: f32[1,2352], index: 20, kind: input, shape index: {}]
  %s21 = inlined_call_operand.vmem [shape: bf16[16,2352], index: 21, kind: output, shape index: {}]
  %s22 = sld [smem:[#allocation0]]
  $region94: #{autoencoder_forward.1} parent=0
    _
  %s24 = ssub.s32 1, %s22
  %s25 = scalar_select 0, %s24, %s22
  // Predicated region
  $region2: #{autoencoder_forward.1} parent=0 // pred_check
    _
  $region3: #{autoencoder_forward.1} parent=0 // pred_check_branch
    %27 = sbr.rel (0) target = $region5
  $region4: #{autoencoder_forward.1} parent=0 // pred_region
    _
  $region5: #{autoencoder_forward.1} parent=0 // pred_fallthru
    _
  // Predicated region
  $region6: #{autoencoder_forward.1} parent=0 // pred_check
    _
  $region7: #{autoencoder_forward.1} parent=0 // pred_check_branch
    %29 = sbr.rel (0) target = $region9
  $region8: #{autoencoder_forward.1} parent=0 // pred_region
    _
  $region9: #{autoencoder_forward.1} parent=0 // pred_fallthru
    _
  // Predicated region
  $region10: #{autoencoder_forward.1} parent=0 // pred_check
    _
  $region11: #{autoencoder_forward.1} parent=0 // pred_check_branch
    %31 = sbr.rel (0) target = $region13
  $region12: #{autoencoder_forward.1} parent=0 // pred_region
    _
  $region13: #{autoencoder_forward.1} parent=0 // pred_fallthru
    _
  // Predicated region
  $region14: #{autoencoder_forward.1} parent=0 // pred_check
    _
  $region15: #{autoencoder_forward.1} parent=0 // pred_check_branch
    %33 = sbr.rel (0) target = $region17
  $region16: #{autoencoder_forward.1} parent=0 // pred_region
    _
  $region17: #{autoencoder_forward.1} parent=0 // pred_fallthru
    _
  // Predicated region
  $region18: #{autoencoder_forward.1} parent=0 // pred_check
    _
  $region19: #{autoencoder_forward.1} parent=0 // pred_check_branch
    %35 = sbr.rel (0) target = $region21
  $region20: #{autoencoder_forward.1} parent=0 // pred_region
    _
  $region21: #{autoencoder_forward.1} parent=0 // pred_fallthru
    _
  // Predicated region
  $region22: #{autoencoder_forward.1} parent=0 // pred_check
    _
  $region23: #{autoencoder_forward.1} parent=0 // pred_check_branch
    %37 = sbr.rel (0) target = $region25
  $region24: #{autoencoder_forward.1} parent=0 // pred_region
    _
  $region25: #{autoencoder_forward.1} parent=0 // pred_fallthru
    _
  // Predicated region
  $region26: #{autoencoder_forward.1} parent=0 // pred_check
    _
  $region27: #{autoencoder_forward.1} parent=0 // pred_check_branch
    %39 = sbr.rel (0) target = $region29
  $region28: #{autoencoder_forward.1} parent=0 // pred_region
    _
  $region29: #{autoencoder_forward.1} parent=0 // pred_fallthru
    _
  // Predicated region
  $region30: #{autoencoder_forward.1} parent=0 // pred_check
    _
  $region31: #{autoencoder_forward.1} parent=0 // pred_check_branch
    %41 = sbr.rel (0) target = $region33
  $region32: #{autoencoder_forward.1} parent=0 // pred_region
    _
  $region33: #{autoencoder_forward.1} parent=0 // pred_fallthru
    _
  // Predicated region
  $region34: #{autoencoder_forward.1} parent=0 // pred_check
    _
  $region35: #{autoencoder_forward.1} parent=0 // pred_check_branch
    %43 = sbr.rel (0) target = $region37
  $region36: #{autoencoder_forward.1} parent=0 // pred_region
    _
  $region37: #{autoencoder_forward.1} parent=0 // pred_fallthru
    _
  // Predicated region
  $region38: #{autoencoder_forward.1} parent=0 // pred_check
    _
  $region39: #{autoencoder_forward.1} parent=0 // pred_check_branch
    %45 = sbr.rel (0) target = $region41
  $region40: #{autoencoder_forward.1} parent=0 // pred_region
    _
  $region41: #{autoencoder_forward.1} parent=0 // pred_fallthru
    _
  // Predicated region
  $region42: #{autoencoder_forward.1} parent=0 // pred_check
    _
  $region43: #{autoencoder_forward.1} parent=0 // pred_check_branch
    %47 = sbr.rel (0) target = $region45
  $region44: #{autoencoder_forward.1} parent=0 // pred_region
    _
  $region45: #{autoencoder_forward.1} parent=0 // pred_fallthru
    _
  // Predicated region
  $region46: #{autoencoder_forward.1} parent=0 // pred_check
    _
  $region47: #{autoencoder_forward.1} parent=0 // pred_check_branch
    %49 = sbr.rel (0) target = $region49
  $region48: #{autoencoder_forward.1} parent=0 // pred_region
    _
  $region49: #{autoencoder_forward.1} parent=0 // pred_fallthru
    _
  // Predicated region
  $region50: #{autoencoder_forward.1} parent=0 // pred_check
    _
  $region51: #{autoencoder_forward.1} parent=0 // pred_check_branch
    %51 = sbr.rel (0) target = $region53
  $region52: #{autoencoder_forward.1} parent=0 // pred_region
    _
  $region53: #{autoencoder_forward.1} parent=0 // pred_fallthru
    _
  // Predicated region
  $region54: #{autoencoder_forward.1} parent=0 // pred_check
    _
  $region55: #{autoencoder_forward.1} parent=0 // pred_check_branch
    %53 = sbr.rel (0) target = $region57
  $region56: #{autoencoder_forward.1} parent=0 // pred_region
    _
  $region57: #{autoencoder_forward.1} parent=0 // pred_fallthru
    _
  // Predicated region
  $region58: #{autoencoder_forward.1} parent=0 // pred_check
    _
  $region59: #{autoencoder_forward.1} parent=0 // pred_check_branch
    %55 = sbr.rel (0) target = $region61
  $region60: #{autoencoder_forward.1} parent=0 // pred_region
    _
  $region61: #{autoencoder_forward.1} parent=0 // pred_fallthru
    _
  // Predicated region
  $region62: #{autoencoder_forward.1} parent=0 // pred_check
    _
  $region63: #{autoencoder_forward.1} parent=0 // pred_check_branch
    %57 = sbr.rel (0) target = $region65
  $region64: #{autoencoder_forward.1} parent=0 // pred_region
    _
  $region65: #{autoencoder_forward.1} parent=0 // pred_fallthru
    _
  // Predicated region
  $region66: #{autoencoder_forward.1} parent=0 // pred_check
    _
  $region67: #{autoencoder_forward.1} parent=0 // pred_check_branch
    %59 = sbr.rel (0) target = $region69
  $region68: #{autoencoder_forward.1} parent=0 // pred_region
    _
  $region69: #{autoencoder_forward.1} parent=0 // pred_fallthru
    _
  // Predicated region
  $region70: #{autoencoder_forward.1} parent=0 // pred_check
    _
  $region71: #{autoencoder_forward.1} parent=0 // pred_check_branch
    %61 = sbr.rel (0) target = $region73
  $region72: #{autoencoder_forward.1} parent=0 // pred_region
    _
  $region73: #{autoencoder_forward.1} parent=0 // pred_fallthru
    _
  // Predicated region
  $region74: #{autoencoder_forward.1} parent=0 // pred_check
    _
  $region75: #{autoencoder_forward.1} parent=0 // pred_check_branch
    %63 = sbr.rel (0) target = $region77
  $region76: #{autoencoder_forward.1} parent=0 // pred_region
    _
  $region77: #{autoencoder_forward.1} parent=0 // pred_fallthru
    _
  // Predicated region
  $region78: #{autoencoder_forward.1} parent=0 // pred_check
    _
  $region79: #{autoencoder_forward.1} parent=0 // pred_check_branch
    %65 = sbr.rel (0) target = $region81
  $region80: #{autoencoder_forward.1} parent=0 // pred_region
    _
  $region81: #{autoencoder_forward.1} parent=0 // pred_fallthru
    _
  // Predicated region
  $region82: #{autoencoder_forward.1} parent=0 // pred_check
    _
  $region83: #{autoencoder_forward.1} parent=0 // pred_check_branch
    %67 = sbr.rel (0) target = $region85
  $region84: #{autoencoder_forward.1} parent=0 // pred_region
    _
  $region85: #{autoencoder_forward.1} parent=0 // pred_fallthru
    _
  %v69 = vld [vmem:[%s0] sm:$0xff]
  %v70 = vld [vmem:[%s0 + $0x8] sm:$0xff]
  %v71 = vld [vmem:[%s0 + $0x10] sm:$0xff]
  %v72 = vld [vmem:[%s0 + $0x18] sm:$0xff]
  %v73 = vld [vmem:[%s0 + $0x20] sm:$0xff]
  %v74 = vld [vmem:[%s0 + $0x28] sm:$0xff]
  %v75 = vld [vmem:[%s0 + $0x30] sm:$0xff]
  %v76 = vld [vmem:[%s0 + $0x38] sm:$0xff]
  %v77 = vld [vmem:[%s0 + $0x40] sm:$0xff]
  %v78 = vld [vmem:[%s0 + $0x48] sm:$0xf]
  %v79 = vld [vmem:[%s0 + $0x4c] sm:$0xff]
  %v80 = vld [vmem:[%s0 + $0x54] sm:$0xff]
  %v81 = vld [vmem:[%s0 + $0x5c] sm:$0xff]
  %v82 = vld [vmem:[%s0 + $0x64] sm:$0xff]
  %v83 = vld [vmem:[%s0 + $0x6c] sm:$0xff]
  %v84 = vld [vmem:[%s0 + $0x74] sm:$0xff]
  %v85 = vld [vmem:[%s0 + $0x7c] sm:$0xff]
  %v86 = vld [vmem:[%s0 + $0x84] sm:$0xff]
  %v87 = vld [vmem:[%s0 + $0x8c] sm:$0xff]
  %v88 = vld [vmem:[%s0 + $0x94] sm:$0xf]
  %v89 = vld [vmem:[%s1] sm:$0xf]
  %v90 = vld [vmem:[%s1 + $0x4] sm:$0xf]
  %v91 = vld [vmem:[%s1 + $0x8] sm:$0xf]
  %v92 = vld [vmem:[%s1 + $0xc] sm:$0xf]
  %v93 = vld [vmem:[%s1 + $0x10] sm:$0xf]
  %v94 = vld [vmem:[%s1 + $0x14] sm:$0xf]
  %v95 = vld [vmem:[%s1 + $0x18] sm:$0xf]
  %v96 = vld [vmem:[%s1 + $0x1c] sm:$0xf]
  %v97 = vld [vmem:[%s1 + $0x20] sm:$0xf]
  %v98 = vld [vmem:[%s1 + $0x24] sm:$0xf]
  %v99 = vld [vmem:[%s1 + $0x28] sm:$0xf]
  %v100 = vld [vmem:[%s1 + $0x2c] sm:$0xf]
  %v101 = vld [vmem:[%s1 + $0x30] sm:$0xf]
  %v102 = vld [vmem:[%s1 + $0x34] sm:$0xf]
  %v103 = vld [vmem:[%s1 + $0x38] sm:$0xf]
  %v104 = vld [vmem:[%s1 + $0x3c] sm:$0xf]
  %v105 = vld [vmem:[%s1 + $0x40] sm:$0xf]
  %v106 = vld [vmem:[%s1 + $0x44] sm:$0xf]
  %v107 = vld [vmem:[%s1 + $0x48] sm:$0xf]
  %v108 = vld [vmem:[%s1 + $0x4c] sm:$0xf]
  %v109 = vld [vmem:[%s1 + $0x50] sm:$0xf]
  %v110 = vld [vmem:[%s1 + $0x54] sm:$0xf]
  %v111 = vld [vmem:[%s1 + $0x58] sm:$0xf]
  %v112 = vld [vmem:[%s1 + $0x5c] sm:$0xf]
  %v113 = vld [vmem:[%s1 + $0x60] sm:$0xf]
  %v114 = vld [vmem:[%s1 + $0x64] sm:$0xf]
  %v115 = vld [vmem:[%s1 + $0x68] sm:$0xf]
  %v116 = vld [vmem:[%s1 + $0x6c] sm:$0xf]
  %v117 = vld [vmem:[%s1 + $0x70] sm:$0xf]
  %v118 = vld [vmem:[%s1 + $0x74] sm:$0xf]
  %v119 = vld [vmem:[%s1 + $0x78] sm:$0xf]
  %v120 = vld [vmem:[%s1 + $0x7c] sm:$0xf]
  %v121 = vld [vmem:[%s1 + $0x80] sm:$0xf]
  %v122 = vld [vmem:[%s1 + $0x84] sm:$0xf]
  %v123 = vld [vmem:[%s1 + $0x88] sm:$0xf]
  %v124 = vld [vmem:[%s1 + $0x8c] sm:$0xf]
  %v125 = vld [vmem:[%s1 + $0x90] sm:$0xf]
  %v126 = vld [vmem:[%s1 + $0x94] sm:$0xf]
  %v127 = vld [vmem:[%s1 + $0x98] sm:$0xf]
  %v128 = vld [vmem:[%s1 + $0x9c] sm:$0xf]
  %v129 = vld [vmem:[%s1 + $0xa0] sm:$0xf]
  %v130 = vld [vmem:[%s1 + $0xa4] sm:$0xf]
  %v131 = vld [vmem:[%s1 + $0xa8] sm:$0xf]
  %v132 = vld [vmem:[%s1 + $0xac] sm:$0xf]
  %v133 = vld [vmem:[%s1 + $0xb0] sm:$0xf]
  %v134 = vld [vmem:[%s1 + $0xb4] sm:$0xf]
  %v135 = vld [vmem:[%s1 + $0xb8] sm:$0xf]
  %v136 = vld [vmem:[%s1 + $0xbc] sm:$0xf]
  %v137 = vld [vmem:[%s1 + $0xc0] sm:$0xf]
  %v138 = vld [vmem:[%s1 + $0xc4] sm:$0xf]
  %v139 = vld [vmem:[%s1 + $0xc8] sm:$0xf]
  %v140 = vld [vmem:[%s1 + $0xcc] sm:$0xf]
  %v141 = vld [vmem:[%s1 + $0xd0] sm:$0xf]
  %v142 = vld [vmem:[%s1 + $0xd4] sm:$0xf]
  %v143 = vld [vmem:[%s1 + $0xd8] sm:$0xf]
  %v144 = vld [vmem:[%s1 + $0xdc] sm:$0xf]
  %v145 = vld [vmem:[%s1 + $0xe0] sm:$0xf]
  %v146 = vld [vmem:[%s1 + $0xe4] sm:$0xf]
  %v147 = vld [vmem:[%s1 + $0xe8] sm:$0xf]
  %v148 = vld [vmem:[%s1 + $0xec] sm:$0xf]
  %v149 = vld [vmem:[%s1 + $0xf0] sm:$0xf]
  %v150 = vld [vmem:[%s1 + $0xf4] sm:$0xf]
  %v151 = vld [vmem:[%s1 + $0xf8] sm:$0xf]
  %v152 = vld [vmem:[%s1 + $0xfc] sm:$0xf]
  %v153 = vld [vmem:[%s1 + $0x100] sm:$0xf]
  %v154 = vld [vmem:[%s1 + $0x104] sm:$0xf]
  %v155 = vld [vmem:[%s1 + $0x108] sm:$0xf]
  %v156 = vld [vmem:[%s1 + $0x10c] sm:$0xf]
  %v157 = vld [vmem:[%s1 + $0x110] sm:$0xf]
  %v158 = vld [vmem:[%s1 + $0x114] sm:$0xf]
  %v159 = vld [vmem:[%s1 + $0x118] sm:$0xf]
  %v160 = vld [vmem:[%s1 + $0x11c] sm:$0xf]
  %v161 = vld [vmem:[%s1 + $0x120] sm:$0xf]
  %v162 = vld [vmem:[%s1 + $0x124] sm:$0xf]
  %v163 = vld [vmem:[%s1 + $0x128] sm:$0xf]
  %v164 = vld [vmem:[%s1 + $0x12c] sm:$0xf]
  %v165 = vld [vmem:[%s1 + $0x130] sm:$0xf]
  %v166 = vld [vmem:[%s1 + $0x134] sm:$0xf]
  %v167 = vld [vmem:[%s1 + $0x138] sm:$0xf]
  %v168 = vld [vmem:[%s1 + $0x13c] sm:$0xf]
  %v169 = vld [vmem:[%s1 + $0x140] sm:$0xf]
  %v170 = vld [vmem:[%s1 + $0x144] sm:$0xf]
  %v171 = vld [vmem:[%s1 + $0x148] sm:$0xf]
  %v172 = vld [vmem:[%s1 + $0x14c] sm:$0xf]
  %v173 = vld [vmem:[%s1 + $0x150] sm:$0xf]
  %v174 = vld [vmem:[%s1 + $0x154] sm:$0xf]
  %v175 = vld [vmem:[%s1 + $0x158] sm:$0xf]
  %v176 = vld [vmem:[%s1 + $0x15c] sm:$0xf]
  %v177 = vld [vmem:[%s1 + $0x160] sm:$0xf]
  %v178 = vld [vmem:[%s1 + $0x164] sm:$0xf]
  %v179 = vld [vmem:[%s1 + $0x168] sm:$0xf]
  %v180 = vld [vmem:[%s1 + $0x16c] sm:$0xf]
  %v181 = vld [vmem:[%s1 + $0x170] sm:$0xf]
  %v182 = vld [vmem:[%s1 + $0x174] sm:$0xf]
  %v183 = vld [vmem:[%s1 + $0x178] sm:$0xf]
  %v184 = vld [vmem:[%s1 + $0x17c] sm:$0xf]
  %v185 = vld [vmem:[%s1 + $0x180] sm:$0xf]
  %v186 = vld [vmem:[%s1 + $0x184] sm:$0xf]
  %v187 = vld [vmem:[%s1 + $0x188] sm:$0xf]
  %v188 = vld [vmem:[%s1 + $0x18c] sm:$0xf]
  %v189 = vld [vmem:[%s1 + $0x190] sm:$0xf]
  %v190 = vld [vmem:[%s1 + $0x194] sm:$0xf]
  %v191 = vld [vmem:[%s1 + $0x198] sm:$0xf]
  %v192 = vld [vmem:[%s1 + $0x19c] sm:$0xf]
  %v193 = vld [vmem:[%s1 + $0x1a0] sm:$0xf]
  %v194 = vld [vmem:[%s1 + $0x1a4] sm:$0xf]
  %v195 = vld [vmem:[%s1 + $0x1a8] sm:$0xf]
  %v196 = vld [vmem:[%s1 + $0x1ac] sm:$0xf]
  %v197 = vld [vmem:[%s1 + $0x1b0] sm:$0xf]
  %v198 = vld [vmem:[%s1 + $0x1b4] sm:$0xf]
  %v199 = vld [vmem:[%s1 + $0x1b8] sm:$0xf]
  %v200 = vld [vmem:[%s1 + $0x1bc] sm:$0xf]
  %v201 = vld [vmem:[%s1 + $0x1c0] sm:$0xf]
  %v202 = vld [vmem:[%s1 + $0x1c4] sm:$0xf]
  %v203 = vld [vmem:[%s1 + $0x1c8] sm:$0xf]
  %v204 = vld [vmem:[%s1 + $0x1cc] sm:$0xf]
  %v205 = vld [vmem:[%s1 + $0x1d0] sm:$0xf]
  %v206 = vld [vmem:[%s1 + $0x1d4] sm:$0xf]
  %v207 = vld [vmem:[%s1 + $0x1d8] sm:$0xf]
  %v208 = vld [vmem:[%s1 + $0x1dc] sm:$0xf]
  %v209 = vld [vmem:[%s1 + $0x1e0] sm:$0xf]
  %v210 = vld [vmem:[%s1 + $0x1e4] sm:$0xf]
  %v211 = vld [vmem:[%s1 + $0x1e8] sm:$0xf]
  %v212 = vld [vmem:[%s1 + $0x1ec] sm:$0xf]
  %v213 = vld [vmem:[%s1 + $0x1f0] sm:$0xf]
  %v214 = vld [vmem:[%s1 + $0x1f4] sm:$0xf]
  %v215 = vld [vmem:[%s1 + $0x1f8] sm:$0xf]
  %v216 = vld [vmem:[%s1 + $0x1fc] sm:$0xf]
  %v217 = vld [vmem:[%s1 + $0x200] sm:$0xf]
  %v218 = vld [vmem:[%s1 + $0x204] sm:$0xf]
  %v219 = vld [vmem:[%s1 + $0x208] sm:$0xf]
  %v220 = vld [vmem:[%s1 + $0x20c] sm:$0xf]
  %v221 = vld [vmem:[%s1 + $0x210] sm:$0xf]
  %v222 = vld [vmem:[%s1 + $0x214] sm:$0xf]
  %v223 = vld [vmem:[%s1 + $0x218] sm:$0xf]
  %v224 = vld [vmem:[%s1 + $0x21c] sm:$0xf]
  %v225 = vld [vmem:[%s1 + $0x220] sm:$0xf]
  %v226 = vld [vmem:[%s1 + $0x224] sm:$0xf]
  %v227 = vld [vmem:[%s1 + $0x228] sm:$0xf]
  %v228 = vld [vmem:[%s1 + $0x22c] sm:$0xf]
  %v229 = vld [vmem:[%s1 + $0x230] sm:$0xf]
  %v230 = vld [vmem:[%s1 + $0x234] sm:$0xf]
  %v231 = vld [vmem:[%s1 + $0x238] sm:$0xf]
  %v232 = vld [vmem:[%s1 + $0x23c] sm:$0xf]
  %v233 = vld [vmem:[%s1 + $0x240] sm:$0xf]
  %v234 = vld [vmem:[%s1 + $0x244] sm:$0xf]
  %v235 = vld [vmem:[%s1 + $0x248] sm:$0xf]
  %v236 = vld [vmem:[%s1 + $0x24c] sm:$0xf]
  %v237 = vld [vmem:[%s1 + $0x250] sm:$0xf]
  %v238 = vld [vmem:[%s1 + $0x254] sm:$0xf]
  %v239 = vld [vmem:[%s1 + $0x258] sm:$0xf]
  %v240 = vld [vmem:[%s1 + $0x25c] sm:$0xf]
  %v241 = vld [vmem:[%s1 + $0x260] sm:$0xf]
  %v242 = vld [vmem:[%s1 + $0x264] sm:$0xf]
  %v243 = vld [vmem:[%s1 + $0x268] sm:$0xf]
  %v244 = vld [vmem:[%s1 + $0x26c] sm:$0xf]
  %v245 = vld [vmem:[%s1 + $0x270] sm:$0xf]
  %v246 = vld [vmem:[%s1 + $0x274] sm:$0xf]
  %v247 = vld [vmem:[%s1 + $0x278] sm:$0xf]
  %v248 = vld [vmem:[%s1 + $0x27c] sm:$0xf]
  %v249 = vld [vmem:[%s1 + $0x280] sm:$0xf]
  %v250 = vld [vmem:[%s1 + $0x284] sm:$0xf]
  %v251 = vld [vmem:[%s1 + $0x288] sm:$0xf]
  %v252 = vld [vmem:[%s1 + $0x28c] sm:$0xf]
  %v253 = vld [vmem:[%s1 + $0x290] sm:$0xf]
  %v254 = vld [vmem:[%s1 + $0x294] sm:$0xf]
  %v255 = vld [vmem:[%s1 + $0x298] sm:$0xf]
  %v256 = vld [vmem:[%s1 + $0x29c] sm:$0xf]
  %v257 = vld [vmem:[%s1 + $0x2a0] sm:$0xf]
  %v258 = vld [vmem:[%s1 + $0x2a4] sm:$0xf]
  %v259 = vld [vmem:[%s1 + $0x2a8] sm:$0xf]
  %v260 = vld [vmem:[%s1 + $0x2ac] sm:$0xf]
  %v261 = vld [vmem:[%s1 + $0x2b0] sm:$0xf]
  %v262 = vld [vmem:[%s1 + $0x2b4] sm:$0xf]
  %v263 = vld [vmem:[%s1 + $0x2b8] sm:$0xf]
  %v264 = vld [vmem:[%s1 + $0x2bc] sm:$0xf]
  %v265 = vld [vmem:[%s1 + $0x2c0] sm:$0xf]
  %v266 = vld [vmem:[%s1 + $0x2c4] sm:$0xf]
  %v267 = vld [vmem:[%s1 + $0x2c8] sm:$0xf]
  %v268 = vld [vmem:[%s1 + $0x2cc] sm:$0xf]
  %v269 = vld [vmem:[%s1 + $0x2d0] sm:$0xf]
  %v270 = vld [vmem:[%s1 + $0x2d4] sm:$0xf]
  %v271 = vld [vmem:[%s1 + $0x2d8] sm:$0xf]
  %v272 = vld [vmem:[%s1 + $0x2dc] sm:$0xf]
  %v273 = vld [vmem:[%s1 + $0x2e0] sm:$0xf]
  %v274 = vld [vmem:[%s1 + $0x2e4] sm:$0xf]
  %v275 = vld [vmem:[%s1 + $0x2e8] sm:$0xf]
  %v276 = vld [vmem:[%s1 + $0x2ec] sm:$0xf]
  %v277 = vld [vmem:[%s1 + $0x2f0] sm:$0xf]
  %v278 = vld [vmem:[%s1 + $0x2f4] sm:$0xf]
  %v279 = vld [vmem:[%s1 + $0x2f8] sm:$0xf]
  %v280 = vld [vmem:[%s1 + $0x2fc] sm:$0xf]
  %v281 = vld [vmem:[%s1 + $0x300] sm:$0xf]
  %v282 = vld [vmem:[%s1 + $0x304] sm:$0xf]
  %v283 = vld [vmem:[%s1 + $0x308] sm:$0xf]
  %v284 = vld [vmem:[%s1 + $0x30c] sm:$0xf]
  %v285 = vld [vmem:[%s1 + $0x310] sm:$0xf]
  %v286 = vld [vmem:[%s1 + $0x314] sm:$0xf]
  %v287 = vld [vmem:[%s1 + $0x318] sm:$0xf]
  %v288 = vld [vmem:[%s1 + $0x31c] sm:$0xf]
  %v289 = vld [vmem:[%s1 + $0x320] sm:$0xf]
  %v290 = vld [vmem:[%s1 + $0x324] sm:$0xf]
  %v291 = vld [vmem:[%s1 + $0x328] sm:$0xf]
  %v292 = vld [vmem:[%s1 + $0x32c] sm:$0xf]
  %v293 = vld [vmem:[%s1 + $0x330] sm:$0xf]
  %v294 = vld [vmem:[%s1 + $0x334] sm:$0xf]
  %v295 = vld [vmem:[%s1 + $0x338] sm:$0xf]
  %v296 = vld [vmem:[%s1 + $0x33c] sm:$0xf]
  %v297 = vld [vmem:[%s1 + $0x340] sm:$0xf]
  %v298 = vld [vmem:[%s1 + $0x344] sm:$0xf]
  %v299 = vld [vmem:[%s1 + $0x348] sm:$0xf]
  %v300 = vld [vmem:[%s1 + $0x34c] sm:$0xf]
  %v301 = vld [vmem:[%s1 + $0x350] sm:$0xf]
  %v302 = vld [vmem:[%s1 + $0x354] sm:$0xf]
  %v303 = vld [vmem:[%s1 + $0x358] sm:$0xf]
  %v304 = vld [vmem:[%s1 + $0x35c] sm:$0xf]
  %v305 = vld [vmem:[%s1 + $0x360] sm:$0xf]
  %v306 = vld [vmem:[%s1 + $0x364] sm:$0xf]
  %v307 = vld [vmem:[%s1 + $0x368] sm:$0xf]
  %v308 = vld [vmem:[%s1 + $0x36c] sm:$0xf]
  %v309 = vld [vmem:[%s1 + $0x370] sm:$0xf]
  %v310 = vld [vmem:[%s1 + $0x374] sm:$0xf]
  %v311 = vld [vmem:[%s1 + $0x378] sm:$0xf]
  %v312 = vld [vmem:[%s1 + $0x37c] sm:$0xf]
  %v313 = vld [vmem:[%s1 + $0x380] sm:$0xf]
  %v314 = vld [vmem:[%s1 + $0x384] sm:$0xf]
  %v315 = vld [vmem:[%s1 + $0x388] sm:$0xf]
  %v316 = vld [vmem:[%s1 + $0x38c] sm:$0xf]
  %v317 = vld [vmem:[%s1 + $0x390] sm:$0xf]
  %v318 = vld [vmem:[%s1 + $0x394] sm:$0xf]
  %v319 = vld [vmem:[%s1 + $0x398] sm:$0xf]
  %v320 = vld [vmem:[%s1 + $0x39c] sm:$0xf]
  %v321 = vld [vmem:[%s1 + $0x3a0] sm:$0xf]
  %v322 = vld [vmem:[%s1 + $0x3a4] sm:$0xf]
  %v323 = vld [vmem:[%s1 + $0x3a8] sm:$0xf]
  %v324 = vld [vmem:[%s1 + $0x3ac] sm:$0xf]
  %v325 = vld [vmem:[%s1 + $0x3b0] sm:$0xf]
  %v326 = vld [vmem:[%s1 + $0x3b4] sm:$0xf]
  %v327 = vld [vmem:[%s1 + $0x3b8] sm:$0xf]
  %v328 = vld [vmem:[%s1 + $0x3bc] sm:$0xf]
  %v329 = vld [vmem:[%s1 + $0x3c0] sm:$0xf]
  %v330 = vld [vmem:[%s1 + $0x3c4] sm:$0xf]
  %v331 = vld [vmem:[%s1 + $0x3c8] sm:$0xf]
  %v332 = vld [vmem:[%s1 + $0x3cc] sm:$0xf]
  %v333 = vld [vmem:[%s1 + $0x3d0] sm:$0xf]
  %v334 = vld [vmem:[%s1 + $0x3d4] sm:$0xf]
  %v335 = vld [vmem:[%s1 + $0x3d8] sm:$0xf]
  %v336 = vld [vmem:[%s1 + $0x3dc] sm:$0xf]
  %v337 = vld [vmem:[%s1 + $0x3e0] sm:$0xf]
  %v338 = vld [vmem:[%s1 + $0x3e4] sm:$0xf]
  %v339 = vld [vmem:[%s1 + $0x3e8] sm:$0xf]
  %v340 = vld [vmem:[%s1 + $0x3ec] sm:$0xf]
  %v341 = vld [vmem:[%s1 + $0x3f0] sm:$0xf]
  %v342 = vld [vmem:[%s1 + $0x3f4] sm:$0xf]
  %v343 = vld [vmem:[%s1 + $0x3f8] sm:$0xf]
  %v344 = vld [vmem:[%s1 + $0x3fc] sm:$0xf]
  %v345 = vld [vmem:[%s1 + $0x400] sm:$0xf]
  %v346 = vld [vmem:[%s1 + $0x404] sm:$0xf]
  %v347 = vld [vmem:[%s1 + $0x408] sm:$0xf]
  %v348 = vld [vmem:[%s1 + $0x40c] sm:$0xf]
  %v349 = vld [vmem:[%s1 + $0x410] sm:$0xf]
  %v350 = vld [vmem:[%s1 + $0x414] sm:$0xf]
  %v351 = vld [vmem:[%s1 + $0x418] sm:$0xf]
  %v352 = vld [vmem:[%s1 + $0x41c] sm:$0xf]
  %v353 = vld [vmem:[%s1 + $0x420] sm:$0xf]
  %v354 = vld [vmem:[%s1 + $0x424] sm:$0xf]
  %v355 = vld [vmem:[%s1 + $0x428] sm:$0xf]
  %v356 = vld [vmem:[%s1 + $0x42c] sm:$0xf]
  %v357 = vld [vmem:[%s1 + $0x430] sm:$0xf]
  %v358 = vld [vmem:[%s1 + $0x434] sm:$0xf]
  %v359 = vld [vmem:[%s1 + $0x438] sm:$0xf]
  %v360 = vld [vmem:[%s1 + $0x43c] sm:$0xf]
  %v361 = vld [vmem:[%s1 + $0x440] sm:$0xf]
  %v362 = vld [vmem:[%s1 + $0x444] sm:$0xf]
  %v363 = vld [vmem:[%s1 + $0x448] sm:$0xf]
  %v364 = vld [vmem:[%s1 + $0x44c] sm:$0xf]
  %v365 = vld [vmem:[%s1 + $0x450] sm:$0xf]
  %v366 = vld [vmem:[%s1 + $0x454] sm:$0xf]
  %v367 = vld [vmem:[%s1 + $0x458] sm:$0xf]
  %v368 = vld [vmem:[%s1 + $0x45c] sm:$0xf]
  %v369 = vld [vmem:[%s1 + $0x460] sm:$0xf]
  %v370 = vld [vmem:[%s1 + $0x464] sm:$0xf]
  %v371 = vld [vmem:[%s1 + $0x468] sm:$0xf]
  %v372 = vld [vmem:[%s1 + $0x46c] sm:$0xf]
  %v373 = vld [vmem:[%s1 + $0x470] sm:$0xf]
  %v374 = vld [vmem:[%s1 + $0x474] sm:$0xf]
  %v375 = vld [vmem:[%s1 + $0x478] sm:$0xf]
  %v376 = vld [vmem:[%s1 + $0x47c] sm:$0xf]
  %v377 = vld [vmem:[%s1 + $0x480] sm:$0xf]
  %v378 = vld [vmem:[%s1 + $0x484] sm:$0xf]
  %v379 = vld [vmem:[%s1 + $0x488] sm:$0xf]
  %v380 = vld [vmem:[%s1 + $0x48c] sm:$0xf]
  %v381 = vld [vmem:[%s1 + $0x490] sm:$0xf]
  %v382 = vld [vmem:[%s1 + $0x494] sm:$0xf]
  %v383 = vld [vmem:[%s11] sm:$0x1]
  %v385 = vperm.slane %v383, 0
  %v407 = vunpack.c.l.b16 %v69
  %v408 = vunpack.c.h.b16 %v69
  %v409 = vunpack.c.l.b16 %v70
  %v410 = vunpack.c.h.b16 %v70
  %v411 = vunpack.c.l.b16 %v71
  %v412 = vunpack.c.h.b16 %v71
  %v413 = vunpack.c.l.b16 %v72
  %v414 = vunpack.c.h.b16 %v72
  %v415 = vunpack.c.l.b16 %v73
  %v416 = vunpack.c.h.b16 %v73
  %v417 = vunpack.c.l.b16 %v74
  %v418 = vunpack.c.h.b16 %v74
  %v419 = vunpack.c.l.b16 %v75
  %v420 = vunpack.c.h.b16 %v75
  %v421 = vunpack.c.l.b16 %v76
  %v422 = vunpack.c.h.b16 %v76
  %v423 = vunpack.c.l.b16 %v77
  %v424 = vunpack.c.h.b16 %v77
  %v425 = vunpack.c.l.b16 %v78
  %v426 = vunpack.c.l.b16 %v79
  %v427 = vunpack.c.h.b16 %v79
  %v428 = vunpack.c.l.b16 %v80
  %v429 = vunpack.c.h.b16 %v80
  %v430 = vunpack.c.l.b16 %v81
  %v431 = vunpack.c.h.b16 %v81
  %v432 = vunpack.c.l.b16 %v82
  %v433 = vunpack.c.h.b16 %v82
  %v434 = vunpack.c.l.b16 %v83
  %v435 = vunpack.c.h.b16 %v83
  %v436 = vunpack.c.l.b16 %v84
  %v437 = vunpack.c.h.b16 %v84
  %v438 = vunpack.c.l.b16 %v85
  %v439 = vunpack.c.h.b16 %v85
  %v440 = vunpack.c.l.b16 %v86
  %v441 = vunpack.c.h.b16 %v86
  %v442 = vunpack.c.l.b16 %v87
  %v443 = vunpack.c.h.b16 %v87
  %v444 = vunpack.c.l.b16 %v88
  %v445 = vpack.c.b16 %v426, %v407
  %v446 = vpack.c.b16 %v427, %v408
  %v447 = vpack.c.b16 %v428, %v409
  %v448 = vpack.c.b16 %v429, %v410
  %v449 = vpack.c.b16 %v430, %v411
  %v450 = vpack.c.b16 %v431, %v412
  %v451 = vpack.c.b16 %v432, %v413
  %v452 = vpack.c.b16 %v433, %v414
  %v453 = vpack.c.b16 %v434, %v415
  %v454 = vpack.c.b16 %v435, %v416
  %v455 = vpack.c.b16 %v436, %v417
  %v456 = vpack.c.b16 %v437, %v418
  %v457 = vpack.c.b16 %v438, %v419
  %v458 = vpack.c.b16 %v439, %v420
  %v459 = vpack.c.b16 %v440, %v421
  %v460 = vpack.c.b16 %v441, %v422
  %v461 = vpack.c.b16 %v442, %v423
  %v462 = vpack.c.b16 %v443, %v424
  %v463 = vpack.c.b16 %v444, %v425
  %v776 = vunpack.c.l.b16 %v89
  %v777 = vunpack.c.l.b16 %v90
  %v778 = vunpack.c.l.b16 %v91
  %v779 = vunpack.c.l.b16 %v92
  %v780 = vunpack.c.l.b16 %v93
  %v781 = vunpack.c.l.b16 %v94
  %v782 = vunpack.c.l.b16 %v95
  %v783 = vunpack.c.l.b16 %v96
  %v784 = vunpack.c.l.b16 %v97
  %v785 = vunpack.c.l.b16 %v98
  %v786 = vunpack.c.l.b16 %v99
  %v787 = vunpack.c.l.b16 %v100
  %v788 = vunpack.c.l.b16 %v101
  %v789 = vunpack.c.l.b16 %v102
  %v790 = vunpack.c.l.b16 %v103
  %v791 = vunpack.c.l.b16 %v104
  %v792 = vunpack.c.l.b16 %v105
  %v793 = vunpack.c.l.b16 %v106
  %v794 = vunpack.c.l.b16 %v107
  %v795 = vunpack.c.l.b16 %v108
  %v796 = vunpack.c.l.b16 %v109
  %v797 = vunpack.c.l.b16 %v110
  %v798 = vunpack.c.l.b16 %v111
  %v799 = vunpack.c.l.b16 %v112
  %v800 = vunpack.c.l.b16 %v113
  %v801 = vunpack.c.l.b16 %v114
  %v802 = vunpack.c.l.b16 %v115
  %v803 = vunpack.c.l.b16 %v116
  %v804 = vunpack.c.l.b16 %v117
  %v805 = vunpack.c.l.b16 %v118
  %v806 = vunpack.c.l.b16 %v119
  %v807 = vunpack.c.l.b16 %v120
  %v808 = vunpack.c.l.b16 %v121
  %v809 = vunpack.c.l.b16 %v122
  %v810 = vunpack.c.l.b16 %v123
  %v811 = vunpack.c.l.b16 %v124
  %v812 = vunpack.c.l.b16 %v125
  %v813 = vunpack.c.l.b16 %v126
  %v814 = vunpack.c.l.b16 %v127
  %v815 = vunpack.c.l.b16 %v128
  %v816 = vunpack.c.l.b16 %v129
  %v817 = vunpack.c.l.b16 %v130
  %v818 = vunpack.c.l.b16 %v131
  %v819 = vunpack.c.l.b16 %v132
  %v820 = vunpack.c.l.b16 %v133
  %v821 = vunpack.c.l.b16 %v134
  %v822 = vunpack.c.l.b16 %v135
  %v823 = vunpack.c.l.b16 %v136
  %v824 = vunpack.c.l.b16 %v137
  %v825 = vunpack.c.l.b16 %v138
  %v826 = vunpack.c.l.b16 %v139
  %v827 = vunpack.c.l.b16 %v140
  %v828 = vunpack.c.l.b16 %v141
  %v829 = vunpack.c.l.b16 %v142
  %v830 = vunpack.c.l.b16 %v143
  %v831 = vunpack.c.l.b16 %v144
  %v832 = vunpack.c.l.b16 %v145
  %v833 = vunpack.c.l.b16 %v146
  %v834 = vunpack.c.l.b16 %v147
  %v835 = vunpack.c.l.b16 %v148
  %v836 = vunpack.c.l.b16 %v149
  %v837 = vunpack.c.l.b16 %v150
  %v838 = vunpack.c.l.b16 %v151
  %v839 = vunpack.c.l.b16 %v152
  %v840 = vunpack.c.l.b16 %v153
  %v841 = vunpack.c.l.b16 %v154
  %v842 = vunpack.c.l.b16 %v155
  %v843 = vunpack.c.l.b16 %v156
  %v844 = vunpack.c.l.b16 %v157
  %v845 = vunpack.c.l.b16 %v158
  %v846 = vunpack.c.l.b16 %v159
  %v847 = vunpack.c.l.b16 %v160
  %v848 = vunpack.c.l.b16 %v161
  %v849 = vunpack.c.l.b16 %v162
  %v850 = vunpack.c.l.b16 %v163
  %v851 = vunpack.c.l.b16 %v164
  %v852 = vunpack.c.l.b16 %v165
  %v853 = vunpack.c.l.b16 %v166
  %v854 = vunpack.c.l.b16 %v167
  %v855 = vunpack.c.l.b16 %v168
  %v856 = vunpack.c.l.b16 %v169
  %v857 = vunpack.c.l.b16 %v170
  %v858 = vunpack.c.l.b16 %v171
  %v859 = vunpack.c.l.b16 %v172
  %v860 = vunpack.c.l.b16 %v173
  %v861 = vunpack.c.l.b16 %v174
  %v862 = vunpack.c.l.b16 %v175
  %v863 = vunpack.c.l.b16 %v176
  %v864 = vunpack.c.l.b16 %v177
  %v865 = vunpack.c.l.b16 %v178
  %v866 = vunpack.c.l.b16 %v179
  %v867 = vunpack.c.l.b16 %v180
  %v868 = vunpack.c.l.b16 %v181
  %v869 = vunpack.c.l.b16 %v182
  %v870 = vunpack.c.l.b16 %v183
  %v871 = vunpack.c.l.b16 %v184
  %v872 = vunpack.c.l.b16 %v185
  %v873 = vunpack.c.l.b16 %v186
  %v874 = vunpack.c.l.b16 %v187
  %v875 = vunpack.c.l.b16 %v188
  %v876 = vunpack.c.l.b16 %v189
  %v877 = vunpack.c.l.b16 %v190
  %v878 = vunpack.c.l.b16 %v191
  %v879 = vunpack.c.l.b16 %v192
  %v880 = vunpack.c.l.b16 %v193
  %v881 = vunpack.c.l.b16 %v194
  %v882 = vunpack.c.l.b16 %v195
  %v883 = vunpack.c.l.b16 %v196
  %v884 = vunpack.c.l.b16 %v197
  %v885 = vunpack.c.l.b16 %v198
  %v886 = vunpack.c.l.b16 %v199
  %v887 = vunpack.c.l.b16 %v200
  %v888 = vunpack.c.l.b16 %v201
  %v889 = vunpack.c.l.b16 %v202
  %v890 = vunpack.c.l.b16 %v203
  %v891 = vunpack.c.l.b16 %v204
  %v892 = vunpack.c.l.b16 %v205
  %v893 = vunpack.c.l.b16 %v206
  %v894 = vunpack.c.l.b16 %v207
  %v895 = vunpack.c.l.b16 %v208
  %v896 = vunpack.c.l.b16 %v209
  %v897 = vunpack.c.l.b16 %v210
  %v898 = vunpack.c.l.b16 %v211
  %v899 = vunpack.c.l.b16 %v212
  %v900 = vunpack.c.l.b16 %v213
  %v901 = vunpack.c.l.b16 %v214
  %v902 = vunpack.c.l.b16 %v215
  %v903 = vunpack.c.l.b16 %v216
  %v904 = vunpack.c.l.b16 %v217
  %v905 = vunpack.c.l.b16 %v218
  %v906 = vunpack.c.l.b16 %v219
  %v907 = vunpack.c.l.b16 %v220
  %v908 = vunpack.c.l.b16 %v221
  %v909 = vunpack.c.l.b16 %v222
  %v910 = vunpack.c.l.b16 %v223
  %v911 = vunpack.c.l.b16 %v224
  %v912 = vunpack.c.l.b16 %v225
  %v913 = vunpack.c.l.b16 %v226
  %v914 = vunpack.c.l.b16 %v227
  %v915 = vunpack.c.l.b16 %v228
  %v916 = vunpack.c.l.b16 %v229
  %v917 = vunpack.c.l.b16 %v230
  %v918 = vunpack.c.l.b16 %v231
  %v919 = vunpack.c.l.b16 %v232
  %v920 = vunpack.c.l.b16 %v233
  %v921 = vunpack.c.l.b16 %v234
  %v922 = vunpack.c.l.b16 %v235
  %v923 = vunpack.c.l.b16 %v236
  %v924 = vunpack.c.l.b16 %v237
  %v925 = vunpack.c.l.b16 %v238
  %v926 = vunpack.c.l.b16 %v239
  %v927 = vunpack.c.l.b16 %v240
  %v928 = vunpack.c.l.b16 %v241
  %v929 = vunpack.c.l.b16 %v242
  %v930 = vunpack.c.l.b16 %v243
  %v931 = vunpack.c.l.b16 %v244
  %v932 = vunpack.c.l.b16 %v245
  %v933 = vunpack.c.l.b16 %v246
  %v934 = vunpack.c.l.b16 %v247
  %v935 = vunpack.c.l.b16 %v248
  %v936 = vunpack.c.l.b16 %v249
  %v937 = vunpack.c.l.b16 %v250
  %v938 = vunpack.c.l.b16 %v251
  %v939 = vunpack.c.l.b16 %v252
  %v940 = vunpack.c.l.b16 %v253
  %v941 = vunpack.c.l.b16 %v254
  %v942 = vunpack.c.l.b16 %v255
  %v943 = vunpack.c.l.b16 %v256
  %v944 = vunpack.c.l.b16 %v257
  %v945 = vunpack.c.l.b16 %v258
  %v946 = vunpack.c.l.b16 %v259
  %v947 = vunpack.c.l.b16 %v260
  %v948 = vunpack.c.l.b16 %v261
  %v949 = vunpack.c.l.b16 %v262
  %v950 = vunpack.c.l.b16 %v263
  %v951 = vunpack.c.l.b16 %v264
  %v952 = vunpack.c.l.b16 %v265
  %v953 = vunpack.c.l.b16 %v266
  %v954 = vunpack.c.l.b16 %v267
  %v955 = vunpack.c.l.b16 %v268
  %v956 = vunpack.c.l.b16 %v269
  %v957 = vunpack.c.l.b16 %v270
  %v958 = vunpack.c.l.b16 %v271
  %v959 = vunpack.c.l.b16 %v272
  %v960 = vunpack.c.l.b16 %v273
  %v961 = vunpack.c.l.b16 %v274
  %v962 = vunpack.c.l.b16 %v275
  %v963 = vunpack.c.l.b16 %v276
  %v964 = vunpack.c.l.b16 %v277
  %v965 = vunpack.c.l.b16 %v278
  %v966 = vunpack.c.l.b16 %v279
  %v967 = vunpack.c.l.b16 %v280
  %v968 = vunpack.c.l.b16 %v281
  %v969 = vunpack.c.l.b16 %v282
  %v970 = vunpack.c.l.b16 %v283
  %v971 = vunpack.c.l.b16 %v284
  %v972 = vunpack.c.l.b16 %v285
  %v973 = vunpack.c.l.b16 %v286
  %v974 = vunpack.c.l.b16 %v287
  %v975 = vunpack.c.l.b16 %v288
  %v976 = vunpack.c.l.b16 %v289
  %v977 = vunpack.c.l.b16 %v290
  %v978 = vunpack.c.l.b16 %v291
  %v979 = vunpack.c.l.b16 %v292
  %v980 = vunpack.c.l.b16 %v293
  %v981 = vunpack.c.l.b16 %v294
  %v982 = vunpack.c.l.b16 %v295
  %v983 = vunpack.c.l.b16 %v296
  %v984 = vunpack.c.l.b16 %v297
  %v985 = vunpack.c.l.b16 %v298
  %v986 = vunpack.c.l.b16 %v299
  %v987 = vunpack.c.l.b16 %v300
  %v988 = vunpack.c.l.b16 %v301
  %v989 = vunpack.c.l.b16 %v302
  %v990 = vunpack.c.l.b16 %v303
  %v991 = vunpack.c.l.b16 %v304
  %v992 = vunpack.c.l.b16 %v305
  %v993 = vunpack.c.l.b16 %v306
  %v994 = vunpack.c.l.b16 %v307
  %v995 = vunpack.c.l.b16 %v308
  %v996 = vunpack.c.l.b16 %v309
  %v997 = vunpack.c.l.b16 %v310
  %v998 = vunpack.c.l.b16 %v311
  %v999 = vunpack.c.l.b16 %v312
  %v1000 = vunpack.c.l.b16 %v313
  %v1001 = vunpack.c.l.b16 %v314
  %v1002 = vunpack.c.l.b16 %v315
  %v1003 = vunpack.c.l.b16 %v316
  %v1004 = vunpack.c.l.b16 %v317
  %v1005 = vunpack.c.l.b16 %v318
  %v1006 = vunpack.c.l.b16 %v319
  %v1007 = vunpack.c.l.b16 %v320
  %v1008 = vunpack.c.l.b16 %v321
  %v1009 = vunpack.c.l.b16 %v322
  %v1010 = vunpack.c.l.b16 %v323
  %v1011 = vunpack.c.l.b16 %v324
  %v1012 = vunpack.c.l.b16 %v325
  %v1013 = vunpack.c.l.b16 %v326
  %v1014 = vunpack.c.l.b16 %v327
  %v1015 = vunpack.c.l.b16 %v328
  %v1016 = vunpack.c.l.b16 %v329
  %v1017 = vunpack.c.l.b16 %v330
  %v1018 = vunpack.c.l.b16 %v331
  %v1019 = vunpack.c.l.b16 %v332
  %v1020 = vunpack.c.l.b16 %v333
  %v1021 = vunpack.c.l.b16 %v334
  %v1022 = vunpack.c.l.b16 %v335
  %v1023 = vunpack.c.l.b16 %v336
  %v1024 = vunpack.c.l.b16 %v337
  %v1025 = vunpack.c.l.b16 %v338
  %v1026 = vunpack.c.l.b16 %v339
  %v1027 = vunpack.c.l.b16 %v340
  %v1028 = vunpack.c.l.b16 %v341
  %v1029 = vunpack.c.l.b16 %v342
  %v1030 = vunpack.c.l.b16 %v343
  %v1031 = vunpack.c.l.b16 %v344
  %v1032 = vunpack.c.l.b16 %v345
  %v1033 = vunpack.c.l.b16 %v346
  %v1034 = vunpack.c.l.b16 %v347
  %v1035 = vunpack.c.l.b16 %v348
  %v1036 = vunpack.c.l.b16 %v349
  %v1037 = vunpack.c.l.b16 %v350
  %v1038 = vunpack.c.l.b16 %v351
  %v1039 = vunpack.c.l.b16 %v352
  %v1040 = vunpack.c.l.b16 %v353
  %v1041 = vunpack.c.l.b16 %v354
  %v1042 = vunpack.c.l.b16 %v355
  %v1043 = vunpack.c.l.b16 %v356
  %v1044 = vunpack.c.l.b16 %v357
  %v1045 = vunpack.c.l.b16 %v358
  %v1046 = vunpack.c.l.b16 %v359
  %v1047 = vunpack.c.l.b16 %v360
  %v1048 = vunpack.c.l.b16 %v361
  %v1049 = vunpack.c.l.b16 %v362
  %v1050 = vunpack.c.l.b16 %v363
  %v1051 = vunpack.c.l.b16 %v364
  %v1052 = vunpack.c.l.b16 %v365
  %v1053 = vunpack.c.l.b16 %v366
  %v1054 = vunpack.c.l.b16 %v367
  %v1055 = vunpack.c.l.b16 %v368
  %v1056 = vunpack.c.l.b16 %v369
  %v1057 = vunpack.c.l.b16 %v370
  %v1058 = vunpack.c.l.b16 %v371
  %v1059 = vunpack.c.l.b16 %v372
  %v1060 = vunpack.c.l.b16 %v373
  %v1061 = vunpack.c.l.b16 %v374
  %v1062 = vunpack.c.l.b16 %v375
  %v1063 = vunpack.c.l.b16 %v376
  %v1064 = vunpack.c.l.b16 %v377
  %v1065 = vunpack.c.l.b16 %v378
  %v1066 = vunpack.c.l.b16 %v379
  %v1067 = vunpack.c.l.b16 %v380
  %v1068 = vunpack.c.l.b16 %v381
  %v1069 = vunpack.c.l.b16 %v382
  %v1070 = vpack.c.b16 %v777, %v776
  %v1071 = vpack.c.b16 %v779, %v778
  %v1072 = vpack.c.b16 %v781, %v780
  %v1073 = vpack.c.b16 %v783, %v782
  %v1074 = vpack.c.b16 %v785, %v784
  %v1075 = vpack.c.b16 %v787, %v786
  %v1076 = vpack.c.b16 %v789, %v788
  %v1077 = vpack.c.b16 %v791, %v790
  %v1078 = vpack.c.b16 %v793, %v792
  %v1079 = vpack.c.b16 %v795, %v794
  %v1080 = vpack.c.b16 %v797, %v796
  %v1081 = vpack.c.b16 %v799, %v798
  %v1082 = vpack.c.b16 %v801, %v800
  %v1083 = vpack.c.b16 %v803, %v802
  %v1084 = vpack.c.b16 %v805, %v804
  %v1085 = vpack.c.b16 %v807, %v806
  %v1086 = vpack.c.b16 %v809, %v808
  %v1087 = vpack.c.b16 %v811, %v810
  %v1088 = vpack.c.b16 %v813, %v812
  %v1089 = vpack.c.b16 %v815, %v814
  %v1090 = vpack.c.b16 %v817, %v816
  %v1091 = vpack.c.b16 %v819, %v818
  %v1092 = vpack.c.b16 %v821, %v820
  %v1093 = vpack.c.b16 %v823, %v822
  %v1094 = vpack.c.b16 %v825, %v824
  %v1095 = vpack.c.b16 %v827, %v826
  %v1096 = vpack.c.b16 %v829, %v828
  %v1097 = vpack.c.b16 %v831, %v830
  %v1098 = vpack.c.b16 %v833, %v832
  %v1099 = vpack.c.b16 %v835, %v834
  %v1100 = vpack.c.b16 %v837, %v836
  %v1101 = vpack.c.b16 %v839, %v838
  %v1102 = vpack.c.b16 %v841, %v840
  %v1103 = vpack.c.b16 %v843, %v842
  %v1104 = vpack.c.b16 %v845, %v844
  %v1105 = vpack.c.b16 %v847, %v846
  %v1106 = vpack.c.b16 %v849, %v848
  %v1107 = vpack.c.b16 %v851, %v850
  %v1108 = vpack.c.b16 %v853, %v852
  %v1109 = vpack.c.b16 %v855, %v854
  %v1110 = vpack.c.b16 %v857, %v856
  %v1111 = vpack.c.b16 %v859, %v858
  %v1112 = vpack.c.b16 %v861, %v860
  %v1113 = vpack.c.b16 %v863, %v862
  %v1114 = vpack.c.b16 %v865, %v864
  %v1115 = vpack.c.b16 %v867, %v866
  %v1116 = vpack.c.b16 %v869, %v868
  %v1117 = vpack.c.b16 %v871, %v870
  %v1118 = vpack.c.b16 %v873, %v872
  %v1119 = vpack.c.b16 %v875, %v874
  %v1120 = vpack.c.b16 %v877, %v876
  %v1121 = vpack.c.b16 %v879, %v878
  %v1122 = vpack.c.b16 %v881, %v880
  %v1123 = vpack.c.b16 %v883, %v882
  %v1124 = vpack.c.b16 %v885, %v884
  %v1125 = vpack.c.b16 %v887, %v886
  %v1126 = vpack.c.b16 %v889, %v888
  %v1127 = vpack.c.b16 %v891, %v890
  %v1128 = vpack.c.b16 %v893, %v892
  %v1129 = vpack.c.b16 %v895, %v894
  %v1130 = vpack.c.b16 %v897, %v896
  %v1131 = vpack.c.b16 %v899, %v898
  %v1132 = vpack.c.b16 %v901, %v900
  %v1133 = vpack.c.b16 %v903, %v902
  %v1134 = vpack.c.b16 %v905, %v904
  %v1135 = vpack.c.b16 %v907, %v906
  %v1136 = vpack.c.b16 %v909, %v908
  %v1137 = vpack.c.b16 %v911, %v910
  %v1138 = vpack.c.b16 %v913, %v912
  %v1139 = vpack.c.b16 %v915, %v914
  %v1140 = vpack.c.b16 %v917, %v916
  %v1141 = vpack.c.b16 %v919, %v918
  %v1142 = vpack.c.b16 %v921, %v920
  %v1143 = vpack.c.b16 %v923, %v922
  %v1144 = vpack.c.b16 %v925, %v924
  %v1145 = vpack.c.b16 %v927, %v926
  %v1146 = vpack.c.b16 %v929, %v928
  %v1147 = vpack.c.b16 %v931, %v930
  %v1148 = vpack.c.b16 %v933, %v932
  %v1149 = vpack.c.b16 %v935, %v934
  %v1150 = vpack.c.b16 %v937, %v936
  %v1151 = vpack.c.b16 %v939, %v938
  %v1152 = vpack.c.b16 %v941, %v940
  %v1153 = vpack.c.b16 %v943, %v942
  %v1154 = vpack.c.b16 %v945, %v944
  %v1155 = vpack.c.b16 %v947, %v946
  %v1156 = vpack.c.b16 %v949, %v948
  %v1157 = vpack.c.b16 %v951, %v950
  %v1158 = vpack.c.b16 %v953, %v952
  %v1159 = vpack.c.b16 %v955, %v954
  %v1160 = vpack.c.b16 %v957, %v956
  %v1161 = vpack.c.b16 %v959, %v958
  %v1162 = vpack.c.b16 %v961, %v960
  %v1163 = vpack.c.b16 %v963, %v962
  %v1164 = vpack.c.b16 %v965, %v964
  %v1165 = vpack.c.b16 %v967, %v966
  %v1166 = vpack.c.b16 %v969, %v968
  %v1167 = vpack.c.b16 %v971, %v970
  %v1168 = vpack.c.b16 %v973, %v972
  %v1169 = vpack.c.b16 %v975, %v974
  %v1170 = vpack.c.b16 %v977, %v976
  %v1171 = vpack.c.b16 %v979, %v978
  %v1172 = vpack.c.b16 %v981, %v980
  %v1173 = vpack.c.b16 %v983, %v982
  %v1174 = vpack.c.b16 %v985, %v984
  %v1175 = vpack.c.b16 %v987, %v986
  %v1176 = vpack.c.b16 %v989, %v988
  %v1177 = vpack.c.b16 %v991, %v990
  %v1178 = vpack.c.b16 %v993, %v992
  %v1179 = vpack.c.b16 %v995, %v994
  %v1180 = vpack.c.b16 %v997, %v996
  %v1181 = vpack.c.b16 %v999, %v998
  %v1182 = vpack.c.b16 %v1001, %v1000
  %v1183 = vpack.c.b16 %v1003, %v1002
  %v1184 = vpack.c.b16 %v1005, %v1004
  %v1185 = vpack.c.b16 %v1007, %v1006
  %v1186 = vpack.c.b16 %v1009, %v1008
  %v1187 = vpack.c.b16 %v1011, %v1010
  %v1188 = vpack.c.b16 %v1013, %v1012
  %v1189 = vpack.c.b16 %v1015, %v1014
  %v1190 = vpack.c.b16 %v1017, %v1016
  %v1191 = vpack.c.b16 %v1019, %v1018
  %v1192 = vpack.c.b16 %v1021, %v1020
  %v1193 = vpack.c.b16 %v1023, %v1022
  %v1194 = vpack.c.b16 %v1025, %v1024
  %v1195 = vpack.c.b16 %v1027, %v1026
  %v1196 = vpack.c.b16 %v1029, %v1028
  %v1197 = vpack.c.b16 %v1031, %v1030
  %v1198 = vpack.c.b16 %v1033, %v1032
  %v1199 = vpack.c.b16 %v1035, %v1034
  %v1200 = vpack.c.b16 %v1037, %v1036
  %v1201 = vpack.c.b16 %v1039, %v1038
  %v1202 = vpack.c.b16 %v1041, %v1040
  %v1203 = vpack.c.b16 %v1043, %v1042
  %v1204 = vpack.c.b16 %v1045, %v1044
  %v1205 = vpack.c.b16 %v1047, %v1046
  %v1206 = vpack.c.b16 %v1049, %v1048
  %v1207 = vpack.c.b16 %v1051, %v1050
  %v1208 = vpack.c.b16 %v1053, %v1052
  %v1209 = vpack.c.b16 %v1055, %v1054
  %v1210 = vpack.c.b16 %v1057, %v1056
  %v1211 = vpack.c.b16 %v1059, %v1058
  %v1212 = vpack.c.b16 %v1061, %v1060
  %v1213 = vpack.c.b16 %v1063, %v1062
  %v1214 = vpack.c.b16 %v1065, %v1064
  %v1215 = vpack.c.b16 %v1067, %v1066
  %v1216 = vpack.c.b16 %v1069, %v1068
  %vm1364 = vcmask 392192
  %v1366 = vsel %vm1364, %v463, 0
  %1368 = vmatpush.bf16.msra.mxu0 %v1077
  %1369 = vmatpush.bf16.msra.mxu0 %v1076
  %1370 = vmatpush.bf16.msra.mxu0 %v1075
  %1371 = vmatpush.bf16.msra.mxu0 %v1074
  %1372 = vmatpush.bf16.msra.mxu0 %v1073
  %1373 = vmatpush.bf16.msra.mxu0 %v1072
  %1374 = vmatpush.bf16.msra.mxu0 %v1071
  %1375 = vmatpush.bf16.msra.mxu0 %v1070
  %1376 = vmatmul.bf16.gmra.mxu0 %v445
  %v1377 = vpop.f32.mrf.mxu0
  %v1378 = vadd.f32 %v385, %v1377
  %v1379 = vpop.f32.mrf.mxu0
  %v1380 = vadd.f32 %v385, %v1379
  %1381 = vdwg.mxu0
  %1382 = vmatpush.bf16.msra.mxu0 %v1085
  %1383 = vmatpush.bf16.msra.mxu0 %v1084
  %1384 = vmatpush.bf16.msra.mxu0 %v1083
  %1385 = vmatpush.bf16.msra.mxu0 %v1082
  %1386 = vmatpush.bf16.msra.mxu0 %v1081
  %1387 = vmatpush.bf16.msra.mxu0 %v1080
  %1388 = vmatpush.bf16.msra.mxu0 %v1079
  %1389 = vmatpush.bf16.msra.mxu0 %v1078
  %1390 = vmatmul.bf16.gmra.mxu0 %v446
  %v1391 = vpop.f32.mrf.mxu0
  %v1392 = vadd.f32 %v1378, %v1391
  %v1393 = vpop.f32.mrf.mxu0
  %v1394 = vadd.f32 %v1380, %v1393
  %1395 = vdwg.mxu0
  %1396 = vmatpush.bf16.msra.mxu0 %v1093
  %1397 = vmatpush.bf16.msra.mxu0 %v1092
  %1398 = vmatpush.bf16.msra.mxu0 %v1091
  %1399 = vmatpush.bf16.msra.mxu0 %v1090
  %1400 = vmatpush.bf16.msra.mxu0 %v1089
  %1401 = vmatpush.bf16.msra.mxu0 %v1088
  %1402 = vmatpush.bf16.msra.mxu0 %v1087
  %1403 = vmatpush.bf16.msra.mxu0 %v1086
  %1404 = vmatmul.bf16.gmra.mxu0 %v447
  %v1405 = vpop.f32.mrf.mxu0
  %v1406 = vadd.f32 %v1392, %v1405
  %v1407 = vpop.f32.mrf.mxu0
  %v1408 = vadd.f32 %v1394, %v1407
  %1409 = vdwg.mxu0
  %1410 = vmatpush.bf16.msra.mxu0 %v1101
  %1411 = vmatpush.bf16.msra.mxu0 %v1100
  %1412 = vmatpush.bf16.msra.mxu0 %v1099
  %1413 = vmatpush.bf16.msra.mxu0 %v1098
  %1414 = vmatpush.bf16.msra.mxu0 %v1097
  %1415 = vmatpush.bf16.msra.mxu0 %v1096
  %1416 = vmatpush.bf16.msra.mxu0 %v1095
  %1417 = vmatpush.bf16.msra.mxu0 %v1094
  %1418 = vmatmul.bf16.gmra.mxu0 %v448
  %v1419 = vpop.f32.mrf.mxu0
  %v1420 = vadd.f32 %v1406, %v1419
  %v1421 = vpop.f32.mrf.mxu0
  %v1422 = vadd.f32 %v1408, %v1421
  %1423 = vdwg.mxu0
  %1424 = vmatpush.bf16.msra.mxu0 %v1109
  %1425 = vmatpush.bf16.msra.mxu0 %v1108
  %1426 = vmatpush.bf16.msra.mxu0 %v1107
  %1427 = vmatpush.bf16.msra.mxu0 %v1106
  %1428 = vmatpush.bf16.msra.mxu0 %v1105
  %1429 = vmatpush.bf16.msra.mxu0 %v1104
  %1430 = vmatpush.bf16.msra.mxu0 %v1103
  %1431 = vmatpush.bf16.msra.mxu0 %v1102
  %1432 = vmatmul.bf16.gmra.mxu0 %v449
  %v1433 = vpop.f32.mrf.mxu0
  %v1434 = vadd.f32 %v1420, %v1433
  %v1435 = vpop.f32.mrf.mxu0
  %v1436 = vadd.f32 %v1422, %v1435
  %1437 = vdwg.mxu0
  %1438 = vmatpush.bf16.msra.mxu0 %v1117
  %1439 = vmatpush.bf16.msra.mxu0 %v1116
  %1440 = vmatpush.bf16.msra.mxu0 %v1115
  %1441 = vmatpush.bf16.msra.mxu0 %v1114
  %1442 = vmatpush.bf16.msra.mxu0 %v1113
  %1443 = vmatpush.bf16.msra.mxu0 %v1112
  %1444 = vmatpush.bf16.msra.mxu0 %v1111
  %1445 = vmatpush.bf16.msra.mxu0 %v1110
  %1446 = vmatmul.bf16.gmra.mxu0 %v450
  %v1447 = vpop.f32.mrf.mxu0
  %v1448 = vadd.f32 %v1434, %v1447
  %v1449 = vpop.f32.mrf.mxu0
  %v1450 = vadd.f32 %v1436, %v1449
  %1451 = vdwg.mxu0
  %1452 = vmatpush.bf16.msra.mxu0 %v1125
  %1453 = vmatpush.bf16.msra.mxu0 %v1124
  %1454 = vmatpush.bf16.msra.mxu0 %v1123
  %1455 = vmatpush.bf16.msra.mxu0 %v1122
  %1456 = vmatpush.bf16.msra.mxu0 %v1121
  %1457 = vmatpush.bf16.msra.mxu0 %v1120
  %1458 = vmatpush.bf16.msra.mxu0 %v1119
  %1459 = vmatpush.bf16.msra.mxu0 %v1118
  %1460 = vmatmul.bf16.gmra.mxu0 %v451
  %v1461 = vpop.f32.mrf.mxu0
  %v1462 = vadd.f32 %v1448, %v1461
  %v1463 = vpop.f32.mrf.mxu0
  %v1464 = vadd.f32 %v1450, %v1463
  %1465 = vdwg.mxu0
  %1466 = vmatpush.bf16.msra.mxu0 %v1133
  %1467 = vmatpush.bf16.msra.mxu0 %v1132
  %1468 = vmatpush.bf16.msra.mxu0 %v1131
  %1469 = vmatpush.bf16.msra.mxu0 %v1130
  %1470 = vmatpush.bf16.msra.mxu0 %v1129
  %1471 = vmatpush.bf16.msra.mxu0 %v1128
  %1472 = vmatpush.bf16.msra.mxu0 %v1127
  %1473 = vmatpush.bf16.msra.mxu0 %v1126
  %1474 = vmatmul.bf16.gmra.mxu0 %v452
  %v1475 = vpop.f32.mrf.mxu0
  %v1476 = vadd.f32 %v1462, %v1475
  %v1477 = vpop.f32.mrf.mxu0
  %v1478 = vadd.f32 %v1464, %v1477
  %1479 = vdwg.mxu0
  %1480 = vmatpush.bf16.msra.mxu0 %v1141
  %1481 = vmatpush.bf16.msra.mxu0 %v1140
  %1482 = vmatpush.bf16.msra.mxu0 %v1139
  %1483 = vmatpush.bf16.msra.mxu0 %v1138
  %1484 = vmatpush.bf16.msra.mxu0 %v1137
  %1485 = vmatpush.bf16.msra.mxu0 %v1136
  %1486 = vmatpush.bf16.msra.mxu0 %v1135
  %1487 = vmatpush.bf16.msra.mxu0 %v1134
  %1488 = vmatmul.bf16.gmra.mxu0 %v453
  %v1489 = vpop.f32.mrf.mxu0
  %v1490 = vadd.f32 %v1476, %v1489
  %v1491 = vpop.f32.mrf.mxu0
  %v1492 = vadd.f32 %v1478, %v1491
  %1493 = vdwg.mxu0
  %1494 = vmatpush.bf16.msra.mxu0 %v1149
  %1495 = vmatpush.bf16.msra.mxu0 %v1148
  %1496 = vmatpush.bf16.msra.mxu0 %v1147
  %1497 = vmatpush.bf16.msra.mxu0 %v1146
  %1498 = vmatpush.bf16.msra.mxu0 %v1145
  %1499 = vmatpush.bf16.msra.mxu0 %v1144
  %1500 = vmatpush.bf16.msra.mxu0 %v1143
  %1501 = vmatpush.bf16.msra.mxu0 %v1142
  %1502 = vmatmul.bf16.gmra.mxu0 %v454
  %v1503 = vpop.f32.mrf.mxu0
  %v1504 = vadd.f32 %v1490, %v1503
  %v1505 = vpop.f32.mrf.mxu0
  %v1506 = vadd.f32 %v1492, %v1505
  %1507 = vdwg.mxu0
  %1508 = vmatpush.bf16.msra.mxu0 %v1157
  %1509 = vmatpush.bf16.msra.mxu0 %v1156
  %1510 = vmatpush.bf16.msra.mxu0 %v1155
  %1511 = vmatpush.bf16.msra.mxu0 %v1154
  %1512 = vmatpush.bf16.msra.mxu0 %v1153
  %1513 = vmatpush.bf16.msra.mxu0 %v1152
  %1514 = vmatpush.bf16.msra.mxu0 %v1151
  %1515 = vmatpush.bf16.msra.mxu0 %v1150
  %1516 = vmatmul.bf16.gmra.mxu0 %v455
  %v1517 = vpop.f32.mrf.mxu0
  %v1518 = vadd.f32 %v1504, %v1517
  %v1519 = vpop.f32.mrf.mxu0
  %v1520 = vadd.f32 %v1506, %v1519
  %1521 = vdwg.mxu0
  %1522 = vmatpush.bf16.msra.mxu0 %v1165
  %1523 = vmatpush.bf16.msra.mxu0 %v1164
  %1524 = vmatpush.bf16.msra.mxu0 %v1163
  %1525 = vmatpush.bf16.msra.mxu0 %v1162
  %1526 = vmatpush.bf16.msra.mxu0 %v1161
  %1527 = vmatpush.bf16.msra.mxu0 %v1160
  %1528 = vmatpush.bf16.msra.mxu0 %v1159
  %1529 = vmatpush.bf16.msra.mxu0 %v1158
  %1530 = vmatmul.bf16.gmra.mxu0 %v456
  %v1531 = vpop.f32.mrf.mxu0
  %v1532 = vadd.f32 %v1518, %v1531
  %v1533 = vpop.f32.mrf.mxu0
  %v1534 = vadd.f32 %v1520, %v1533
  %1535 = vdwg.mxu0
  %1536 = vmatpush.bf16.msra.mxu0 %v1173
  %1537 = vmatpush.bf16.msra.mxu0 %v1172
  %1538 = vmatpush.bf16.msra.mxu0 %v1171
  %1539 = vmatpush.bf16.msra.mxu0 %v1170
  %1540 = vmatpush.bf16.msra.mxu0 %v1169
  %1541 = vmatpush.bf16.msra.mxu0 %v1168
  %1542 = vmatpush.bf16.msra.mxu0 %v1167
  %1543 = vmatpush.bf16.msra.mxu0 %v1166
  %1544 = vmatmul.bf16.gmra.mxu0 %v457
  %v1545 = vpop.f32.mrf.mxu0
  %v1546 = vadd.f32 %v1532, %v1545
  %v1547 = vpop.f32.mrf.mxu0
  %v1548 = vadd.f32 %v1534, %v1547
  %1549 = vdwg.mxu0
  %1550 = vmatpush.bf16.msra.mxu0 %v1181
  %1551 = vmatpush.bf16.msra.mxu0 %v1180
  %1552 = vmatpush.bf16.msra.mxu0 %v1179
  %1553 = vmatpush.bf16.msra.mxu0 %v1178
  %1554 = vmatpush.bf16.msra.mxu0 %v1177
  %1555 = vmatpush.bf16.msra.mxu0 %v1176
  %1556 = vmatpush.bf16.msra.mxu0 %v1175
  %1557 = vmatpush.bf16.msra.mxu0 %v1174
  %1558 = vmatmul.bf16.gmra.mxu0 %v458
  %v1559 = vpop.f32.mrf.mxu0
  %v1560 = vadd.f32 %v1546, %v1559
  %v1561 = vpop.f32.mrf.mxu0
  %v1562 = vadd.f32 %v1548, %v1561
  %1563 = vdwg.mxu0
  %1564 = vmatpush.bf16.msra.mxu0 %v1189
  %1565 = vmatpush.bf16.msra.mxu0 %v1188
  %1566 = vmatpush.bf16.msra.mxu0 %v1187
  %1567 = vmatpush.bf16.msra.mxu0 %v1186
  %1568 = vmatpush.bf16.msra.mxu0 %v1185
  %1569 = vmatpush.bf16.msra.mxu0 %v1184
  %1570 = vmatpush.bf16.msra.mxu0 %v1183
  %1571 = vmatpush.bf16.msra.mxu0 %v1182
  %1572 = vmatmul.bf16.gmra.mxu0 %v459
  %v1573 = vpop.f32.mrf.mxu0
  %v1574 = vadd.f32 %v1560, %v1573
  %v1575 = vpop.f32.mrf.mxu0
  %v1576 = vadd.f32 %v1562, %v1575
  %1577 = vdwg.mxu0
  %1578 = vmatpush.bf16.msra.mxu0 %v1197
  %1579 = vmatpush.bf16.msra.mxu0 %v1196
  %1580 = vmatpush.bf16.msra.mxu0 %v1195
  %1581 = vmatpush.bf16.msra.mxu0 %v1194
  %1582 = vmatpush.bf16.msra.mxu0 %v1193
  %1583 = vmatpush.bf16.msra.mxu0 %v1192
  %1584 = vmatpush.bf16.msra.mxu0 %v1191
  %1585 = vmatpush.bf16.msra.mxu0 %v1190
  %1586 = vmatmul.bf16.gmra.mxu0 %v460
  %v1587 = vpop.f32.mrf.mxu0
  %v1588 = vadd.f32 %v1574, %v1587
  %v1589 = vpop.f32.mrf.mxu0
  %v1590 = vadd.f32 %v1576, %v1589
  %1591 = vdwg.mxu0
  %1592 = vmatpush.bf16.msra.mxu0 %v1205
  %1593 = vmatpush.bf16.msra.mxu0 %v1204
  %1594 = vmatpush.bf16.msra.mxu0 %v1203
  %1595 = vmatpush.bf16.msra.mxu0 %v1202
  %1596 = vmatpush.bf16.msra.mxu0 %v1201
  %1597 = vmatpush.bf16.msra.mxu0 %v1200
  %1598 = vmatpush.bf16.msra.mxu0 %v1199
  %1599 = vmatpush.bf16.msra.mxu0 %v1198
  %1600 = vmatmul.bf16.gmra.mxu0 %v461
  %v1601 = vpop.f32.mrf.mxu0
  %v1602 = vadd.f32 %v1588, %v1601
  %v1603 = vpop.f32.mrf.mxu0
  %v1604 = vadd.f32 %v1590, %v1603
  %1605 = vdwg.mxu0
  %1606 = vmatpush.bf16.msra.mxu0 %v1213
  %1607 = vmatpush.bf16.msra.mxu0 %v1212
  %1608 = vmatpush.bf16.msra.mxu0 %v1211
  %1609 = vmatpush.bf16.msra.mxu0 %v1210
  %1610 = vmatpush.bf16.msra.mxu0 %v1209
  %1611 = vmatpush.bf16.msra.mxu0 %v1208
  %1612 = vmatpush.bf16.msra.mxu0 %v1207
  %1613 = vmatpush.bf16.msra.mxu0 %v1206
  %1614 = vmatmul.bf16.gmra.mxu0 %v462
  %v1615 = vpop.f32.mrf.mxu0
  %v1616 = vadd.f32 %v1602, %v1615
  %v1617 = vpop.f32.mrf.mxu0
  %v1618 = vadd.f32 %v1604, %v1617
  %1619 = vdwg.mxu0
  %1620 = vmatpush.bf16.msra.mxu0 0
  %1621 = vmatpush.bf16.msra.mxu0 0
  %1622 = vmatpush.bf16.msra.mxu0 0
  %1623 = vmatpush.bf16.msra.mxu0 0
  %1624 = vmatpush.bf16.msra.mxu0 0
  %1625 = vmatpush.bf16.msra.mxu0 %v1216
  %1626 = vmatpush.bf16.msra.mxu0 %v1215
  %1627 = vmatpush.bf16.msra.mxu0 %v1214
  %1628 = vmatmul.bf16.gmra.mxu0 %v1366
  %v1629 = vpop.f32.mrf.mxu0
  %v1630 = vadd.f32 %v1616, %v1629
  %v1631 = vpop.f32.mrf.mxu0
  %v1632 = vadd.f32 %v1618, %v1631
  %1633 = vdwg.mxu0
  %v1634 = vmax.f32 %v1630, 0.0
  %v1635 = vmax.f32 %v1632, 0.0
  %v1636 = vld [vmem:[%s2] sm:$0xf]
  %v1637 = vld [vmem:[%s2 + $0x4] sm:$0xf]
  %v1638 = vld [vmem:[%s2 + $0x8] sm:$0xf]
  %v1639 = vld [vmem:[%s2 + $0xc] sm:$0xf]
  %v1640 = vld [vmem:[%s2 + $0x10] sm:$0xf]
  %v1641 = vld [vmem:[%s2 + $0x14] sm:$0xf]
  %v1642 = vld [vmem:[%s2 + $0x18] sm:$0xf]
  %v1643 = vld [vmem:[%s2 + $0x1c] sm:$0xf]
  %v1644 = vld [vmem:[%s2 + $0x20] sm:$0xf]
  %v1645 = vld [vmem:[%s2 + $0x24] sm:$0xf]
  %v1646 = vld [vmem:[%s2 + $0x28] sm:$0xf]
  %v1647 = vld [vmem:[%s2 + $0x2c] sm:$0xf]
  %v1648 = vld [vmem:[%s2 + $0x30] sm:$0xf]
  %v1649 = vld [vmem:[%s2 + $0x34] sm:$0xf]
  %v1650 = vld [vmem:[%s2 + $0x38] sm:$0xf]
  %v1651 = vld [vmem:[%s2 + $0x3c] sm:$0xf]
  %v1652 = vld [vmem:[%s12] sm:$0x1]
  %v1653 = vpack.c.bf16 %v1635, %v1634
  %v1655 = vperm.slane %v1652, 0
  %v1673 = vunpack.c.l.b16 %v1636
  %v1674 = vunpack.c.l.b16 %v1637
  %v1675 = vunpack.c.l.b16 %v1638
  %v1676 = vunpack.c.l.b16 %v1639
  %v1677 = vunpack.c.l.b16 %v1640
  %v1678 = vunpack.c.l.b16 %v1641
  %v1679 = vunpack.c.l.b16 %v1642
  %v1680 = vunpack.c.l.b16 %v1643
  %v1681 = vunpack.c.l.b16 %v1644
  %v1682 = vunpack.c.l.b16 %v1645
  %v1683 = vunpack.c.l.b16 %v1646
  %v1684 = vunpack.c.l.b16 %v1647
  %v1685 = vunpack.c.l.b16 %v1648
  %v1686 = vunpack.c.l.b16 %v1649
  %v1687 = vunpack.c.l.b16 %v1650
  %v1688 = vunpack.c.l.b16 %v1651
  %v1689 = vpack.c.b16 %v1674, %v1673
  %v1690 = vpack.c.b16 %v1676, %v1675
  %v1691 = vpack.c.b16 %v1678, %v1677
  %v1692 = vpack.c.b16 %v1680, %v1679
  %v1693 = vpack.c.b16 %v1682, %v1681
  %v1694 = vpack.c.b16 %v1684, %v1683
  %v1695 = vpack.c.b16 %v1686, %v1685
  %v1696 = vpack.c.b16 %v1688, %v1687
  %1705 = vmatpush.bf16.msra.mxu0 %v1696
  %1706 = vmatpush.bf16.msra.mxu0 %v1695
  %1707 = vmatpush.bf16.msra.mxu0 %v1694
  %1708 = vmatpush.bf16.msra.mxu0 %v1693
  %1709 = vmatpush.bf16.msra.mxu0 %v1692
  %1710 = vmatpush.bf16.msra.mxu0 %v1691
  %1711 = vmatpush.bf16.msra.mxu0 %v1690
  %1712 = vmatpush.bf16.msra.mxu0 %v1689
  %1713 = vmatmul.bf16.gmra.mxu0 %v1653
  %v1714 = vpop.f32.mrf.mxu0
  %v1715 = vadd.f32 %v1655, %v1714
  %v1716 = vpop.f32.mrf.mxu0
  %v1717 = vadd.f32 %v1655, %v1716
  %1718 = vdwg.mxu0
  %v1719 = vmax.f32 %v1715, 0.0
  %v1720 = vmax.f32 %v1717, 0.0
  %v1721 = vld [vmem:[%s3] sm:$0xf]
  %v1722 = vld [vmem:[%s3 + $0x4] sm:$0xf]
  %v1723 = vld [vmem:[%s3 + $0x8] sm:$0xf]
  %v1724 = vld [vmem:[%s3 + $0xc] sm:$0xf]
  %v1725 = vld [vmem:[%s3 + $0x10] sm:$0xf]
  %v1726 = vld [vmem:[%s3 + $0x14] sm:$0xf]
  %v1727 = vld [vmem:[%s3 + $0x18] sm:$0xf]
  %v1728 = vld [vmem:[%s3 + $0x1c] sm:$0xf]
  %v1729 = vld [vmem:[%s13] sm:$0x1]
  %v1730 = vpack.c.bf16 %v1720, %v1719
  %v1732 = vperm.slane %v1729, 0
  %v1742 = vunpack.c.l.b16 %v1721
  %v1743 = vunpack.c.l.b16 %v1722
  %v1744 = vunpack.c.l.b16 %v1723
  %v1745 = vunpack.c.l.b16 %v1724
  %v1746 = vunpack.c.l.b16 %v1725
  %v1747 = vunpack.c.l.b16 %v1726
  %v1748 = vunpack.c.l.b16 %v1727
  %v1749 = vunpack.c.l.b16 %v1728
  %v1750 = vpack.c.b16 %v1743, %v1742
  %v1751 = vpack.c.b16 %v1745, %v1744
  %v1752 = vpack.c.b16 %v1747, %v1746
  %v1753 = vpack.c.b16 %v1749, %v1748
  %vm1758 = vcmask 523264
  %v1760 = vsel %vm1758, %v1730, 0
  %1762 = vmatpush.bf16.msra.mxu0 0
  %1763 = vmatpush.bf16.msra.mxu0 0
  %1764 = vmatpush.bf16.msra.mxu0 0
  %1765 = vmatpush.bf16.msra.mxu0 0
  %1766 = vmatpush.bf16.msra.mxu0 %v1753
  %1767 = vmatpush.bf16.msra.mxu0 %v1752
  %1768 = vmatpush.bf16.msra.mxu0 %v1751
  %1769 = vmatpush.bf16.msra.mxu0 %v1750
  %1770 = vmatmul.bf16.gmra.mxu0 %v1760
  %v1771 = vpop.f32.mrf.mxu0
  %v1772 = vadd.f32 %v1732, %v1771
  %v1773 = vpop.f32.mrf.mxu0
  %v1774 = vadd.f32 %v1732, %v1773
  %1775 = vdwg.mxu0
  %v1776 = vmax.f32 %v1772, 0.0
  %v1777 = vmax.f32 %v1774, 0.0
  %v1778 = vld [vmem:[%s4] sm:$0xf]
  %v1779 = vld [vmem:[%s4 + $0x4] sm:$0xf]
  %v1780 = vld [vmem:[%s4 + $0x8] sm:$0xf]
  %v1781 = vld [vmem:[%s4 + $0xc] sm:$0xf]
  %v1782 = vld [vmem:[%s4 + $0x10] sm:$0x3]
  %v1783 = vld [vmem:[%s14] sm:$0x1]
  %v1784 = vpack.c.bf16 %v1777, %v1776
  %v1786 = vperm.slane %v1783, 0
  %v1793 = vunpack.c.l.b16 %v1778
  %v1794 = vunpack.c.l.b16 %v1779
  %v1795 = vunpack.c.l.b16 %v1780
  %v1796 = vunpack.c.l.b16 %v1781
  %v1797 = vunpack.c.l.b16 %v1782
  %v1798 = vpack.c.b16 %v1794, %v1793
  %v1799 = vpack.c.b16 %v1796, %v1795
  %v1800 = vpack.c.b16 %v1797, %v1797
  %vm1803 = vcmask 293888
  %v1805 = vsel %vm1803, %v1784, 0
  %vm1807 = vcmask 1041408
  %v1809 = vsel %vm1807, %v1800, 0
  %1811 = vmatpush.bf16.msra.mxu0 0
  %1812 = vmatpush.bf16.msra.mxu0 0
  %1813 = vmatpush.bf16.msra.mxu0 0
  %1814 = vmatpush.bf16.msra.mxu0 0
  %1815 = vmatpush.bf16.msra.mxu0 0
  %1816 = vmatpush.bf16.msra.mxu0 %v1809
  %1817 = vmatpush.bf16.msra.mxu0 %v1799
  %1818 = vmatpush.bf16.msra.mxu0 %v1798
  %1819 = vmatmul.bf16.gmra.mxu0 %v1805
  %v1820 = vpop.f32.mrf.mxu0
  %v1821 = vadd.f32 %v1786, %v1820
  %v1822 = vpop.f32.mrf.mxu0
  %v1823 = vadd.f32 %v1786, %v1822
  %1824 = vdwg.mxu0
  %v1825 = vmax.f32 %v1821, 0.0
  %v1826 = vmax.f32 %v1823, 0.0
  %v1827 = vld [vmem:[%s5] sm:$0xf]
  %v1828 = vld [vmem:[%s5 + $0x4] sm:$0xf]
  %v1829 = vld [vmem:[%s5 + $0x8] sm:$0x1]
  %v1830 = vld [vmem:[%s15] sm:$0x1]
  %v1831 = vpack.c.bf16 %v1826, %v1825
  %v1833 = vperm.slane %v1830, 0
  %v1838 = vunpack.c.l.b16 %v1827
  %v1839 = vunpack.c.l.b16 %v1828
  %v1840 = vunpack.c.l.b16 %v1829
  %v1841 = vpack.c.b16 %v1839, %v1838
  %v1842 = vpack.c.b16 %v1840, %v1840
  %vm1844 = vcmask 146432
  %v1846 = vsel %vm1844, %v1831, 0
  %vm1848 = vcmask 1040384
  %v1850 = vsel %vm1848, %v1842, 0
  %1852 = vmatpush.bf16.msra.mxu0 0
  %1853 = vmatpush.bf16.msra.mxu0 0
  %1854 = vmatpush.bf16.msra.mxu0 0
  %1855 = vmatpush.bf16.msra.mxu0 0
  %1856 = vmatpush.bf16.msra.mxu0 0
  %1857 = vmatpush.bf16.msra.mxu0 0
  %1858 = vmatpush.bf16.msra.mxu0 %v1850
  %1859 = vmatpush.bf16.msra.mxu0 %v1841
  %1860 = vmatmul.bf16.gmra.mxu0 %v1846
  %v1861 = vpop.f32.mrf.mxu0
  %v1862 = vadd.f32 %v1833, %v1861
  %v1863 = vpop.f32.mrf.mxu0
  %v1864 = vadd.f32 %v1833, %v1863
  %1865 = vdwg.mxu0
  %v1866 = vld [vmem:[%s6] sm:$0xf]
  %v1867 = vld [vmem:[%s6 + $0x4] sm:$0x1]
  %v1868 = vld [vmem:[%s16] sm:$0x1]
  %v1869 = vpack.c.bf16 %v1864, %v1862
  %v1871 = vperm.slane %v1868, 0
  %v1875 = vunpack.c.l.b16 %v1866
  %v1876 = vunpack.c.l.b16 %v1867
  %v1877 = vpack.c.b16 %v1876, %v1875
  %vm1878 = vcmask 72704
  %v1880 = vsel %vm1878, %v1869, 0
  %vm1882 = vcmask 1043456
  %vm1883 = vcmask 1044480
  %v1884 = vsel %vm1882, 4294967295, 65535
  %v1885 = vsel %vm1883, %v1884, 0
  %v1887 = vand.u32 %v1877, %v1885
  %1889 = vmatpush.bf16.msra.mxu0 0
  %1890 = vmatpush.bf16.msra.mxu0 0
  %1891 = vmatpush.bf16.msra.mxu0 0
  %1892 = vmatpush.bf16.msra.mxu0 0
  %1893 = vmatpush.bf16.msra.mxu0 0
  %1894 = vmatpush.bf16.msra.mxu0 0
  %1895 = vmatpush.bf16.msra.mxu0 0
  %1896 = vmatpush.bf16.msra.mxu0 %v1887
  %1897 = vmatmul.bf16.gmra.mxu0 %v1880
  %v1898 = vpop.f32.mrf.mxu0
  %v1899 = vadd.f32 %v1871, %v1898
  %v1900 = vpop.f32.mrf.mxu0
  %v1901 = vadd.f32 %v1871, %v1900
  %1902 = vdwg.mxu0
  %v1903 = vmax.f32 %v1899, 0.0
  %v1904 = vmax.f32 %v1901, 0.0
  %v1905 = vld [vmem:[%s7] sm:$0xf]
  %v1906 = vld [vmem:[%s7 + $0x4] sm:$0xf]
  %v1907 = vld [vmem:[%s7 + $0x8] sm:$0x1]
  %v1908 = vld [vmem:[%s17] sm:$0x1]
  %v1909 = vpack.c.bf16 %v1904, %v1903
  %v1911 = vperm.slane %v1908, 0
  %v1916 = vunpack.c.l.b16 %v1905
  %v1917 = vunpack.c.l.b16 %v1906
  %v1918 = vunpack.c.l.b16 %v1907
  %v1919 = vpack.c.b16 %v1917, %v1916
  %v1920 = vpack.c.b16 %v1918, %v1918
  %v1923 = vsel %vm1844, %v1909, 0
  %v1926 = vsel %vm1848, %v1920, 0
  %1928 = vmatpush.bf16.msra.mxu0 0
  %1929 = vmatpush.bf16.msra.mxu0 0
  %1930 = vmatpush.bf16.msra.mxu0 0
  %1931 = vmatpush.bf16.msra.mxu0 0
  %1932 = vmatpush.bf16.msra.mxu0 0
  %1933 = vmatpush.bf16.msra.mxu0 0
  %1934 = vmatpush.bf16.msra.mxu0 %v1926
  %1935 = vmatpush.bf16.msra.mxu0 %v1919
  %1936 = vmatmul.bf16.gmra.mxu0 %v1923
  %v1937 = vpop.f32.mrf.mxu0
  %v1938 = vadd.f32 %v1911, %v1937
  %v1939 = vpop.f32.mrf.mxu0
  %v1940 = vadd.f32 %v1911, %v1939
  %1941 = vdwg.mxu0
  %v1942 = vmax.f32 %v1938, 0.0
  %v1943 = vmax.f32 %v1940, 0.0
  %v1944 = vld [vmem:[%s8] sm:$0xf]
  %v1945 = vld [vmem:[%s8 + $0x4] sm:$0xf]
  %v1946 = vld [vmem:[%s8 + $0x8] sm:$0xf]
  %v1947 = vld [vmem:[%s8 + $0xc] sm:$0xf]
  %v1948 = vld [vmem:[%s8 + $0x10] sm:$0x3]
  %v1949 = vld [vmem:[%s18] sm:$0x1]
  %v1950 = vpack.c.bf16 %v1943, %v1942
  %v1952 = vperm.slane %v1949, 0
  %v1959 = vunpack.c.l.b16 %v1944
  %v1960 = vunpack.c.l.b16 %v1945
  %v1961 = vunpack.c.l.b16 %v1946
  %v1962 = vunpack.c.l.b16 %v1947
  %v1963 = vunpack.c.l.b16 %v1948
  %v1964 = vpack.c.b16 %v1960, %v1959
  %v1965 = vpack.c.b16 %v1962, %v1961
  %v1966 = vpack.c.b16 %v1963, %v1963
  %v1970 = vsel %vm1803, %v1950, 0
  %v1973 = vsel %vm1807, %v1966, 0
  %1975 = vmatpush.bf16.msra.mxu0 0
  %1976 = vmatpush.bf16.msra.mxu0 0
  %1977 = vmatpush.bf16.msra.mxu0 0
  %1978 = vmatpush.bf16.msra.mxu0 0
  %1979 = vmatpush.bf16.msra.mxu0 0
  %1980 = vmatpush.bf16.msra.mxu0 %v1973
  %1981 = vmatpush.bf16.msra.mxu0 %v1965
  %1982 = vmatpush.bf16.msra.mxu0 %v1964
  %1983 = vmatmul.bf16.gmra.mxu0 %v1970
  %v1984 = vpop.f32.mrf.mxu0
  %v1985 = vadd.f32 %v1952, %v1984
  %v1986 = vpop.f32.mrf.mxu0
  %v1987 = vadd.f32 %v1952, %v1986
  %1988 = vdwg.mxu0
  %v1989 = vmax.f32 %v1985, 0.0
  %v1990 = vmax.f32 %v1987, 0.0
  %v1991 = vld [vmem:[%s9] sm:$0xf]
  %v1992 = vld [vmem:[%s9 + $0x4] sm:$0xf]
  %v1993 = vld [vmem:[%s9 + $0x8] sm:$0xf]
  %v1994 = vld [vmem:[%s9 + $0xc] sm:$0xf]
  %v1995 = vld [vmem:[%s9 + $0x10] sm:$0xf]
  %v1996 = vld [vmem:[%s9 + $0x14] sm:$0xf]
  %v1997 = vld [vmem:[%s9 + $0x18] sm:$0xf]
  %v1998 = vld [vmem:[%s9 + $0x1c] sm:$0xf]
  %v1999 = vld [vmem:[%s19] sm:$0x1]
  %v2000 = vpack.c.bf16 %v1990, %v1989
  %v2002 = vperm.slane %v1999, 0
  %v2012 = vunpack.c.l.b16 %v1991
  %v2013 = vunpack.c.l.b16 %v1992
  %v2014 = vunpack.c.l.b16 %v1993
  %v2015 = vunpack.c.l.b16 %v1994
  %v2016 = vunpack.c.l.b16 %v1995
  %v2017 = vunpack.c.l.b16 %v1996
  %v2018 = vunpack.c.l.b16 %v1997
  %v2019 = vunpack.c.l.b16 %v1998
  %v2020 = vpack.c.b16 %v2013, %v2012
  %v2021 = vpack.c.b16 %v2015, %v2014
  %v2022 = vpack.c.b16 %v2017, %v2016
  %v2023 = vpack.c.b16 %v2019, %v2018
  %v2029 = vsel %vm1758, %v2000, 0
  %2031 = vmatpush.bf16.msra.mxu0 0
  %2032 = vmatpush.bf16.msra.mxu0 0
  %2033 = vmatpush.bf16.msra.mxu0 0
  %2034 = vmatpush.bf16.msra.mxu0 0
  %2035 = vmatpush.bf16.msra.mxu0 %v2023
  %2036 = vmatpush.bf16.msra.mxu0 %v2022
  %2037 = vmatpush.bf16.msra.mxu0 %v2021
  %2038 = vmatpush.bf16.msra.mxu0 %v2020
  %2039 = vmatmul.bf16.gmra.mxu0 %v2029
  %v2040 = vpop.f32.mrf.mxu0
  %v2041 = vadd.f32 %v2002, %v2040
  %v2042 = vpop.f32.mrf.mxu0
  %v2043 = vadd.f32 %v2002, %v2042
  %2044 = vdwg.mxu0
  %v2045 = vmax.f32 %v2041, 0.0
  %v2046 = vmax.f32 %v2043, 0.0
  %v2047 = vld [vmem:[%s10] sm:$0xff]
  %v2048 = vld [vmem:[%s10 + $0x8] sm:$0xff]
  %v2049 = vld [vmem:[%s10 + $0x10] sm:$0xff]
  %v2050 = vld [vmem:[%s10 + $0x18] sm:$0xff]
  %v2051 = vld [vmem:[%s10 + $0x20] sm:$0xff]
  %v2052 = vld [vmem:[%s10 + $0x28] sm:$0xff]
  %v2053 = vld [vmem:[%s10 + $0x30] sm:$0xff]
  %v2054 = vld [vmem:[%s10 + $0x38] sm:$0xff]
  %v2055 = vld [vmem:[%s10 + $0x40] sm:$0xff]
  %v2056 = vld [vmem:[%s10 + $0x48] sm:$0xf]
  %v2057 = vld [vmem:[%s10 + $0x4c] sm:$0xff]
  %v2058 = vld [vmem:[%s10 + $0x54] sm:$0xff]
  %v2059 = vld [vmem:[%s10 + $0x5c] sm:$0xff]
  %v2060 = vld [vmem:[%s10 + $0x64] sm:$0xff]
  %v2061 = vld [vmem:[%s10 + $0x6c] sm:$0xff]
  %v2062 = vld [vmem:[%s10 + $0x74] sm:$0xff]
  %v2063 = vld [vmem:[%s10 + $0x7c] sm:$0xff]
  %v2064 = vld [vmem:[%s10 + $0x84] sm:$0xff]
  %v2065 = vld [vmem:[%s10 + $0x8c] sm:$0xff]
  %v2066 = vld [vmem:[%s10 + $0x94] sm:$0xf]
  %v2067 = vld [vmem:[%s10 + $0x98] sm:$0xff]
  %v2068 = vld [vmem:[%s10 + $0xa0] sm:$0xff]
  %v2069 = vld [vmem:[%s10 + $0xa8] sm:$0xff]
  %v2070 = vld [vmem:[%s10 + $0xb0] sm:$0xff]
  %v2071 = vld [vmem:[%s10 + $0xb8] sm:$0xff]
  %v2072 = vld [vmem:[%s10 + $0xc0] sm:$0xff]
  %v2073 = vld [vmem:[%s10 + $0xc8] sm:$0xff]
  %v2074 = vld [vmem:[%s10 + $0xd0] sm:$0xff]
  %v2075 = vld [vmem:[%s10 + $0xd8] sm:$0xff]
  %v2076 = vld [vmem:[%s10 + $0xe0] sm:$0xf]
  %v2077 = vld [vmem:[%s10 + $0xe4] sm:$0xff]
  %v2078 = vld [vmem:[%s10 + $0xec] sm:$0xff]
  %v2079 = vld [vmem:[%s10 + $0xf4] sm:$0xff]
  %v2080 = vld [vmem:[%s10 + $0xfc] sm:$0xff]
  %v2081 = vld [vmem:[%s10 + $0x104] sm:$0xff]
  %v2082 = vld [vmem:[%s10 + $0x10c] sm:$0xff]
  %v2083 = vld [vmem:[%s10 + $0x114] sm:$0xff]
  %v2084 = vld [vmem:[%s10 + $0x11c] sm:$0xff]
  %v2085 = vld [vmem:[%s10 + $0x124] sm:$0xff]
  %v2086 = vld [vmem:[%s10 + $0x12c] sm:$0xf]
  %v2087 = vld [vmem:[%s10 + $0x130] sm:$0xff]
  %v2088 = vld [vmem:[%s10 + $0x138] sm:$0xff]
  %v2089 = vld [vmem:[%s10 + $0x140] sm:$0xff]
  %v2090 = vld [vmem:[%s10 + $0x148] sm:$0xff]
  %v2091 = vld [vmem:[%s10 + $0x150] sm:$0xff]
  %v2092 = vld [vmem:[%s10 + $0x158] sm:$0xff]
  %v2093 = vld [vmem:[%s10 + $0x160] sm:$0xff]
  %v2094 = vld [vmem:[%s10 + $0x168] sm:$0xff]
  %v2095 = vld [vmem:[%s10 + $0x170] sm:$0xff]
  %v2096 = vld [vmem:[%s10 + $0x178] sm:$0xf]
  %v2097 = vld [vmem:[%s10 + $0x17c] sm:$0xff]
  %v2098 = vld [vmem:[%s10 + $0x184] sm:$0xff]
  %v2099 = vld [vmem:[%s10 + $0x18c] sm:$0xff]
  %v2100 = vld [vmem:[%s10 + $0x194] sm:$0xff]
  %v2101 = vld [vmem:[%s10 + $0x19c] sm:$0xff]
  %v2102 = vld [vmem:[%s10 + $0x1a4] sm:$0xff]
  %v2103 = vld [vmem:[%s10 + $0x1ac] sm:$0xff]
  %v2104 = vld [vmem:[%s10 + $0x1b4] sm:$0xff]
  %v2105 = vld [vmem:[%s10 + $0x1bc] sm:$0xff]
  %v2106 = vld [vmem:[%s10 + $0x1c4] sm:$0xf]
  %v2107 = vld [vmem:[%s10 + $0x1c8] sm:$0xff]
  %v2108 = vld [vmem:[%s10 + $0x1d0] sm:$0xff]
  %v2109 = vld [vmem:[%s10 + $0x1d8] sm:$0xff]
  %v2110 = vld [vmem:[%s10 + $0x1e0] sm:$0xff]
  %v2111 = vld [vmem:[%s10 + $0x1e8] sm:$0xff]
  %v2112 = vld [vmem:[%s10 + $0x1f0] sm:$0xff]
  %v2113 = vld [vmem:[%s10 + $0x1f8] sm:$0xff]
  %v2114 = vld [vmem:[%s10 + $0x200] sm:$0xff]
  %v2115 = vld [vmem:[%s10 + $0x208] sm:$0xff]
  %v2116 = vld [vmem:[%s10 + $0x210] sm:$0xf]
  %v2117 = vld [vmem:[%s10 + $0x214] sm:$0xff]
  %v2118 = vld [vmem:[%s10 + $0x21c] sm:$0xff]
  %v2119 = vld [vmem:[%s10 + $0x224] sm:$0xff]
  %v2120 = vld [vmem:[%s10 + $0x22c] sm:$0xff]
  %v2121 = vld [vmem:[%s10 + $0x234] sm:$0xff]
  %v2122 = vld [vmem:[%s10 + $0x23c] sm:$0xff]
  %v2123 = vld [vmem:[%s10 + $0x244] sm:$0xff]
  %v2124 = vld [vmem:[%s10 + $0x24c] sm:$0xff]
  %v2125 = vld [vmem:[%s10 + $0x254] sm:$0xff]
  %v2126 = vld [vmem:[%s10 + $0x25c] sm:$0xf]
  %v2127 = vld [vmem:[%s10 + $0x260] sm:$0xff]
  %v2128 = vld [vmem:[%s10 + $0x268] sm:$0xff]
  %v2129 = vld [vmem:[%s10 + $0x270] sm:$0xff]
  %v2130 = vld [vmem:[%s10 + $0x278] sm:$0xff]
  %v2131 = vld [vmem:[%s10 + $0x280] sm:$0xff]
  %v2132 = vld [vmem:[%s10 + $0x288] sm:$0xff]
  %v2133 = vld [vmem:[%s10 + $0x290] sm:$0xff]
  %v2134 = vld [vmem:[%s10 + $0x298] sm:$0xff]
  %v2135 = vld [vmem:[%s10 + $0x2a0] sm:$0xff]
  %v2136 = vld [vmem:[%s10 + $0x2a8] sm:$0xf]
  %v2137 = vld [vmem:[%s10 + $0x2ac] sm:$0xff]
  %v2138 = vld [vmem:[%s10 + $0x2b4] sm:$0xff]
  %v2139 = vld [vmem:[%s10 + $0x2bc] sm:$0xff]
  %v2140 = vld [vmem:[%s10 + $0x2c4] sm:$0xff]
  %v2141 = vld [vmem:[%s10 + $0x2cc] sm:$0xff]
  %v2142 = vld [vmem:[%s10 + $0x2d4] sm:$0xff]
  %v2143 = vld [vmem:[%s10 + $0x2dc] sm:$0xff]
  %v2144 = vld [vmem:[%s10 + $0x2e4] sm:$0xff]
  %v2145 = vld [vmem:[%s10 + $0x2ec] sm:$0xff]
  %v2146 = vld [vmem:[%s10 + $0x2f4] sm:$0xf]
  %v2147 = vld [vmem:[%s10 + $0x2f8] sm:$0xff]
  %v2148 = vld [vmem:[%s10 + $0x300] sm:$0xff]
  %v2149 = vld [vmem:[%s10 + $0x308] sm:$0xff]
  %v2150 = vld [vmem:[%s10 + $0x310] sm:$0xff]
  %v2151 = vld [vmem:[%s10 + $0x318] sm:$0xff]
  %v2152 = vld [vmem:[%s10 + $0x320] sm:$0xff]
  %v2153 = vld [vmem:[%s10 + $0x328] sm:$0xff]
  %v2154 = vld [vmem:[%s10 + $0x330] sm:$0xff]
  %v2155 = vld [vmem:[%s10 + $0x338] sm:$0xff]
  %v2156 = vld [vmem:[%s10 + $0x340] sm:$0xf]
  %v2157 = vld [vmem:[%s10 + $0x344] sm:$0xff]
  %v2158 = vld [vmem:[%s10 + $0x34c] sm:$0xff]
  %v2159 = vld [vmem:[%s10 + $0x354] sm:$0xff]
  %v2160 = vld [vmem:[%s10 + $0x35c] sm:$0xff]
  %v2161 = vld [vmem:[%s10 + $0x364] sm:$0xff]
  %v2162 = vld [vmem:[%s10 + $0x36c] sm:$0xff]
  %v2163 = vld [vmem:[%s10 + $0x374] sm:$0xff]
  %v2164 = vld [vmem:[%s10 + $0x37c] sm:$0xff]
  %v2165 = vld [vmem:[%s10 + $0x384] sm:$0xff]
  %v2166 = vld [vmem:[%s10 + $0x38c] sm:$0xf]
  %v2167 = vld [vmem:[%s10 + $0x390] sm:$0xff]
  %v2168 = vld [vmem:[%s10 + $0x398] sm:$0xff]
  %v2169 = vld [vmem:[%s10 + $0x3a0] sm:$0xff]
  %v2170 = vld [vmem:[%s10 + $0x3a8] sm:$0xff]
  %v2171 = vld [vmem:[%s10 + $0x3b0] sm:$0xff]
  %v2172 = vld [vmem:[%s10 + $0x3b8] sm:$0xff]
  %v2173 = vld [vmem:[%s10 + $0x3c0] sm:$0xff]
  %v2174 = vld [vmem:[%s10 + $0x3c8] sm:$0xff]
  %v2175 = vld [vmem:[%s10 + $0x3d0] sm:$0xff]
  %v2176 = vld [vmem:[%s10 + $0x3d8] sm:$0xf]
  %v2177 = vld [vmem:[%s10 + $0x3dc] sm:$0xff]
  %v2178 = vld [vmem:[%s10 + $0x3e4] sm:$0xff]
  %v2179 = vld [vmem:[%s10 + $0x3ec] sm:$0xff]
  %v2180 = vld [vmem:[%s10 + $0x3f4] sm:$0xff]
  %v2181 = vld [vmem:[%s10 + $0x3fc] sm:$0xff]
  %v2182 = vld [vmem:[%s10 + $0x404] sm:$0xff]
  %v2183 = vld [vmem:[%s10 + $0x40c] sm:$0xff]
  %v2184 = vld [vmem:[%s10 + $0x414] sm:$0xff]
  %v2185 = vld [vmem:[%s10 + $0x41c] sm:$0xff]
  %v2186 = vld [vmem:[%s10 + $0x424] sm:$0xf]
  %v2187 = vld [vmem:[%s10 + $0x428] sm:$0xff]
  %v2188 = vld [vmem:[%s10 + $0x430] sm:$0xff]
  %v2189 = vld [vmem:[%s10 + $0x438] sm:$0xff]
  %v2190 = vld [vmem:[%s10 + $0x440] sm:$0xff]
  %v2191 = vld [vmem:[%s10 + $0x448] sm:$0xff]
  %v2192 = vld [vmem:[%s10 + $0x450] sm:$0xff]
  %v2193 = vld [vmem:[%s10 + $0x458] sm:$0xff]
  %v2194 = vld [vmem:[%s10 + $0x460] sm:$0xff]
  %v2195 = vld [vmem:[%s10 + $0x468] sm:$0xff]
  %v2196 = vld [vmem:[%s10 + $0x470] sm:$0xf]
  %v2197 = vld [vmem:[%s10 + $0x474] sm:$0xff]
  %v2198 = vld [vmem:[%s10 + $0x47c] sm:$0xff]
  %v2199 = vld [vmem:[%s10 + $0x484] sm:$0xff]
  %v2200 = vld [vmem:[%s10 + $0x48c] sm:$0xff]
  %v2201 = vld [vmem:[%s10 + $0x494] sm:$0xff]
  %v2202 = vld [vmem:[%s10 + $0x49c] sm:$0xff]
  %v2203 = vld [vmem:[%s10 + $0x4a4] sm:$0xff]
  %v2204 = vld [vmem:[%s10 + $0x4ac] sm:$0xff]
  %v2205 = vld [vmem:[%s10 + $0x4b4] sm:$0xff]
  %v2206 = vld [vmem:[%s10 + $0x4bc] sm:$0xf]
  %v2207 = vld [vmem:[%s20] sm:$0xff]
  %v2208 = vld [vmem:[%s20 + $0x8] sm:$0xff]
  %v2209 = vld [vmem:[%s20 + $0x10] sm:$0x7]
  %v2210 = vpack.c.bf16 %v2046, %v2045
  %v2214 = vperm.slane %v2207, 0
  %v2215 = vperm.slane %v2207, 1
  %v2216 = vperm.slane %v2207, 2
  %v2217 = vperm.slane %v2207, 3
  %v2218 = vperm.slane %v2207, 4
  %v2219 = vperm.slane %v2207, 5
  %v2220 = vperm.slane %v2207, 6
  %v2221 = vperm.slane %v2207, 7
  %v2222 = vperm.slane %v2208, 0
  %v2223 = vperm.slane %v2208, 1
  %v2224 = vperm.slane %v2208, 2
  %v2225 = vperm.slane %v2208, 3
  %v2226 = vperm.slane %v2208, 4
  %v2227 = vperm.slane %v2208, 5
  %v2228 = vperm.slane %v2208, 6
  %v2229 = vperm.slane %v2208, 7
  %v2230 = vperm.slane %v2209, 0
  %v2231 = vperm.slane %v2209, 1
  %v2232 = vperm.slane %v2209, 2
  %v2412 = vunpack.c.l.b16 %v2047
  %v2413 = vunpack.c.h.b16 %v2047
  %v2414 = vunpack.c.l.b16 %v2048
  %v2415 = vunpack.c.h.b16 %v2048
  %v2416 = vunpack.c.l.b16 %v2049
  %v2417 = vunpack.c.h.b16 %v2049
  %v2418 = vunpack.c.l.b16 %v2050
  %v2419 = vunpack.c.h.b16 %v2050
  %v2420 = vunpack.c.l.b16 %v2051
  %v2421 = vunpack.c.h.b16 %v2051
  %v2422 = vunpack.c.l.b16 %v2052
  %v2423 = vunpack.c.h.b16 %v2052
  %v2424 = vunpack.c.l.b16 %v2053
  %v2425 = vunpack.c.h.b16 %v2053
  %v2426 = vunpack.c.l.b16 %v2054
  %v2427 = vunpack.c.h.b16 %v2054
  %v2428 = vunpack.c.l.b16 %v2055
  %v2429 = vunpack.c.h.b16 %v2055
  %v2430 = vunpack.c.l.b16 %v2056
  %v2431 = vunpack.c.l.b16 %v2057
  %v2432 = vunpack.c.h.b16 %v2057
  %v2433 = vunpack.c.l.b16 %v2058
  %v2434 = vunpack.c.h.b16 %v2058
  %v2435 = vunpack.c.l.b16 %v2059
  %v2436 = vunpack.c.h.b16 %v2059
  %v2437 = vunpack.c.l.b16 %v2060
  %v2438 = vunpack.c.h.b16 %v2060
  %v2439 = vunpack.c.l.b16 %v2061
  %v2440 = vunpack.c.h.b16 %v2061
  %v2441 = vunpack.c.l.b16 %v2062
  %v2442 = vunpack.c.h.b16 %v2062
  %v2443 = vunpack.c.l.b16 %v2063
  %v2444 = vunpack.c.h.b16 %v2063
  %v2445 = vunpack.c.l.b16 %v2064
  %v2446 = vunpack.c.h.b16 %v2064
  %v2447 = vunpack.c.l.b16 %v2065
  %v2448 = vunpack.c.h.b16 %v2065
  %v2449 = vunpack.c.l.b16 %v2066
  %v2450 = vunpack.c.l.b16 %v2067
  %v2451 = vunpack.c.h.b16 %v2067
  %v2452 = vunpack.c.l.b16 %v2068
  %v2453 = vunpack.c.h.b16 %v2068
  %v2454 = vunpack.c.l.b16 %v2069
  %v2455 = vunpack.c.h.b16 %v2069
  %v2456 = vunpack.c.l.b16 %v2070
  %v2457 = vunpack.c.h.b16 %v2070
  %v2458 = vunpack.c.l.b16 %v2071
  %v2459 = vunpack.c.h.b16 %v2071
  %v2460 = vunpack.c.l.b16 %v2072
  %v2461 = vunpack.c.h.b16 %v2072
  %v2462 = vunpack.c.l.b16 %v2073
  %v2463 = vunpack.c.h.b16 %v2073
  %v2464 = vunpack.c.l.b16 %v2074
  %v2465 = vunpack.c.h.b16 %v2074
  %v2466 = vunpack.c.l.b16 %v2075
  %v2467 = vunpack.c.h.b16 %v2075
  %v2468 = vunpack.c.l.b16 %v2076
  %v2469 = vunpack.c.l.b16 %v2077
  %v2470 = vunpack.c.h.b16 %v2077
  %v2471 = vunpack.c.l.b16 %v2078
  %v2472 = vunpack.c.h.b16 %v2078
  %v2473 = vunpack.c.l.b16 %v2079
  %v2474 = vunpack.c.h.b16 %v2079
  %v2475 = vunpack.c.l.b16 %v2080
  %v2476 = vunpack.c.h.b16 %v2080
  %v2477 = vunpack.c.l.b16 %v2081
  %v2478 = vunpack.c.h.b16 %v2081
  %v2479 = vunpack.c.l.b16 %v2082
  %v2480 = vunpack.c.h.b16 %v2082
  %v2481 = vunpack.c.l.b16 %v2083
  %v2482 = vunpack.c.h.b16 %v2083
  %v2483 = vunpack.c.l.b16 %v2084
  %v2484 = vunpack.c.h.b16 %v2084
  %v2485 = vunpack.c.l.b16 %v2085
  %v2486 = vunpack.c.h.b16 %v2085
  %v2487 = vunpack.c.l.b16 %v2086
  %v2488 = vunpack.c.l.b16 %v2087
  %v2489 = vunpack.c.h.b16 %v2087
  %v2490 = vunpack.c.l.b16 %v2088
  %v2491 = vunpack.c.h.b16 %v2088
  %v2492 = vunpack.c.l.b16 %v2089
  %v2493 = vunpack.c.h.b16 %v2089
  %v2494 = vunpack.c.l.b16 %v2090
  %v2495 = vunpack.c.h.b16 %v2090
  %v2496 = vunpack.c.l.b16 %v2091
  %v2497 = vunpack.c.h.b16 %v2091
  %v2498 = vunpack.c.l.b16 %v2092
  %v2499 = vunpack.c.h.b16 %v2092
  %v2500 = vunpack.c.l.b16 %v2093
  %v2501 = vunpack.c.h.b16 %v2093
  %v2502 = vunpack.c.l.b16 %v2094
  %v2503 = vunpack.c.h.b16 %v2094
  %v2504 = vunpack.c.l.b16 %v2095
  %v2505 = vunpack.c.h.b16 %v2095
  %v2506 = vunpack.c.l.b16 %v2096
  %v2507 = vunpack.c.l.b16 %v2097
  %v2508 = vunpack.c.h.b16 %v2097
  %v2509 = vunpack.c.l.b16 %v2098
  %v2510 = vunpack.c.h.b16 %v2098
  %v2511 = vunpack.c.l.b16 %v2099
  %v2512 = vunpack.c.h.b16 %v2099
  %v2513 = vunpack.c.l.b16 %v2100
  %v2514 = vunpack.c.h.b16 %v2100
  %v2515 = vunpack.c.l.b16 %v2101
  %v2516 = vunpack.c.h.b16 %v2101
  %v2517 = vunpack.c.l.b16 %v2102
  %v2518 = vunpack.c.h.b16 %v2102
  %v2519 = vunpack.c.l.b16 %v2103
  %v2520 = vunpack.c.h.b16 %v2103
  %v2521 = vunpack.c.l.b16 %v2104
  %v2522 = vunpack.c.h.b16 %v2104
  %v2523 = vunpack.c.l.b16 %v2105
  %v2524 = vunpack.c.h.b16 %v2105
  %v2525 = vunpack.c.l.b16 %v2106
  %v2526 = vunpack.c.l.b16 %v2107
  %v2527 = vunpack.c.h.b16 %v2107
  %v2528 = vunpack.c.l.b16 %v2108
  %v2529 = vunpack.c.h.b16 %v2108
  %v2530 = vunpack.c.l.b16 %v2109
  %v2531 = vunpack.c.h.b16 %v2109
  %v2532 = vunpack.c.l.b16 %v2110
  %v2533 = vunpack.c.h.b16 %v2110
  %v2534 = vunpack.c.l.b16 %v2111
  %v2535 = vunpack.c.h.b16 %v2111
  %v2536 = vunpack.c.l.b16 %v2112
  %v2537 = vunpack.c.h.b16 %v2112
  %v2538 = vunpack.c.l.b16 %v2113
  %v2539 = vunpack.c.h.b16 %v2113
  %v2540 = vunpack.c.l.b16 %v2114
  %v2541 = vunpack.c.h.b16 %v2114
  %v2542 = vunpack.c.l.b16 %v2115
  %v2543 = vunpack.c.h.b16 %v2115
  %v2544 = vunpack.c.l.b16 %v2116
  %v2545 = vunpack.c.l.b16 %v2117
  %v2546 = vunpack.c.h.b16 %v2117
  %v2547 = vunpack.c.l.b16 %v2118
  %v2548 = vunpack.c.h.b16 %v2118
  %v2549 = vunpack.c.l.b16 %v2119
  %v2550 = vunpack.c.h.b16 %v2119
  %v2551 = vunpack.c.l.b16 %v2120
  %v2552 = vunpack.c.h.b16 %v2120
  %v2553 = vunpack.c.l.b16 %v2121
  %v2554 = vunpack.c.h.b16 %v2121
  %v2555 = vunpack.c.l.b16 %v2122
  %v2556 = vunpack.c.h.b16 %v2122
  %v2557 = vunpack.c.l.b16 %v2123
  %v2558 = vunpack.c.h.b16 %v2123
  %v2559 = vunpack.c.l.b16 %v2124
  %v2560 = vunpack.c.h.b16 %v2124
  %v2561 = vunpack.c.l.b16 %v2125
  %v2562 = vunpack.c.h.b16 %v2125
  %v2563 = vunpack.c.l.b16 %v2126
  %v2564 = vunpack.c.l.b16 %v2127
  %v2565 = vunpack.c.h.b16 %v2127
  %v2566 = vunpack.c.l.b16 %v2128
  %v2567 = vunpack.c.h.b16 %v2128
  %v2568 = vunpack.c.l.b16 %v2129
  %v2569 = vunpack.c.h.b16 %v2129
  %v2570 = vunpack.c.l.b16 %v2130
  %v2571 = vunpack.c.h.b16 %v2130
  %v2572 = vunpack.c.l.b16 %v2131
  %v2573 = vunpack.c.h.b16 %v2131
  %v2574 = vunpack.c.l.b16 %v2132
  %v2575 = vunpack.c.h.b16 %v2132
  %v2576 = vunpack.c.l.b16 %v2133
  %v2577 = vunpack.c.h.b16 %v2133
  %v2578 = vunpack.c.l.b16 %v2134
  %v2579 = vunpack.c.h.b16 %v2134
  %v2580 = vunpack.c.l.b16 %v2135
  %v2581 = vunpack.c.h.b16 %v2135
  %v2582 = vunpack.c.l.b16 %v2136
  %v2583 = vunpack.c.l.b16 %v2137
  %v2584 = vunpack.c.h.b16 %v2137
  %v2585 = vunpack.c.l.b16 %v2138
  %v2586 = vunpack.c.h.b16 %v2138
  %v2587 = vunpack.c.l.b16 %v2139
  %v2588 = vunpack.c.h.b16 %v2139
  %v2589 = vunpack.c.l.b16 %v2140
  %v2590 = vunpack.c.h.b16 %v2140
  %v2591 = vunpack.c.l.b16 %v2141
  %v2592 = vunpack.c.h.b16 %v2141
  %v2593 = vunpack.c.l.b16 %v2142
  %v2594 = vunpack.c.h.b16 %v2142
  %v2595 = vunpack.c.l.b16 %v2143
  %v2596 = vunpack.c.h.b16 %v2143
  %v2597 = vunpack.c.l.b16 %v2144
  %v2598 = vunpack.c.h.b16 %v2144
  %v2599 = vunpack.c.l.b16 %v2145
  %v2600 = vunpack.c.h.b16 %v2145
  %v2601 = vunpack.c.l.b16 %v2146
  %v2602 = vunpack.c.l.b16 %v2147
  %v2603 = vunpack.c.h.b16 %v2147
  %v2604 = vunpack.c.l.b16 %v2148
  %v2605 = vunpack.c.h.b16 %v2148
  %v2606 = vunpack.c.l.b16 %v2149
  %v2607 = vunpack.c.h.b16 %v2149
  %v2608 = vunpack.c.l.b16 %v2150
  %v2609 = vunpack.c.h.b16 %v2150
  %v2610 = vunpack.c.l.b16 %v2151
  %v2611 = vunpack.c.h.b16 %v2151
  %v2612 = vunpack.c.l.b16 %v2152
  %v2613 = vunpack.c.h.b16 %v2152
  %v2614 = vunpack.c.l.b16 %v2153
  %v2615 = vunpack.c.h.b16 %v2153
  %v2616 = vunpack.c.l.b16 %v2154
  %v2617 = vunpack.c.h.b16 %v2154
  %v2618 = vunpack.c.l.b16 %v2155
  %v2619 = vunpack.c.h.b16 %v2155
  %v2620 = vunpack.c.l.b16 %v2156
  %v2621 = vunpack.c.l.b16 %v2157
  %v2622 = vunpack.c.h.b16 %v2157
  %v2623 = vunpack.c.l.b16 %v2158
  %v2624 = vunpack.c.h.b16 %v2158
  %v2625 = vunpack.c.l.b16 %v2159
  %v2626 = vunpack.c.h.b16 %v2159
  %v2627 = vunpack.c.l.b16 %v2160
  %v2628 = vunpack.c.h.b16 %v2160
  %v2629 = vunpack.c.l.b16 %v2161
  %v2630 = vunpack.c.h.b16 %v2161
  %v2631 = vunpack.c.l.b16 %v2162
  %v2632 = vunpack.c.h.b16 %v2162
  %v2633 = vunpack.c.l.b16 %v2163
  %v2634 = vunpack.c.h.b16 %v2163
  %v2635 = vunpack.c.l.b16 %v2164
  %v2636 = vunpack.c.h.b16 %v2164
  %v2637 = vunpack.c.l.b16 %v2165
  %v2638 = vunpack.c.h.b16 %v2165
  %v2639 = vunpack.c.l.b16 %v2166
  %v2640 = vunpack.c.l.b16 %v2167
  %v2641 = vunpack.c.h.b16 %v2167
  %v2642 = vunpack.c.l.b16 %v2168
  %v2643 = vunpack.c.h.b16 %v2168
  %v2644 = vunpack.c.l.b16 %v2169
  %v2645 = vunpack.c.h.b16 %v2169
  %v2646 = vunpack.c.l.b16 %v2170
  %v2647 = vunpack.c.h.b16 %v2170
  %v2648 = vunpack.c.l.b16 %v2171
  %v2649 = vunpack.c.h.b16 %v2171
  %v2650 = vunpack.c.l.b16 %v2172
  %v2651 = vunpack.c.h.b16 %v2172
  %v2652 = vunpack.c.l.b16 %v2173
  %v2653 = vunpack.c.h.b16 %v2173
  %v2654 = vunpack.c.l.b16 %v2174
  %v2655 = vunpack.c.h.b16 %v2174
  %v2656 = vunpack.c.l.b16 %v2175
  %v2657 = vunpack.c.h.b16 %v2175
  %v2658 = vunpack.c.l.b16 %v2176
  %v2659 = vunpack.c.l.b16 %v2177
  %v2660 = vunpack.c.h.b16 %v2177
  %v2661 = vunpack.c.l.b16 %v2178
  %v2662 = vunpack.c.h.b16 %v2178
  %v2663 = vunpack.c.l.b16 %v2179
  %v2664 = vunpack.c.h.b16 %v2179
  %v2665 = vunpack.c.l.b16 %v2180
  %v2666 = vunpack.c.h.b16 %v2180
  %v2667 = vunpack.c.l.b16 %v2181
  %v2668 = vunpack.c.h.b16 %v2181
  %v2669 = vunpack.c.l.b16 %v2182
  %v2670 = vunpack.c.h.b16 %v2182
  %v2671 = vunpack.c.l.b16 %v2183
  %v2672 = vunpack.c.h.b16 %v2183
  %v2673 = vunpack.c.l.b16 %v2184
  %v2674 = vunpack.c.h.b16 %v2184
  %v2675 = vunpack.c.l.b16 %v2185
  %v2676 = vunpack.c.h.b16 %v2185
  %v2677 = vunpack.c.l.b16 %v2186
  %v2678 = vunpack.c.l.b16 %v2187
  %v2679 = vunpack.c.h.b16 %v2187
  %v2680 = vunpack.c.l.b16 %v2188
  %v2681 = vunpack.c.h.b16 %v2188
  %v2682 = vunpack.c.l.b16 %v2189
  %v2683 = vunpack.c.h.b16 %v2189
  %v2684 = vunpack.c.l.b16 %v2190
  %v2685 = vunpack.c.h.b16 %v2190
  %v2686 = vunpack.c.l.b16 %v2191
  %v2687 = vunpack.c.h.b16 %v2191
  %v2688 = vunpack.c.l.b16 %v2192
  %v2689 = vunpack.c.h.b16 %v2192
  %v2690 = vunpack.c.l.b16 %v2193
  %v2691 = vunpack.c.h.b16 %v2193
  %v2692 = vunpack.c.l.b16 %v2194
  %v2693 = vunpack.c.h.b16 %v2194
  %v2694 = vunpack.c.l.b16 %v2195
  %v2695 = vunpack.c.h.b16 %v2195
  %v2696 = vunpack.c.l.b16 %v2196
  %v2697 = vunpack.c.l.b16 %v2197
  %v2698 = vunpack.c.h.b16 %v2197
  %v2699 = vunpack.c.l.b16 %v2198
  %v2700 = vunpack.c.h.b16 %v2198
  %v2701 = vunpack.c.l.b16 %v2199
  %v2702 = vunpack.c.h.b16 %v2199
  %v2703 = vunpack.c.l.b16 %v2200
  %v2704 = vunpack.c.h.b16 %v2200
  %v2705 = vunpack.c.l.b16 %v2201
  %v2706 = vunpack.c.h.b16 %v2201
  %v2707 = vunpack.c.l.b16 %v2202
  %v2708 = vunpack.c.h.b16 %v2202
  %v2709 = vunpack.c.l.b16 %v2203
  %v2710 = vunpack.c.h.b16 %v2203
  %v2711 = vunpack.c.l.b16 %v2204
  %v2712 = vunpack.c.h.b16 %v2204
  %v2713 = vunpack.c.l.b16 %v2205
  %v2714 = vunpack.c.h.b16 %v2205
  %v2715 = vunpack.c.l.b16 %v2206
  %v2716 = vpack.c.b16 %v2431, %v2412
  %v2717 = vpack.c.b16 %v2432, %v2413
  %v2718 = vpack.c.b16 %v2433, %v2414
  %v2719 = vpack.c.b16 %v2434, %v2415
  %v2720 = vpack.c.b16 %v2435, %v2416
  %v2721 = vpack.c.b16 %v2436, %v2417
  %v2722 = vpack.c.b16 %v2437, %v2418
  %v2723 = vpack.c.b16 %v2438, %v2419
  %v2724 = vpack.c.b16 %v2439, %v2420
  %v2725 = vpack.c.b16 %v2440, %v2421
  %v2726 = vpack.c.b16 %v2441, %v2422
  %v2727 = vpack.c.b16 %v2442, %v2423
  %v2728 = vpack.c.b16 %v2443, %v2424
  %v2729 = vpack.c.b16 %v2444, %v2425
  %v2730 = vpack.c.b16 %v2445, %v2426
  %v2731 = vpack.c.b16 %v2446, %v2427
  %v2732 = vpack.c.b16 %v2447, %v2428
  %v2733 = vpack.c.b16 %v2448, %v2429
  %v2734 = vpack.c.b16 %v2449, %v2430
  %v2735 = vpack.c.b16 %v2469, %v2450
  %v2736 = vpack.c.b16 %v2470, %v2451
  %v2737 = vpack.c.b16 %v2471, %v2452
  %v2738 = vpack.c.b16 %v2472, %v2453
  %v2739 = vpack.c.b16 %v2473, %v2454
  %v2740 = vpack.c.b16 %v2474, %v2455
  %v2741 = vpack.c.b16 %v2475, %v2456
  %v2742 = vpack.c.b16 %v2476, %v2457
  %v2743 = vpack.c.b16 %v2477, %v2458
  %v2744 = vpack.c.b16 %v2478, %v2459
  %v2745 = vpack.c.b16 %v2479, %v2460
  %v2746 = vpack.c.b16 %v2480, %v2461
  %v2747 = vpack.c.b16 %v2481, %v2462
  %v2748 = vpack.c.b16 %v2482, %v2463
  %v2749 = vpack.c.b16 %v2483, %v2464
  %v2750 = vpack.c.b16 %v2484, %v2465
  %v2751 = vpack.c.b16 %v2485, %v2466
  %v2752 = vpack.c.b16 %v2486, %v2467
  %v2753 = vpack.c.b16 %v2487, %v2468
  %v2754 = vpack.c.b16 %v2507, %v2488
  %v2755 = vpack.c.b16 %v2508, %v2489
  %v2756 = vpack.c.b16 %v2509, %v2490
  %v2757 = vpack.c.b16 %v2510, %v2491
  %v2758 = vpack.c.b16 %v2511, %v2492
  %v2759 = vpack.c.b16 %v2512, %v2493
  %v2760 = vpack.c.b16 %v2513, %v2494
  %v2761 = vpack.c.b16 %v2514, %v2495
  %v2762 = vpack.c.b16 %v2515, %v2496
  %v2763 = vpack.c.b16 %v2516, %v2497
  %v2764 = vpack.c.b16 %v2517, %v2498
  %v2765 = vpack.c.b16 %v2518, %v2499
  %v2766 = vpack.c.b16 %v2519, %v2500
  %v2767 = vpack.c.b16 %v2520, %v2501
  %v2768 = vpack.c.b16 %v2521, %v2502
  %v2769 = vpack.c.b16 %v2522, %v2503
  %v2770 = vpack.c.b16 %v2523, %v2504
  %v2771 = vpack.c.b16 %v2524, %v2505
  %v2772 = vpack.c.b16 %v2525, %v2506
  %v2773 = vpack.c.b16 %v2545, %v2526
  %v2774 = vpack.c.b16 %v2546, %v2527
  %v2775 = vpack.c.b16 %v2547, %v2528
  %v2776 = vpack.c.b16 %v2548, %v2529
  %v2777 = vpack.c.b16 %v2549, %v2530
  %v2778 = vpack.c.b16 %v2550, %v2531
  %v2779 = vpack.c.b16 %v2551, %v2532
  %v2780 = vpack.c.b16 %v2552, %v2533
  %v2781 = vpack.c.b16 %v2553, %v2534
  %v2782 = vpack.c.b16 %v2554, %v2535
  %v2783 = vpack.c.b16 %v2555, %v2536
  %v2784 = vpack.c.b16 %v2556, %v2537
  %v2785 = vpack.c.b16 %v2557, %v2538
  %v2786 = vpack.c.b16 %v2558, %v2539
  %v2787 = vpack.c.b16 %v2559, %v2540
  %v2788 = vpack.c.b16 %v2560, %v2541
  %v2789 = vpack.c.b16 %v2561, %v2542
  %v2790 = vpack.c.b16 %v2562, %v2543
  %v2791 = vpack.c.b16 %v2563, %v2544
  %v2792 = vpack.c.b16 %v2583, %v2564
  %v2793 = vpack.c.b16 %v2584, %v2565
  %v2794 = vpack.c.b16 %v2585, %v2566
  %v2795 = vpack.c.b16 %v2586, %v2567
  %v2796 = vpack.c.b16 %v2587, %v2568
  %v2797 = vpack.c.b16 %v2588, %v2569
  %v2798 = vpack.c.b16 %v2589, %v2570
  %v2799 = vpack.c.b16 %v2590, %v2571
  %v2800 = vpack.c.b16 %v2591, %v2572
  %v2801 = vpack.c.b16 %v2592, %v2573
  %v2802 = vpack.c.b16 %v2593, %v2574
  %v2803 = vpack.c.b16 %v2594, %v2575
  %v2804 = vpack.c.b16 %v2595, %v2576
  %v2805 = vpack.c.b16 %v2596, %v2577
  %v2806 = vpack.c.b16 %v2597, %v2578
  %v2807 = vpack.c.b16 %v2598, %v2579
  %v2808 = vpack.c.b16 %v2599, %v2580
  %v2809 = vpack.c.b16 %v2600, %v2581
  %v2810 = vpack.c.b16 %v2601, %v2582
  %v2811 = vpack.c.b16 %v2621, %v2602
  %v2812 = vpack.c.b16 %v2622, %v2603
  %v2813 = vpack.c.b16 %v2623, %v2604
  %v2814 = vpack.c.b16 %v2624, %v2605
  %v2815 = vpack.c.b16 %v2625, %v2606
  %v2816 = vpack.c.b16 %v2626, %v2607
  %v2817 = vpack.c.b16 %v2627, %v2608
  %v2818 = vpack.c.b16 %v2628, %v2609
  %v2819 = vpack.c.b16 %v2629, %v2610
  %v2820 = vpack.c.b16 %v2630, %v2611
  %v2821 = vpack.c.b16 %v2631, %v2612
  %v2822 = vpack.c.b16 %v2632, %v2613
  %v2823 = vpack.c.b16 %v2633, %v2614
  %v2824 = vpack.c.b16 %v2634, %v2615
  %v2825 = vpack.c.b16 %v2635, %v2616
  %v2826 = vpack.c.b16 %v2636, %v2617
  %v2827 = vpack.c.b16 %v2637, %v2618
  %v2828 = vpack.c.b16 %v2638, %v2619
  %v2829 = vpack.c.b16 %v2639, %v2620
  %v2830 = vpack.c.b16 %v2659, %v2640
  %v2831 = vpack.c.b16 %v2660, %v2641
  %v2832 = vpack.c.b16 %v2661, %v2642
  %v2833 = vpack.c.b16 %v2662, %v2643
  %v2834 = vpack.c.b16 %v2663, %v2644
  %v2835 = vpack.c.b16 %v2664, %v2645
  %v2836 = vpack.c.b16 %v2665, %v2646
  %v2837 = vpack.c.b16 %v2666, %v2647
  %v2838 = vpack.c.b16 %v2667, %v2648
  %v2839 = vpack.c.b16 %v2668, %v2649
  %v2840 = vpack.c.b16 %v2669, %v2650
  %v2841 = vpack.c.b16 %v2670, %v2651
  %v2842 = vpack.c.b16 %v2671, %v2652
  %v2843 = vpack.c.b16 %v2672, %v2653
  %v2844 = vpack.c.b16 %v2673, %v2654
  %v2845 = vpack.c.b16 %v2674, %v2655
  %v2846 = vpack.c.b16 %v2675, %v2656
  %v2847 = vpack.c.b16 %v2676, %v2657
  %v2848 = vpack.c.b16 %v2677, %v2658
  %v2849 = vpack.c.b16 %v2697, %v2678
  %v2850 = vpack.c.b16 %v2698, %v2679
  %v2851 = vpack.c.b16 %v2699, %v2680
  %v2852 = vpack.c.b16 %v2700, %v2681
  %v2853 = vpack.c.b16 %v2701, %v2682
  %v2854 = vpack.c.b16 %v2702, %v2683
  %v2855 = vpack.c.b16 %v2703, %v2684
  %v2856 = vpack.c.b16 %v2704, %v2685
  %v2857 = vpack.c.b16 %v2705, %v2686
  %v2858 = vpack.c.b16 %v2706, %v2687
  %v2859 = vpack.c.b16 %v2707, %v2688
  %v2860 = vpack.c.b16 %v2708, %v2689
  %v2861 = vpack.c.b16 %v2709, %v2690
  %v2862 = vpack.c.b16 %v2710, %v2691
  %v2863 = vpack.c.b16 %v2711, %v2692
  %v2864 = vpack.c.b16 %v2712, %v2693
  %v2865 = vpack.c.b16 %v2713, %v2694
  %v2866 = vpack.c.b16 %v2714, %v2695
  %v2867 = vpack.c.b16 %v2715, %v2696
  %3020 = vmatpush.bf16.msra.mxu0 %v2849
  %3021 = vmatpush.bf16.msra.mxu0 %v2830
  %3022 = vmatpush.bf16.msra.mxu0 %v2811
  %3023 = vmatpush.bf16.msra.mxu0 %v2792
  %3024 = vmatpush.bf16.msra.mxu0 %v2773
  %3025 = vmatpush.bf16.msra.mxu0 %v2754
  %3026 = vmatpush.bf16.msra.mxu0 %v2735
  %3027 = vmatpush.bf16.msra.mxu0 %v2716
  %3028 = vmatmul.bf16.gmra.mxu0 %v2210
  %v3029 = vpop.f32.mrf.mxu0
  %v3030 = vadd.f32 %v2214, %v3029
  %v3031 = vpop.f32.mrf.mxu0
  %v3032 = vadd.f32 %v2214, %v3031
  %3033 = vdwg.mxu0
  %3034 = vmatpush.bf16.msra.mxu0 %v2850
  %3035 = vmatpush.bf16.msra.mxu0 %v2831
  %3036 = vmatpush.bf16.msra.mxu0 %v2812
  %3037 = vmatpush.bf16.msra.mxu0 %v2793
  %3038 = vmatpush.bf16.msra.mxu0 %v2774
  %3039 = vmatpush.bf16.msra.mxu0 %v2755
  %3040 = vmatpush.bf16.msra.mxu0 %v2736
  %3041 = vmatpush.bf16.msra.mxu0 %v2717
  %3042 = vmatmul.bf16.gmra.mxu0 %v2210
  %v3043 = vpop.f32.mrf.mxu0
  %v3044 = vadd.f32 %v2215, %v3043
  %v3045 = vpop.f32.mrf.mxu0
  %v3046 = vadd.f32 %v2215, %v3045
  %3047 = vdwg.mxu0
  %3048 = vmatpush.bf16.msra.mxu0 %v2851
  %3049 = vmatpush.bf16.msra.mxu0 %v2832
  %3050 = vmatpush.bf16.msra.mxu0 %v2813
  %3051 = vmatpush.bf16.msra.mxu0 %v2794
  %3052 = vmatpush.bf16.msra.mxu0 %v2775
  %3053 = vmatpush.bf16.msra.mxu0 %v2756
  %3054 = vmatpush.bf16.msra.mxu0 %v2737
  %3055 = vmatpush.bf16.msra.mxu0 %v2718
  %3056 = vmatmul.bf16.gmra.mxu0 %v2210
  %v3057 = vpop.f32.mrf.mxu0
  %v3058 = vadd.f32 %v2216, %v3057
  %v3059 = vpop.f32.mrf.mxu0
  %v3060 = vadd.f32 %v2216, %v3059
  %3061 = vdwg.mxu0
  %3062 = vmatpush.bf16.msra.mxu0 %v2852
  %3063 = vmatpush.bf16.msra.mxu0 %v2833
  %3064 = vmatpush.bf16.msra.mxu0 %v2814
  %3065 = vmatpush.bf16.msra.mxu0 %v2795
  %3066 = vmatpush.bf16.msra.mxu0 %v2776
  %3067 = vmatpush.bf16.msra.mxu0 %v2757
  %3068 = vmatpush.bf16.msra.mxu0 %v2738
  %3069 = vmatpush.bf16.msra.mxu0 %v2719
  %3070 = vmatmul.bf16.gmra.mxu0 %v2210
  %v3071 = vpop.f32.mrf.mxu0
  %v3072 = vadd.f32 %v2217, %v3071
  %v3073 = vpop.f32.mrf.mxu0
  %v3074 = vadd.f32 %v2217, %v3073
  %3075 = vdwg.mxu0
  %3076 = vmatpush.bf16.msra.mxu0 %v2853
  %3077 = vmatpush.bf16.msra.mxu0 %v2834
  %3078 = vmatpush.bf16.msra.mxu0 %v2815
  %3079 = vmatpush.bf16.msra.mxu0 %v2796
  %3080 = vmatpush.bf16.msra.mxu0 %v2777
  %3081 = vmatpush.bf16.msra.mxu0 %v2758
  %3082 = vmatpush.bf16.msra.mxu0 %v2739
  %3083 = vmatpush.bf16.msra.mxu0 %v2720
  %3084 = vmatmul.bf16.gmra.mxu0 %v2210
  %v3085 = vpop.f32.mrf.mxu0
  %v3086 = vadd.f32 %v2218, %v3085
  %v3087 = vpop.f32.mrf.mxu0
  %v3088 = vadd.f32 %v2218, %v3087
  %3089 = vdwg.mxu0
  %3090 = vmatpush.bf16.msra.mxu0 %v2854
  %3091 = vmatpush.bf16.msra.mxu0 %v2835
  %3092 = vmatpush.bf16.msra.mxu0 %v2816
  %3093 = vmatpush.bf16.msra.mxu0 %v2797
  %3094 = vmatpush.bf16.msra.mxu0 %v2778
  %3095 = vmatpush.bf16.msra.mxu0 %v2759
  %3096 = vmatpush.bf16.msra.mxu0 %v2740
  %3097 = vmatpush.bf16.msra.mxu0 %v2721
  %3098 = vmatmul.bf16.gmra.mxu0 %v2210
  %v3099 = vpop.f32.mrf.mxu0
  %v3100 = vadd.f32 %v2219, %v3099
  %v3101 = vpop.f32.mrf.mxu0
  %v3102 = vadd.f32 %v2219, %v3101
  %3103 = vdwg.mxu0
  %3104 = vmatpush.bf16.msra.mxu0 %v2855
  %3105 = vmatpush.bf16.msra.mxu0 %v2836
  %3106 = vmatpush.bf16.msra.mxu0 %v2817
  %3107 = vmatpush.bf16.msra.mxu0 %v2798
  %3108 = vmatpush.bf16.msra.mxu0 %v2779
  %3109 = vmatpush.bf16.msra.mxu0 %v2760
  %3110 = vmatpush.bf16.msra.mxu0 %v2741
  %3111 = vmatpush.bf16.msra.mxu0 %v2722
  %3112 = vmatmul.bf16.gmra.mxu0 %v2210
  %v3113 = vpop.f32.mrf.mxu0
  %v3114 = vadd.f32 %v2220, %v3113
  %v3115 = vpop.f32.mrf.mxu0
  %v3116 = vadd.f32 %v2220, %v3115
  %3117 = vdwg.mxu0
  %3118 = vmatpush.bf16.msra.mxu0 %v2856
  %3119 = vmatpush.bf16.msra.mxu0 %v2837
  %3120 = vmatpush.bf16.msra.mxu0 %v2818
  %3121 = vmatpush.bf16.msra.mxu0 %v2799
  %3122 = vmatpush.bf16.msra.mxu0 %v2780
  %3123 = vmatpush.bf16.msra.mxu0 %v2761
  %3124 = vmatpush.bf16.msra.mxu0 %v2742
  %3125 = vmatpush.bf16.msra.mxu0 %v2723
  %3126 = vmatmul.bf16.gmra.mxu0 %v2210
  %v3127 = vpop.f32.mrf.mxu0
  %v3128 = vadd.f32 %v2221, %v3127
  %v3129 = vpop.f32.mrf.mxu0
  %v3130 = vadd.f32 %v2221, %v3129
  %3131 = vdwg.mxu0
  %3132 = vmatpush.bf16.msra.mxu0 %v2857
  %3133 = vmatpush.bf16.msra.mxu0 %v2838
  %3134 = vmatpush.bf16.msra.mxu0 %v2819
  %3135 = vmatpush.bf16.msra.mxu0 %v2800
  %3136 = vmatpush.bf16.msra.mxu0 %v2781
  %3137 = vmatpush.bf16.msra.mxu0 %v2762
  %3138 = vmatpush.bf16.msra.mxu0 %v2743
  %3139 = vmatpush.bf16.msra.mxu0 %v2724
  %3140 = vmatmul.bf16.gmra.mxu0 %v2210
  %v3141 = vpop.f32.mrf.mxu0
  %v3142 = vadd.f32 %v2222, %v3141
  %v3143 = vpop.f32.mrf.mxu0
  %v3144 = vadd.f32 %v2222, %v3143
  %3145 = vdwg.mxu0
  %3146 = vmatpush.bf16.msra.mxu0 %v2858
  %3147 = vmatpush.bf16.msra.mxu0 %v2839
  %3148 = vmatpush.bf16.msra.mxu0 %v2820
  %3149 = vmatpush.bf16.msra.mxu0 %v2801
  %3150 = vmatpush.bf16.msra.mxu0 %v2782
  %3151 = vmatpush.bf16.msra.mxu0 %v2763
  %3152 = vmatpush.bf16.msra.mxu0 %v2744
  %3153 = vmatpush.bf16.msra.mxu0 %v2725
  %3154 = vmatmul.bf16.gmra.mxu0 %v2210
  %v3155 = vpop.f32.mrf.mxu0
  %v3156 = vadd.f32 %v2223, %v3155
  %v3157 = vpop.f32.mrf.mxu0
  %v3158 = vadd.f32 %v2223, %v3157
  %3159 = vdwg.mxu0
  %3160 = vmatpush.bf16.msra.mxu0 %v2859
  %3161 = vmatpush.bf16.msra.mxu0 %v2840
  %3162 = vmatpush.bf16.msra.mxu0 %v2821
  %3163 = vmatpush.bf16.msra.mxu0 %v2802
  %3164 = vmatpush.bf16.msra.mxu0 %v2783
  %3165 = vmatpush.bf16.msra.mxu0 %v2764
  %3166 = vmatpush.bf16.msra.mxu0 %v2745
  %3167 = vmatpush.bf16.msra.mxu0 %v2726
  %3168 = vmatmul.bf16.gmra.mxu0 %v2210
  %v3169 = vpop.f32.mrf.mxu0
  %v3170 = vadd.f32 %v2224, %v3169
  %v3171 = vpop.f32.mrf.mxu0
  %v3172 = vadd.f32 %v2224, %v3171
  %3173 = vdwg.mxu0
  %3174 = vmatpush.bf16.msra.mxu0 %v2860
  %3175 = vmatpush.bf16.msra.mxu0 %v2841
  %3176 = vmatpush.bf16.msra.mxu0 %v2822
  %3177 = vmatpush.bf16.msra.mxu0 %v2803
  %3178 = vmatpush.bf16.msra.mxu0 %v2784
  %3179 = vmatpush.bf16.msra.mxu0 %v2765
  %3180 = vmatpush.bf16.msra.mxu0 %v2746
  %3181 = vmatpush.bf16.msra.mxu0 %v2727
  %3182 = vmatmul.bf16.gmra.mxu0 %v2210
  %v3183 = vpop.f32.mrf.mxu0
  %v3184 = vadd.f32 %v2225, %v3183
  %v3185 = vpop.f32.mrf.mxu0
  %v3186 = vadd.f32 %v2225, %v3185
  %3187 = vdwg.mxu0
  %3188 = vmatpush.bf16.msra.mxu0 %v2861
  %3189 = vmatpush.bf16.msra.mxu0 %v2842
  %3190 = vmatpush.bf16.msra.mxu0 %v2823
  %3191 = vmatpush.bf16.msra.mxu0 %v2804
  %3192 = vmatpush.bf16.msra.mxu0 %v2785
  %3193 = vmatpush.bf16.msra.mxu0 %v2766
  %3194 = vmatpush.bf16.msra.mxu0 %v2747
  %3195 = vmatpush.bf16.msra.mxu0 %v2728
  %3196 = vmatmul.bf16.gmra.mxu0 %v2210
  %v3197 = vpop.f32.mrf.mxu0
  %v3198 = vadd.f32 %v2226, %v3197
  %v3199 = vpop.f32.mrf.mxu0
  %v3200 = vadd.f32 %v2226, %v3199
  %3201 = vdwg.mxu0
  %3202 = vmatpush.bf16.msra.mxu0 %v2862
  %3203 = vmatpush.bf16.msra.mxu0 %v2843
  %3204 = vmatpush.bf16.msra.mxu0 %v2824
  %3205 = vmatpush.bf16.msra.mxu0 %v2805
  %3206 = vmatpush.bf16.msra.mxu0 %v2786
  %3207 = vmatpush.bf16.msra.mxu0 %v2767
  %3208 = vmatpush.bf16.msra.mxu0 %v2748
  %3209 = vmatpush.bf16.msra.mxu0 %v2729
  %3210 = vmatmul.bf16.gmra.mxu0 %v2210
  %v3211 = vpop.f32.mrf.mxu0
  %v3212 = vadd.f32 %v2227, %v3211
  %v3213 = vpop.f32.mrf.mxu0
  %v3214 = vadd.f32 %v2227, %v3213
  %3215 = vdwg.mxu0
  %3216 = vmatpush.bf16.msra.mxu0 %v2863
  %3217 = vmatpush.bf16.msra.mxu0 %v2844
  %3218 = vmatpush.bf16.msra.mxu0 %v2825
  %3219 = vmatpush.bf16.msra.mxu0 %v2806
  %3220 = vmatpush.bf16.msra.mxu0 %v2787
  %3221 = vmatpush.bf16.msra.mxu0 %v2768
  %3222 = vmatpush.bf16.msra.mxu0 %v2749
  %3223 = vmatpush.bf16.msra.mxu0 %v2730
  %3224 = vmatmul.bf16.gmra.mxu0 %v2210
  %v3225 = vpop.f32.mrf.mxu0
  %v3226 = vadd.f32 %v2228, %v3225
  %v3227 = vpop.f32.mrf.mxu0
  %v3228 = vadd.f32 %v2228, %v3227
  %3229 = vdwg.mxu0
  %3230 = vmatpush.bf16.msra.mxu0 %v2864
  %3231 = vmatpush.bf16.msra.mxu0 %v2845
  %3232 = vmatpush.bf16.msra.mxu0 %v2826
  %3233 = vmatpush.bf16.msra.mxu0 %v2807
  %3234 = vmatpush.bf16.msra.mxu0 %v2788
  %3235 = vmatpush.bf16.msra.mxu0 %v2769
  %3236 = vmatpush.bf16.msra.mxu0 %v2750
  %3237 = vmatpush.bf16.msra.mxu0 %v2731
  %3238 = vmatmul.bf16.gmra.mxu0 %v2210
  %v3239 = vpop.f32.mrf.mxu0
  %v3240 = vadd.f32 %v2229, %v3239
  %v3241 = vpop.f32.mrf.mxu0
  %v3242 = vadd.f32 %v2229, %v3241
  %3243 = vdwg.mxu0
  %3244 = vmatpush.bf16.msra.mxu0 %v2865
  %3245 = vmatpush.bf16.msra.mxu0 %v2846
  %3246 = vmatpush.bf16.msra.mxu0 %v2827
  %3247 = vmatpush.bf16.msra.mxu0 %v2808
  %3248 = vmatpush.bf16.msra.mxu0 %v2789
  %3249 = vmatpush.bf16.msra.mxu0 %v2770
  %3250 = vmatpush.bf16.msra.mxu0 %v2751
  %3251 = vmatpush.bf16.msra.mxu0 %v2732
  %3252 = vmatmul.bf16.gmra.mxu0 %v2210
  %v3253 = vpop.f32.mrf.mxu0
  %v3254 = vadd.f32 %v2230, %v3253
  %v3255 = vpop.f32.mrf.mxu0
  %v3256 = vadd.f32 %v2230, %v3255
  %3257 = vdwg.mxu0
  %3258 = vmatpush.bf16.msra.mxu0 %v2866
  %3259 = vmatpush.bf16.msra.mxu0 %v2847
  %3260 = vmatpush.bf16.msra.mxu0 %v2828
  %3261 = vmatpush.bf16.msra.mxu0 %v2809
  %3262 = vmatpush.bf16.msra.mxu0 %v2790
  %3263 = vmatpush.bf16.msra.mxu0 %v2771
  %3264 = vmatpush.bf16.msra.mxu0 %v2752
  %3265 = vmatpush.bf16.msra.mxu0 %v2733
  %3266 = vmatmul.bf16.gmra.mxu0 %v2210
  %v3267 = vpop.f32.mrf.mxu0
  %v3268 = vadd.f32 %v2231, %v3267
  %v3269 = vpop.f32.mrf.mxu0
  %v3270 = vadd.f32 %v2231, %v3269
  %3271 = vdwg.mxu0
  %3272 = vmatpush.bf16.msra.mxu0 %v2867
  %3273 = vmatpush.bf16.msra.mxu0 %v2848
  %3274 = vmatpush.bf16.msra.mxu0 %v2829
  %3275 = vmatpush.bf16.msra.mxu0 %v2810
  %3276 = vmatpush.bf16.msra.mxu0 %v2791
  %3277 = vmatpush.bf16.msra.mxu0 %v2772
  %3278 = vmatpush.bf16.msra.mxu0 %v2753
  %3279 = vmatpush.bf16.msra.mxu0 %v2734
  %3280 = vmatmul.bf16.gmra.mxu0 %v2210
  %v3281 = vpop.f32.mrf.mxu0
  %v3282 = vadd.f32 %v2232, %v3281
  %v3283 = vpop.f32.mrf.mxu0
  %v3284 = vadd.f32 %v2232, %v3283
  %3285 = vdwg.mxu0
  %v3286 = vxor.u32 %v3030, 2147483648
  %v3287 = vxor.u32 %v3044, 2147483648
  %v3288 = vxor.u32 %v3058, 2147483648
  %v3289 = vxor.u32 %v3072, 2147483648
  %v3290 = vxor.u32 %v3086, 2147483648
  %v3291 = vxor.u32 %v3100, 2147483648
  %v3292 = vxor.u32 %v3114, 2147483648
  %v3293 = vxor.u32 %v3128, 2147483648
  %v3294 = vxor.u32 %v3142, 2147483648
  %v3295 = vxor.u32 %v3156, 2147483648
  %v3296 = vxor.u32 %v3170, 2147483648
  %v3297 = vxor.u32 %v3184, 2147483648
  %v3298 = vxor.u32 %v3198, 2147483648
  %v3299 = vxor.u32 %v3212, 2147483648
  %v3300 = vxor.u32 %v3226, 2147483648
  %v3301 = vxor.u32 %v3240, 2147483648
  %v3302 = vxor.u32 %v3254, 2147483648
  %v3303 = vxor.u32 %v3268, 2147483648
  %v3304 = vxor.u32 %v3282, 2147483648
  %v3305 = vxor.u32 %v3032, 2147483648
  %v3306 = vxor.u32 %v3046, 2147483648
  %v3307 = vxor.u32 %v3060, 2147483648
  %v3308 = vxor.u32 %v3074, 2147483648
  %v3309 = vxor.u32 %v3088, 2147483648
  %v3310 = vxor.u32 %v3102, 2147483648
  %v3311 = vxor.u32 %v3116, 2147483648
  %v3312 = vxor.u32 %v3130, 2147483648
  %v3313 = vxor.u32 %v3144, 2147483648
  %v3314 = vxor.u32 %v3158, 2147483648
  %v3315 = vxor.u32 %v3172, 2147483648
  %v3316 = vxor.u32 %v3186, 2147483648
  %v3317 = vxor.u32 %v3200, 2147483648
  %v3318 = vxor.u32 %v3214, 2147483648
  %v3319 = vxor.u32 %v3228, 2147483648
  %v3320 = vxor.u32 %v3242, 2147483648
  %v3321 = vxor.u32 %v3256, 2147483648
  %v3322 = vxor.u32 %v3270, 2147483648
  %v3323 = vxor.u32 %v3284, 2147483648
  %v3324 = vmul.f32 %v3286, 1.442695
  %v3325 = vpow.pop %v3324
  %v3326 = vmul.f32 %v3287, 1.442695
  %v3327 = vpow.pop %v3326
  %v3328 = vmul.f32 %v3288, 1.442695
  %v3329 = vpow.pop %v3328
  %v3330 = vmul.f32 %v3289, 1.442695
  %v3331 = vpow.pop %v3330
  %v3332 = vmul.f32 %v3290, 1.442695
  %v3333 = vpow.pop %v3332
  %v3334 = vmul.f32 %v3291, 1.442695
  %v3335 = vpow.pop %v3334
  %v3336 = vmul.f32 %v3292, 1.442695
  %v3337 = vpow.pop %v3336
  %v3338 = vmul.f32 %v3293, 1.442695
  %v3339 = vpow.pop %v3338
  %v3340 = vmul.f32 %v3294, 1.442695
  %v3341 = vpow.pop %v3340
  %v3342 = vmul.f32 %v3295, 1.442695
  %v3343 = vpow.pop %v3342
  %v3344 = vmul.f32 %v3296, 1.442695
  %v3345 = vpow.pop %v3344
  %v3346 = vmul.f32 %v3297, 1.442695
  %v3347 = vpow.pop %v3346
  %v3348 = vmul.f32 %v3298, 1.442695
  %v3349 = vpow.pop %v3348
  %v3350 = vmul.f32 %v3299, 1.442695
  %v3351 = vpow.pop %v3350
  %v3352 = vmul.f32 %v3300, 1.442695
  %v3353 = vpow.pop %v3352
  %v3354 = vmul.f32 %v3301, 1.442695
  %v3355 = vpow.pop %v3354
  %v3356 = vmul.f32 %v3302, 1.442695
  %v3357 = vpow.pop %v3356
  %v3358 = vmul.f32 %v3303, 1.442695
  %v3359 = vpow.pop %v3358
  %v3360 = vmul.f32 %v3304, 1.442695
  %v3361 = vpow.pop %v3360
  %v3362 = vmul.f32 %v3305, 1.442695
  %v3363 = vpow.pop %v3362
  %v3364 = vmul.f32 %v3306, 1.442695
  %v3365 = vpow.pop %v3364
  %v3366 = vmul.f32 %v3307, 1.442695
  %v3367 = vpow.pop %v3366
  %v3368 = vmul.f32 %v3308, 1.442695
  %v3369 = vpow.pop %v3368
  %v3370 = vmul.f32 %v3309, 1.442695
  %v3371 = vpow.pop %v3370
  %v3372 = vmul.f32 %v3310, 1.442695
  %v3373 = vpow.pop %v3372
  %v3374 = vmul.f32 %v3311, 1.442695
  %v3375 = vpow.pop %v3374
  %v3376 = vmul.f32 %v3312, 1.442695
  %v3377 = vpow.pop %v3376
  %v3378 = vmul.f32 %v3313, 1.442695
  %v3379 = vpow.pop %v3378
  %v3380 = vmul.f32 %v3314, 1.442695
  %v3381 = vpow.pop %v3380
  %v3382 = vmul.f32 %v3315, 1.442695
  %v3383 = vpow.pop %v3382
  %v3384 = vmul.f32 %v3316, 1.442695
  %v3385 = vpow.pop %v3384
  %v3386 = vmul.f32 %v3317, 1.442695
  %v3387 = vpow.pop %v3386
  %v3388 = vmul.f32 %v3318, 1.442695
  %v3389 = vpow.pop %v3388
  %v3390 = vmul.f32 %v3319, 1.442695
  %v3391 = vpow.pop %v3390
  %v3392 = vmul.f32 %v3320, 1.442695
  %v3393 = vpow.pop %v3392
  %v3394 = vmul.f32 %v3321, 1.442695
  %v3395 = vpow.pop %v3394
  %v3396 = vmul.f32 %v3322, 1.442695
  %v3397 = vpow.pop %v3396
  %v3398 = vmul.f32 %v3323, 1.442695
  %v3399 = vpow.pop %v3398
  %v3400 = vadd.f32 %v3325, 1.0
  %v3401 = vadd.f32 %v3327, 1.0
  %v3402 = vadd.f32 %v3329, 1.0
  %v3403 = vadd.f32 %v3331, 1.0
  %v3404 = vadd.f32 %v3333, 1.0
  %v3405 = vadd.f32 %v3335, 1.0
  %v3406 = vadd.f32 %v3337, 1.0
  %v3407 = vadd.f32 %v3339, 1.0
  %v3408 = vadd.f32 %v3341, 1.0
  %v3409 = vadd.f32 %v3343, 1.0
  %v3410 = vadd.f32 %v3345, 1.0
  %v3411 = vadd.f32 %v3347, 1.0
  %v3412 = vadd.f32 %v3349, 1.0
  %v3413 = vadd.f32 %v3351, 1.0
  %v3414 = vadd.f32 %v3353, 1.0
  %v3415 = vadd.f32 %v3355, 1.0
  %v3416 = vadd.f32 %v3357, 1.0
  %v3417 = vadd.f32 %v3359, 1.0
  %v3418 = vadd.f32 %v3361, 1.0
  %v3419 = vadd.f32 %v3363, 1.0
  %v3420 = vadd.f32 %v3365, 1.0
  %v3421 = vadd.f32 %v3367, 1.0
  %v3422 = vadd.f32 %v3369, 1.0
  %v3423 = vadd.f32 %v3371, 1.0
  %v3424 = vadd.f32 %v3373, 1.0
  %v3425 = vadd.f32 %v3375, 1.0
  %v3426 = vadd.f32 %v3377, 1.0
  %v3427 = vadd.f32 %v3379, 1.0
  %v3428 = vadd.f32 %v3381, 1.0
  %v3429 = vadd.f32 %v3383, 1.0
  %v3430 = vadd.f32 %v3385, 1.0
  %v3431 = vadd.f32 %v3387, 1.0
  %v3432 = vadd.f32 %v3389, 1.0
  %v3433 = vadd.f32 %v3391, 1.0
  %v3434 = vadd.f32 %v3393, 1.0
  %v3435 = vadd.f32 %v3395, 1.0
  %v3436 = vadd.f32 %v3397, 1.0
  %v3437 = vadd.f32 %v3399, 1.0
  %v3438 = vrcp.pop %v3400
  %v3439 = vmul.f32 %v3400, %v3438
  %v3440 = vsub.f32 1.0, %v3439
  %v3441 = vmul.f32 %v3438, %v3440
  %v3442 = vadd.f32 %v3438, %v3441
  %vm3443 = vweird.f32 %v3400
  %vm3444 = vweird.f32 %v3438
  %vm3445 = vmor %vm3443, %vm3444
  %v3446 = vsel %vm3445, %v3438, %v3442
  %v3447 = vand.u32 2147483647, %v3400
  %vm3448 = vcmp.eq.f32.partialorder %v3447, 8.507059e+37
  %v3449 = vand.u32 %v3400, 2147483648
  %v3450 = vor.u32 1.1754944e-38, %v3449
  %v3451 = vsel %vm3448, %v3450, %v3446
  %v3452 = vmul.f32 1.0, %v3451
  %v3453 = vrcp.pop %v3401
  %v3454 = vmul.f32 %v3401, %v3453
  %v3455 = vsub.f32 1.0, %v3454
  %v3456 = vmul.f32 %v3453, %v3455
  %v3457 = vadd.f32 %v3453, %v3456
  %vm3458 = vweird.f32 %v3401
  %vm3459 = vweird.f32 %v3453
  %vm3460 = vmor %vm3458, %vm3459
  %v3461 = vsel %vm3460, %v3453, %v3457
  %v3462 = vand.u32 2147483647, %v3401
  %vm3463 = vcmp.eq.f32.partialorder %v3462, 8.507059e+37
  %v3464 = vand.u32 %v3401, 2147483648
  %v3465 = vor.u32 1.1754944e-38, %v3464
  %v3466 = vsel %vm3463, %v3465, %v3461
  %v3467 = vmul.f32 1.0, %v3466
  %v3468 = vrcp.pop %v3402
  %v3469 = vmul.f32 %v3402, %v3468
  %v3470 = vsub.f32 1.0, %v3469
  %v3471 = vmul.f32 %v3468, %v3470
  %v3472 = vadd.f32 %v3468, %v3471
  %vm3473 = vweird.f32 %v3402
  %vm3474 = vweird.f32 %v3468
  %vm3475 = vmor %vm3473, %vm3474
  %v3476 = vsel %vm3475, %v3468, %v3472
  %v3477 = vand.u32 2147483647, %v3402
  %vm3478 = vcmp.eq.f32.partialorder %v3477, 8.507059e+37
  %v3479 = vand.u32 %v3402, 2147483648
  %v3480 = vor.u32 1.1754944e-38, %v3479
  %v3481 = vsel %vm3478, %v3480, %v3476
  %v3482 = vmul.f32 1.0, %v3481
  %v3483 = vrcp.pop %v3403
  %v3484 = vmul.f32 %v3403, %v3483
  %v3485 = vsub.f32 1.0, %v3484
  %v3486 = vmul.f32 %v3483, %v3485
  %v3487 = vadd.f32 %v3483, %v3486
  %vm3488 = vweird.f32 %v3403
  %vm3489 = vweird.f32 %v3483
  %vm3490 = vmor %vm3488, %vm3489
  %v3491 = vsel %vm3490, %v3483, %v3487
  %v3492 = vand.u32 2147483647, %v3403
  %vm3493 = vcmp.eq.f32.partialorder %v3492, 8.507059e+37
  %v3494 = vand.u32 %v3403, 2147483648
  %v3495 = vor.u32 1.1754944e-38, %v3494
  %v3496 = vsel %vm3493, %v3495, %v3491
  %v3497 = vmul.f32 1.0, %v3496
  %v3498 = vrcp.pop %v3404
  %v3499 = vmul.f32 %v3404, %v3498
  %v3500 = vsub.f32 1.0, %v3499
  %v3501 = vmul.f32 %v3498, %v3500
  %v3502 = vadd.f32 %v3498, %v3501
  %vm3503 = vweird.f32 %v3404
  %vm3504 = vweird.f32 %v3498
  %vm3505 = vmor %vm3503, %vm3504
  %v3506 = vsel %vm3505, %v3498, %v3502
  %v3507 = vand.u32 2147483647, %v3404
  %vm3508 = vcmp.eq.f32.partialorder %v3507, 8.507059e+37
  %v3509 = vand.u32 %v3404, 2147483648
  %v3510 = vor.u32 1.1754944e-38, %v3509
  %v3511 = vsel %vm3508, %v3510, %v3506
  %v3512 = vmul.f32 1.0, %v3511
  %v3513 = vrcp.pop %v3405
  %v3514 = vmul.f32 %v3405, %v3513
  %v3515 = vsub.f32 1.0, %v3514
  %v3516 = vmul.f32 %v3513, %v3515
  %v3517 = vadd.f32 %v3513, %v3516
  %vm3518 = vweird.f32 %v3405
  %vm3519 = vweird.f32 %v3513
  %vm3520 = vmor %vm3518, %vm3519
  %v3521 = vsel %vm3520, %v3513, %v3517
  %v3522 = vand.u32 2147483647, %v3405
  %vm3523 = vcmp.eq.f32.partialorder %v3522, 8.507059e+37
  %v3524 = vand.u32 %v3405, 2147483648
  %v3525 = vor.u32 1.1754944e-38, %v3524
  %v3526 = vsel %vm3523, %v3525, %v3521
  %v3527 = vmul.f32 1.0, %v3526
  %v3528 = vrcp.pop %v3406
  %v3529 = vmul.f32 %v3406, %v3528
  %v3530 = vsub.f32 1.0, %v3529
  %v3531 = vmul.f32 %v3528, %v3530
  %v3532 = vadd.f32 %v3528, %v3531
  %vm3533 = vweird.f32 %v3406
  %vm3534 = vweird.f32 %v3528
  %vm3535 = vmor %vm3533, %vm3534
  %v3536 = vsel %vm3535, %v3528, %v3532
  %v3537 = vand.u32 2147483647, %v3406
  %vm3538 = vcmp.eq.f32.partialorder %v3537, 8.507059e+37
  %v3539 = vand.u32 %v3406, 2147483648
  %v3540 = vor.u32 1.1754944e-38, %v3539
  %v3541 = vsel %vm3538, %v3540, %v3536
  %v3542 = vmul.f32 1.0, %v3541
  %v3543 = vrcp.pop %v3407
  %v3544 = vmul.f32 %v3407, %v3543
  %v3545 = vsub.f32 1.0, %v3544
  %v3546 = vmul.f32 %v3543, %v3545
  %v3547 = vadd.f32 %v3543, %v3546
  %vm3548 = vweird.f32 %v3407
  %vm3549 = vweird.f32 %v3543
  %vm3550 = vmor %vm3548, %vm3549
  %v3551 = vsel %vm3550, %v3543, %v3547
  %v3552 = vand.u32 2147483647, %v3407
  %vm3553 = vcmp.eq.f32.partialorder %v3552, 8.507059e+37
  %v3554 = vand.u32 %v3407, 2147483648
  %v3555 = vor.u32 1.1754944e-38, %v3554
  %v3556 = vsel %vm3553, %v3555, %v3551
  %v3557 = vmul.f32 1.0, %v3556
  %v3558 = vrcp.pop %v3408
  %v3559 = vmul.f32 %v3408, %v3558
  %v3560 = vsub.f32 1.0, %v3559
  %v3561 = vmul.f32 %v3558, %v3560
  %v3562 = vadd.f32 %v3558, %v3561
  %vm3563 = vweird.f32 %v3408
  %vm3564 = vweird.f32 %v3558
  %vm3565 = vmor %vm3563, %vm3564
  %v3566 = vsel %vm3565, %v3558, %v3562
  %v3567 = vand.u32 2147483647, %v3408
  %vm3568 = vcmp.eq.f32.partialorder %v3567, 8.507059e+37
  %v3569 = vand.u32 %v3408, 2147483648
  %v3570 = vor.u32 1.1754944e-38, %v3569
  %v3571 = vsel %vm3568, %v3570, %v3566
  %v3572 = vmul.f32 1.0, %v3571
  %v3573 = vrcp.pop %v3409
  %v3574 = vmul.f32 %v3409, %v3573
  %v3575 = vsub.f32 1.0, %v3574
  %v3576 = vmul.f32 %v3573, %v3575
  %v3577 = vadd.f32 %v3573, %v3576
  %vm3578 = vweird.f32 %v3409
  %vm3579 = vweird.f32 %v3573
  %vm3580 = vmor %vm3578, %vm3579
  %v3581 = vsel %vm3580, %v3573, %v3577
  %v3582 = vand.u32 2147483647, %v3409
  %vm3583 = vcmp.eq.f32.partialorder %v3582, 8.507059e+37
  %v3584 = vand.u32 %v3409, 2147483648
  %v3585 = vor.u32 1.1754944e-38, %v3584
  %v3586 = vsel %vm3583, %v3585, %v3581
  %v3587 = vmul.f32 1.0, %v3586
  %v3588 = vrcp.pop %v3410
  %v3589 = vmul.f32 %v3410, %v3588
  %v3590 = vsub.f32 1.0, %v3589
  %v3591 = vmul.f32 %v3588, %v3590
  %v3592 = vadd.f32 %v3588, %v3591
  %vm3593 = vweird.f32 %v3410
  %vm3594 = vweird.f32 %v3588
  %vm3595 = vmor %vm3593, %vm3594
  %v3596 = vsel %vm3595, %v3588, %v3592
  %v3597 = vand.u32 2147483647, %v3410
  %vm3598 = vcmp.eq.f32.partialorder %v3597, 8.507059e+37
  %v3599 = vand.u32 %v3410, 2147483648
  %v3600 = vor.u32 1.1754944e-38, %v3599
  %v3601 = vsel %vm3598, %v3600, %v3596
  %v3602 = vmul.f32 1.0, %v3601
  %v3603 = vrcp.pop %v3411
  %v3604 = vmul.f32 %v3411, %v3603
  %v3605 = vsub.f32 1.0, %v3604
  %v3606 = vmul.f32 %v3603, %v3605
  %v3607 = vadd.f32 %v3603, %v3606
  %vm3608 = vweird.f32 %v3411
  %vm3609 = vweird.f32 %v3603
  %vm3610 = vmor %vm3608, %vm3609
  %v3611 = vsel %vm3610, %v3603, %v3607
  %v3612 = vand.u32 2147483647, %v3411
  %vm3613 = vcmp.eq.f32.partialorder %v3612, 8.507059e+37
  %v3614 = vand.u32 %v3411, 2147483648
  %v3615 = vor.u32 1.1754944e-38, %v3614
  %v3616 = vsel %vm3613, %v3615, %v3611
  %v3617 = vmul.f32 1.0, %v3616
  %v3618 = vrcp.pop %v3412
  %v3619 = vmul.f32 %v3412, %v3618
  %v3620 = vsub.f32 1.0, %v3619
  %v3621 = vmul.f32 %v3618, %v3620
  %v3622 = vadd.f32 %v3618, %v3621
  %vm3623 = vweird.f32 %v3412
  %vm3624 = vweird.f32 %v3618
  %vm3625 = vmor %vm3623, %vm3624
  %v3626 = vsel %vm3625, %v3618, %v3622
  %v3627 = vand.u32 2147483647, %v3412
  %vm3628 = vcmp.eq.f32.partialorder %v3627, 8.507059e+37
  %v3629 = vand.u32 %v3412, 2147483648
  %v3630 = vor.u32 1.1754944e-38, %v3629
  %v3631 = vsel %vm3628, %v3630, %v3626
  %v3632 = vmul.f32 1.0, %v3631
  %v3633 = vrcp.pop %v3413
  %v3634 = vmul.f32 %v3413, %v3633
  %v3635 = vsub.f32 1.0, %v3634
  %v3636 = vmul.f32 %v3633, %v3635
  %v3637 = vadd.f32 %v3633, %v3636
  %vm3638 = vweird.f32 %v3413
  %vm3639 = vweird.f32 %v3633
  %vm3640 = vmor %vm3638, %vm3639
  %v3641 = vsel %vm3640, %v3633, %v3637
  %v3642 = vand.u32 2147483647, %v3413
  %vm3643 = vcmp.eq.f32.partialorder %v3642, 8.507059e+37
  %v3644 = vand.u32 %v3413, 2147483648
  %v3645 = vor.u32 1.1754944e-38, %v3644
  %v3646 = vsel %vm3643, %v3645, %v3641
  %v3647 = vmul.f32 1.0, %v3646
  %v3648 = vrcp.pop %v3414
  %v3649 = vmul.f32 %v3414, %v3648
  %v3650 = vsub.f32 1.0, %v3649
  %v3651 = vmul.f32 %v3648, %v3650
  %v3652 = vadd.f32 %v3648, %v3651
  %vm3653 = vweird.f32 %v3414
  %vm3654 = vweird.f32 %v3648
  %vm3655 = vmor %vm3653, %vm3654
  %v3656 = vsel %vm3655, %v3648, %v3652
  %v3657 = vand.u32 2147483647, %v3414
  %vm3658 = vcmp.eq.f32.partialorder %v3657, 8.507059e+37
  %v3659 = vand.u32 %v3414, 2147483648
  %v3660 = vor.u32 1.1754944e-38, %v3659
  %v3661 = vsel %vm3658, %v3660, %v3656
  %v3662 = vmul.f32 1.0, %v3661
  %v3663 = vrcp.pop %v3415
  %v3664 = vmul.f32 %v3415, %v3663
  %v3665 = vsub.f32 1.0, %v3664
  %v3666 = vmul.f32 %v3663, %v3665
  %v3667 = vadd.f32 %v3663, %v3666
  %vm3668 = vweird.f32 %v3415
  %vm3669 = vweird.f32 %v3663
  %vm3670 = vmor %vm3668, %vm3669
  %v3671 = vsel %vm3670, %v3663, %v3667
  %v3672 = vand.u32 2147483647, %v3415
  %vm3673 = vcmp.eq.f32.partialorder %v3672, 8.507059e+37
  %v3674 = vand.u32 %v3415, 2147483648
  %v3675 = vor.u32 1.1754944e-38, %v3674
  %v3676 = vsel %vm3673, %v3675, %v3671
  %v3677 = vmul.f32 1.0, %v3676
  %v3678 = vrcp.pop %v3416
  %v3679 = vmul.f32 %v3416, %v3678
  %v3680 = vsub.f32 1.0, %v3679
  %v3681 = vmul.f32 %v3678, %v3680
  %v3682 = vadd.f32 %v3678, %v3681
  %vm3683 = vweird.f32 %v3416
  %vm3684 = vweird.f32 %v3678
  %vm3685 = vmor %vm3683, %vm3684
  %v3686 = vsel %vm3685, %v3678, %v3682
  %v3687 = vand.u32 2147483647, %v3416
  %vm3688 = vcmp.eq.f32.partialorder %v3687, 8.507059e+37
  %v3689 = vand.u32 %v3416, 2147483648
  %v3690 = vor.u32 1.1754944e-38, %v3689
  %v3691 = vsel %vm3688, %v3690, %v3686
  %v3692 = vmul.f32 1.0, %v3691
  %v3693 = vrcp.pop %v3417
  %v3694 = vmul.f32 %v3417, %v3693
  %v3695 = vsub.f32 1.0, %v3694
  %v3696 = vmul.f32 %v3693, %v3695
  %v3697 = vadd.f32 %v3693, %v3696
  %vm3698 = vweird.f32 %v3417
  %vm3699 = vweird.f32 %v3693
  %vm3700 = vmor %vm3698, %vm3699
  %v3701 = vsel %vm3700, %v3693, %v3697
  %v3702 = vand.u32 2147483647, %v3417
  %vm3703 = vcmp.eq.f32.partialorder %v3702, 8.507059e+37
  %v3704 = vand.u32 %v3417, 2147483648
  %v3705 = vor.u32 1.1754944e-38, %v3704
  %v3706 = vsel %vm3703, %v3705, %v3701
  %v3707 = vmul.f32 1.0, %v3706
  %v3708 = vrcp.pop %v3418
  %v3709 = vmul.f32 %v3418, %v3708
  %v3710 = vsub.f32 1.0, %v3709
  %v3711 = vmul.f32 %v3708, %v3710
  %v3712 = vadd.f32 %v3708, %v3711
  %vm3713 = vweird.f32 %v3418
  %vm3714 = vweird.f32 %v3708
  %vm3715 = vmor %vm3713, %vm3714
  %v3716 = vsel %vm3715, %v3708, %v3712
  %v3717 = vand.u32 2147483647, %v3418
  %vm3718 = vcmp.eq.f32.partialorder %v3717, 8.507059e+37
  %v3719 = vand.u32 %v3418, 2147483648
  %v3720 = vor.u32 1.1754944e-38, %v3719
  %v3721 = vsel %vm3718, %v3720, %v3716
  %v3722 = vmul.f32 1.0, %v3721
  %v3723 = vrcp.pop %v3419
  %v3724 = vmul.f32 %v3419, %v3723
  %v3725 = vsub.f32 1.0, %v3724
  %v3726 = vmul.f32 %v3723, %v3725
  %v3727 = vadd.f32 %v3723, %v3726
  %vm3728 = vweird.f32 %v3419
  %vm3729 = vweird.f32 %v3723
  %vm3730 = vmor %vm3728, %vm3729
  %v3731 = vsel %vm3730, %v3723, %v3727
  %v3732 = vand.u32 2147483647, %v3419
  %vm3733 = vcmp.eq.f32.partialorder %v3732, 8.507059e+37
  %v3734 = vand.u32 %v3419, 2147483648
  %v3735 = vor.u32 1.1754944e-38, %v3734
  %v3736 = vsel %vm3733, %v3735, %v3731
  %v3737 = vmul.f32 1.0, %v3736
  %v3738 = vrcp.pop %v3420
  %v3739 = vmul.f32 %v3420, %v3738
  %v3740 = vsub.f32 1.0, %v3739
  %v3741 = vmul.f32 %v3738, %v3740
  %v3742 = vadd.f32 %v3738, %v3741
  %vm3743 = vweird.f32 %v3420
  %vm3744 = vweird.f32 %v3738
  %vm3745 = vmor %vm3743, %vm3744
  %v3746 = vsel %vm3745, %v3738, %v3742
  %v3747 = vand.u32 2147483647, %v3420
  %vm3748 = vcmp.eq.f32.partialorder %v3747, 8.507059e+37
  %v3749 = vand.u32 %v3420, 2147483648
  %v3750 = vor.u32 1.1754944e-38, %v3749
  %v3751 = vsel %vm3748, %v3750, %v3746
  %v3752 = vmul.f32 1.0, %v3751
  %v3753 = vrcp.pop %v3421
  %v3754 = vmul.f32 %v3421, %v3753
  %v3755 = vsub.f32 1.0, %v3754
  %v3756 = vmul.f32 %v3753, %v3755
  %v3757 = vadd.f32 %v3753, %v3756
  %vm3758 = vweird.f32 %v3421
  %vm3759 = vweird.f32 %v3753
  %vm3760 = vmor %vm3758, %vm3759
  %v3761 = vsel %vm3760, %v3753, %v3757
  %v3762 = vand.u32 2147483647, %v3421
  %vm3763 = vcmp.eq.f32.partialorder %v3762, 8.507059e+37
  %v3764 = vand.u32 %v3421, 2147483648
  %v3765 = vor.u32 1.1754944e-38, %v3764
  %v3766 = vsel %vm3763, %v3765, %v3761
  %v3767 = vmul.f32 1.0, %v3766
  %v3768 = vrcp.pop %v3422
  %v3769 = vmul.f32 %v3422, %v3768
  %v3770 = vsub.f32 1.0, %v3769
  %v3771 = vmul.f32 %v3768, %v3770
  %v3772 = vadd.f32 %v3768, %v3771
  %vm3773 = vweird.f32 %v3422
  %vm3774 = vweird.f32 %v3768
  %vm3775 = vmor %vm3773, %vm3774
  %v3776 = vsel %vm3775, %v3768, %v3772
  %v3777 = vand.u32 2147483647, %v3422
  %vm3778 = vcmp.eq.f32.partialorder %v3777, 8.507059e+37
  %v3779 = vand.u32 %v3422, 2147483648
  %v3780 = vor.u32 1.1754944e-38, %v3779
  %v3781 = vsel %vm3778, %v3780, %v3776
  %v3782 = vmul.f32 1.0, %v3781
  %v3783 = vrcp.pop %v3423
  %v3784 = vmul.f32 %v3423, %v3783
  %v3785 = vsub.f32 1.0, %v3784
  %v3786 = vmul.f32 %v3783, %v3785
  %v3787 = vadd.f32 %v3783, %v3786
  %vm3788 = vweird.f32 %v3423
  %vm3789 = vweird.f32 %v3783
  %vm3790 = vmor %vm3788, %vm3789
  %v3791 = vsel %vm3790, %v3783, %v3787
  %v3792 = vand.u32 2147483647, %v3423
  %vm3793 = vcmp.eq.f32.partialorder %v3792, 8.507059e+37
  %v3794 = vand.u32 %v3423, 2147483648
  %v3795 = vor.u32 1.1754944e-38, %v3794
  %v3796 = vsel %vm3793, %v3795, %v3791
  %v3797 = vmul.f32 1.0, %v3796
  %v3798 = vrcp.pop %v3424
  %v3799 = vmul.f32 %v3424, %v3798
  %v3800 = vsub.f32 1.0, %v3799
  %v3801 = vmul.f32 %v3798, %v3800
  %v3802 = vadd.f32 %v3798, %v3801
  %vm3803 = vweird.f32 %v3424
  %vm3804 = vweird.f32 %v3798
  %vm3805 = vmor %vm3803, %vm3804
  %v3806 = vsel %vm3805, %v3798, %v3802
  %v3807 = vand.u32 2147483647, %v3424
  %vm3808 = vcmp.eq.f32.partialorder %v3807, 8.507059e+37
  %v3809 = vand.u32 %v3424, 2147483648
  %v3810 = vor.u32 1.1754944e-38, %v3809
  %v3811 = vsel %vm3808, %v3810, %v3806
  %v3812 = vmul.f32 1.0, %v3811
  %v3813 = vrcp.pop %v3425
  %v3814 = vmul.f32 %v3425, %v3813
  %v3815 = vsub.f32 1.0, %v3814
  %v3816 = vmul.f32 %v3813, %v3815
  %v3817 = vadd.f32 %v3813, %v3816
  %vm3818 = vweird.f32 %v3425
  %vm3819 = vweird.f32 %v3813
  %vm3820 = vmor %vm3818, %vm3819
  %v3821 = vsel %vm3820, %v3813, %v3817
  %v3822 = vand.u32 2147483647, %v3425
  %vm3823 = vcmp.eq.f32.partialorder %v3822, 8.507059e+37
  %v3824 = vand.u32 %v3425, 2147483648
  %v3825 = vor.u32 1.1754944e-38, %v3824
  %v3826 = vsel %vm3823, %v3825, %v3821
  %v3827 = vmul.f32 1.0, %v3826
  %v3828 = vrcp.pop %v3426
  %v3829 = vmul.f32 %v3426, %v3828
  %v3830 = vsub.f32 1.0, %v3829
  %v3831 = vmul.f32 %v3828, %v3830
  %v3832 = vadd.f32 %v3828, %v3831
  %vm3833 = vweird.f32 %v3426
  %vm3834 = vweird.f32 %v3828
  %vm3835 = vmor %vm3833, %vm3834
  %v3836 = vsel %vm3835, %v3828, %v3832
  %v3837 = vand.u32 2147483647, %v3426
  %vm3838 = vcmp.eq.f32.partialorder %v3837, 8.507059e+37
  %v3839 = vand.u32 %v3426, 2147483648
  %v3840 = vor.u32 1.1754944e-38, %v3839
  %v3841 = vsel %vm3838, %v3840, %v3836
  %v3842 = vmul.f32 1.0, %v3841
  %v3843 = vrcp.pop %v3427
  %v3844 = vmul.f32 %v3427, %v3843
  %v3845 = vsub.f32 1.0, %v3844
  %v3846 = vmul.f32 %v3843, %v3845
  %v3847 = vadd.f32 %v3843, %v3846
  %vm3848 = vweird.f32 %v3427
  %vm3849 = vweird.f32 %v3843
  %vm3850 = vmor %vm3848, %vm3849
  %v3851 = vsel %vm3850, %v3843, %v3847
  %v3852 = vand.u32 2147483647, %v3427
  %vm3853 = vcmp.eq.f32.partialorder %v3852, 8.507059e+37
  %v3854 = vand.u32 %v3427, 2147483648
  %v3855 = vor.u32 1.1754944e-38, %v3854
  %v3856 = vsel %vm3853, %v3855, %v3851
  %v3857 = vmul.f32 1.0, %v3856
  %v3858 = vrcp.pop %v3428
  %v3859 = vmul.f32 %v3428, %v3858
  %v3860 = vsub.f32 1.0, %v3859
  %v3861 = vmul.f32 %v3858, %v3860
  %v3862 = vadd.f32 %v3858, %v3861
  %vm3863 = vweird.f32 %v3428
  %vm3864 = vweird.f32 %v3858
  %vm3865 = vmor %vm3863, %vm3864
  %v3866 = vsel %vm3865, %v3858, %v3862
  %v3867 = vand.u32 2147483647, %v3428
  %vm3868 = vcmp.eq.f32.partialorder %v3867, 8.507059e+37
  %v3869 = vand.u32 %v3428, 2147483648
  %v3870 = vor.u32 1.1754944e-38, %v3869
  %v3871 = vsel %vm3868, %v3870, %v3866
  %v3872 = vmul.f32 1.0, %v3871
  %v3873 = vrcp.pop %v3429
  %v3874 = vmul.f32 %v3429, %v3873
  %v3875 = vsub.f32 1.0, %v3874
  %v3876 = vmul.f32 %v3873, %v3875
  %v3877 = vadd.f32 %v3873, %v3876
  %vm3878 = vweird.f32 %v3429
  %vm3879 = vweird.f32 %v3873
  %vm3880 = vmor %vm3878, %vm3879
  %v3881 = vsel %vm3880, %v3873, %v3877
  %v3882 = vand.u32 2147483647, %v3429
  %vm3883 = vcmp.eq.f32.partialorder %v3882, 8.507059e+37
  %v3884 = vand.u32 %v3429, 2147483648
  %v3885 = vor.u32 1.1754944e-38, %v3884
  %v3886 = vsel %vm3883, %v3885, %v3881
  %v3887 = vmul.f32 1.0, %v3886
  %v3888 = vrcp.pop %v3430
  %v3889 = vmul.f32 %v3430, %v3888
  %v3890 = vsub.f32 1.0, %v3889
  %v3891 = vmul.f32 %v3888, %v3890
  %v3892 = vadd.f32 %v3888, %v3891
  %vm3893 = vweird.f32 %v3430
  %vm3894 = vweird.f32 %v3888
  %vm3895 = vmor %vm3893, %vm3894
  %v3896 = vsel %vm3895, %v3888, %v3892
  %v3897 = vand.u32 2147483647, %v3430
  %vm3898 = vcmp.eq.f32.partialorder %v3897, 8.507059e+37
  %v3899 = vand.u32 %v3430, 2147483648
  %v3900 = vor.u32 1.1754944e-38, %v3899
  %v3901 = vsel %vm3898, %v3900, %v3896
  %v3902 = vmul.f32 1.0, %v3901
  %v3903 = vrcp.pop %v3431
  %v3904 = vmul.f32 %v3431, %v3903
  %v3905 = vsub.f32 1.0, %v3904
  %v3906 = vmul.f32 %v3903, %v3905
  %v3907 = vadd.f32 %v3903, %v3906
  %vm3908 = vweird.f32 %v3431
  %vm3909 = vweird.f32 %v3903
  %vm3910 = vmor %vm3908, %vm3909
  %v3911 = vsel %vm3910, %v3903, %v3907
  %v3912 = vand.u32 2147483647, %v3431
  %vm3913 = vcmp.eq.f32.partialorder %v3912, 8.507059e+37
  %v3914 = vand.u32 %v3431, 2147483648
  %v3915 = vor.u32 1.1754944e-38, %v3914
  %v3916 = vsel %vm3913, %v3915, %v3911
  %v3917 = vmul.f32 1.0, %v3916
  %v3918 = vrcp.pop %v3432
  %v3919 = vmul.f32 %v3432, %v3918
  %v3920 = vsub.f32 1.0, %v3919
  %v3921 = vmul.f32 %v3918, %v3920
  %v3922 = vadd.f32 %v3918, %v3921
  %vm3923 = vweird.f32 %v3432
  %vm3924 = vweird.f32 %v3918
  %vm3925 = vmor %vm3923, %vm3924
  %v3926 = vsel %vm3925, %v3918, %v3922
  %v3927 = vand.u32 2147483647, %v3432
  %vm3928 = vcmp.eq.f32.partialorder %v3927, 8.507059e+37
  %v3929 = vand.u32 %v3432, 2147483648
  %v3930 = vor.u32 1.1754944e-38, %v3929
  %v3931 = vsel %vm3928, %v3930, %v3926
  %v3932 = vmul.f32 1.0, %v3931
  %v3933 = vrcp.pop %v3433
  %v3934 = vmul.f32 %v3433, %v3933
  %v3935 = vsub.f32 1.0, %v3934
  %v3936 = vmul.f32 %v3933, %v3935
  %v3937 = vadd.f32 %v3933, %v3936
  %vm3938 = vweird.f32 %v3433
  %vm3939 = vweird.f32 %v3933
  %vm3940 = vmor %vm3938, %vm3939
  %v3941 = vsel %vm3940, %v3933, %v3937
  %v3942 = vand.u32 2147483647, %v3433
  %vm3943 = vcmp.eq.f32.partialorder %v3942, 8.507059e+37
  %v3944 = vand.u32 %v3433, 2147483648
  %v3945 = vor.u32 1.1754944e-38, %v3944
  %v3946 = vsel %vm3943, %v3945, %v3941
  %v3947 = vmul.f32 1.0, %v3946
  %v3948 = vrcp.pop %v3434
  %v3949 = vmul.f32 %v3434, %v3948
  %v3950 = vsub.f32 1.0, %v3949
  %v3951 = vmul.f32 %v3948, %v3950
  %v3952 = vadd.f32 %v3948, %v3951
  %vm3953 = vweird.f32 %v3434
  %vm3954 = vweird.f32 %v3948
  %vm3955 = vmor %vm3953, %vm3954
  %v3956 = vsel %vm3955, %v3948, %v3952
  %v3957 = vand.u32 2147483647, %v3434
  %vm3958 = vcmp.eq.f32.partialorder %v3957, 8.507059e+37
  %v3959 = vand.u32 %v3434, 2147483648
  %v3960 = vor.u32 1.1754944e-38, %v3959
  %v3961 = vsel %vm3958, %v3960, %v3956
  %v3962 = vmul.f32 1.0, %v3961
  %v3963 = vrcp.pop %v3435
  %v3964 = vmul.f32 %v3435, %v3963
  %v3965 = vsub.f32 1.0, %v3964
  %v3966 = vmul.f32 %v3963, %v3965
  %v3967 = vadd.f32 %v3963, %v3966
  %vm3968 = vweird.f32 %v3435
  %vm3969 = vweird.f32 %v3963
  %vm3970 = vmor %vm3968, %vm3969
  %v3971 = vsel %vm3970, %v3963, %v3967
  %v3972 = vand.u32 2147483647, %v3435
  %vm3973 = vcmp.eq.f32.partialorder %v3972, 8.507059e+37
  %v3974 = vand.u32 %v3435, 2147483648
  %v3975 = vor.u32 1.1754944e-38, %v3974
  %v3976 = vsel %vm3973, %v3975, %v3971
  %v3977 = vmul.f32 1.0, %v3976
  %v3978 = vrcp.pop %v3436
  %v3979 = vmul.f32 %v3436, %v3978
  %v3980 = vsub.f32 1.0, %v3979
  %v3981 = vmul.f32 %v3978, %v3980
  %v3982 = vadd.f32 %v3978, %v3981
  %vm3983 = vweird.f32 %v3436
  %vm3984 = vweird.f32 %v3978
  %vm3985 = vmor %vm3983, %vm3984
  %v3986 = vsel %vm3985, %v3978, %v3982
  %v3987 = vand.u32 2147483647, %v3436
  %vm3988 = vcmp.eq.f32.partialorder %v3987, 8.507059e+37
  %v3989 = vand.u32 %v3436, 2147483648
  %v3990 = vor.u32 1.1754944e-38, %v3989
  %v3991 = vsel %vm3988, %v3990, %v3986
  %v3992 = vmul.f32 1.0, %v3991
  %v3993 = vrcp.pop %v3437
  %v3994 = vmul.f32 %v3437, %v3993
  %v3995 = vsub.f32 1.0, %v3994
  %v3996 = vmul.f32 %v3993, %v3995
  %v3997 = vadd.f32 %v3993, %v3996
  %vm3998 = vweird.f32 %v3437
  %vm3999 = vweird.f32 %v3993
  %vm4000 = vmor %vm3998, %vm3999
  %v4001 = vsel %vm4000, %v3993, %v3997
  %v4002 = vand.u32 2147483647, %v3437
  %vm4003 = vcmp.eq.f32.partialorder %v4002, 8.507059e+37
  %v4004 = vand.u32 %v3437, 2147483648
  %v4005 = vor.u32 1.1754944e-38, %v4004
  %v4006 = vsel %vm4003, %v4005, %v4001
  %v4007 = vmul.f32 1.0, %v4006
  %v4008 = vpack.c.bf16 %v3467, %v3452
  %v4009 = vpack.c.bf16 %v3497, %v3482
  %v4010 = vpack.c.bf16 %v3527, %v3512
  %v4011 = vpack.c.bf16 %v3557, %v3542
  %v4012 = vpack.c.bf16 %v3587, %v3572
  %v4013 = vpack.c.bf16 %v3617, %v3602
  %v4014 = vpack.c.bf16 %v3647, %v3632
  %v4015 = vpack.c.bf16 %v3677, %v3662
  %v4016 = vpack.c.bf16 %v3707, %v3692
  %v4017 = vpack.c.bf16 %v3722, %v3722
  %v4018 = vpack.c.bf16 %v3752, %v3737
  %v4019 = vpack.c.bf16 %v3782, %v3767
  %v4020 = vpack.c.bf16 %v3812, %v3797
  %v4021 = vpack.c.bf16 %v3842, %v3827
  %v4022 = vpack.c.bf16 %v3872, %v3857
  %v4023 = vpack.c.bf16 %v3902, %v3887
  %v4024 = vpack.c.bf16 %v3932, %v3917
  %v4025 = vpack.c.bf16 %v3962, %v3947
  %v4026 = vpack.c.bf16 %v3992, %v3977
  %v4027 = vpack.c.bf16 %v4007, %v4007
  %4028 = vst [vmem:[%s21] sm:$0xff] %v4008
  %4029 = vst [vmem:[%s21 + $0x8] sm:$0xff] %v4009
  %4030 = vst [vmem:[%s21 + $0x10] sm:$0xff] %v4010
  %4031 = vst [vmem:[%s21 + $0x18] sm:$0xff] %v4011
  %4032 = vst [vmem:[%s21 + $0x20] sm:$0xff] %v4012
  %4033 = vst [vmem:[%s21 + $0x28] sm:$0xff] %v4013
  %4034 = vst [vmem:[%s21 + $0x30] sm:$0xff] %v4014
  %4035 = vst [vmem:[%s21 + $0x38] sm:$0xff] %v4015
  %4036 = vst [vmem:[%s21 + $0x40] sm:$0xff] %v4016
  %vm4037 = vcmask 388096
  %4038 = vst.msk [vmem:[%s21 + $0x48] sm:$0xf] %vm4037, %v4017
  %4039 = vst [vmem:[%s21 + $0x4c] sm:$0xff] %v4018
  %4040 = vst [vmem:[%s21 + $0x54] sm:$0xff] %v4019
  %4041 = vst [vmem:[%s21 + $0x5c] sm:$0xff] %v4020
  %4042 = vst [vmem:[%s21 + $0x64] sm:$0xff] %v4021
  %4043 = vst [vmem:[%s21 + $0x6c] sm:$0xff] %v4022
  %4044 = vst [vmem:[%s21 + $0x74] sm:$0xff] %v4023
  %4045 = vst [vmem:[%s21 + $0x7c] sm:$0xff] %v4024
  %4046 = vst [vmem:[%s21 + $0x84] sm:$0xff] %v4025
  %4047 = vst [vmem:[%s21 + $0x8c] sm:$0xff] %v4026
  %4048 = vst.msk [vmem:[%s21 + $0x94] sm:$0xf] %vm4037, %v4027
  // Predicated region
  $region86: #{autoencoder_forward.1} parent=0 // pred_check
    _
  $region87: #{autoencoder_forward.1} parent=0 // pred_check_branch
    %4050 = sbr.rel (0) target = $region89
  $region88: #{autoencoder_forward.1} parent=0 // pred_region
    _
  $region89: #{autoencoder_forward.1} parent=0 // pred_fallthru
    _
  // Predicated region
  $region90: #{autoencoder_forward.1} parent=0 // pred_check
    _
  $region91: #{autoencoder_forward.1} parent=0 // pred_check_branch
    %4052 = sbr.rel (0) target = $region93
  $region92: #{autoencoder_forward.1} parent=0 // pred_region
    _
  $region93: #{autoencoder_forward.1} parent=0 // pred_fallthru
    _

</llo_original>
